<compile_context>
chip_gen: v6e
topology: v6e:2x2x1
jax: 0.10.0
libtpu: 0.0.40
codegen_flags: <defaults>
</compile_context>

<pallas_src>
import functools

import jax
import jax.numpy as jnp
from jax import lax
from jax.experimental import pallas as pl
from jax.experimental.pallas import tpu as pltpu


_NEG_BIG = -1e30          # effectively -inf for the online LSE, without inf arithmetic
_LANES = 128              # vreg lane width = chunk width = accumulator lane width


def _round_up(x, m):
    return ((x + m - 1) // m) * m


def _supcon_kernel(x_ref, yt_ref, xl_ref, yl_ref, colb_ref, out_ref,
                   m_scr, s_scr, p_scr, c_scr, *, num_chunks):
    """One (M-tile, N-block) grid step.

    x_ref   : (tm, k_pad)   features, pre-scaled by 1/temperature
    yt_ref  : (k_pad, tn)   y^T block (tn = num_chunks * 128)
    xl_ref  : (tm, 1)       x labels (padded rows carry a sentinel)
    yl_ref  : (1, tn)       y labels (padded cols carry a different sentinel)
    colb_ref: (1, tn)       0.0 for valid cols, -1e30 for padded cols
    out_ref : (1, 8, 128)   per-M-tile partial loss sum (scalar broadcast, unmasked vst)
    *_scr   : (tm, 128)     lane-parallel accumulators: running max, running sum(exp),
                            sum(sim * mask), mask count
    """
    j = pl.program_id(1)
    nj = pl.num_programs(1)

    @pl.when(j == 0)
    def _init():
        m_scr[...] = jnp.full_like(m_scr, _NEG_BIG)
        s_scr[...] = jnp.zeros_like(s_scr)
        p_scr[...] = jnp.zeros_like(p_scr)
        c_scr[...] = jnp.zeros_like(c_scr)

    xl = xl_ref[...]                                        # (tm, 1) int32

    def chunk_step(off):
        # (tm, k_pad) @ (k_pad, 128) on the MXU; native dtype in, f32 accumulation.
        sim = jnp.dot(x_ref[...], yt_ref[:, pl.ds(off, _LANES)],
                      preferred_element_type=jnp.float32)   # (tm, 128)
        # Padded columns -> -1e30 via a single broadcast bias add.
        sim_v = sim + colb_ref[:, pl.ds(off, _LANES)]
        # Sentinel-padded labels: padded columns can never match (no `& colv`).
        eq = xl == yl_ref[:, pl.ds(off, _LANES)]            # (tm, 128) bool

        # Lane-parallel online log-sum-exp (no cross-lane reductions in the hot loop).
        m_old = m_scr[...]
        m_new = jnp.maximum(m_old, sim_v)
        s_scr[...] = s_scr[...] * jnp.exp(m_old - m_new) + jnp.exp(sim_v - m_new)
        m_scr[...] = m_new
        # Positive-pair sum / count (reuse sim_v; raw `sim` is already dead).
        p_scr[...] = p_scr[...] + jnp.where(eq, sim_v, 0.0)
        c_scr[...] = c_scr[...] + jnp.where(eq, 1.0, 0.0)

    if num_chunks <= 8:
        # Short fixed trip count: straight-line, full scheduler visibility.
        for c in range(num_chunks):
            chunk_step(c * _LANES)
    else:
        def body(c, carry):
            chunk_step(pl.multiple_of(c * _LANES, _LANES))
            return carry
        # num_chunks is always a multiple of 4 (tn is a multiple of 512).
        lax.fori_loop(0, num_chunks, body, 0, unroll=4)

    @pl.when(j == nj - 1)
    def _finalize():
        # One cross-lane (XLU) combine per M tile.
        m_l = m_scr[...]
        m_row = jnp.max(m_l, axis=1, keepdims=True)                        # (tm, 1)
        s_row = jnp.sum(s_scr[...] * jnp.exp(m_l - m_row), axis=1, keepdims=True)
        lse = m_row + jnp.log(s_row)
        p_row = jnp.sum(p_scr[...], axis=1, keepdims=True)
        c_row = jnp.sum(c_scr[...], axis=1, keepdims=True)
        # sum(log_prob * mask) = sum(sim*mask) - count * lse   (log_prob never built).
        # Exact divide (cheap, per-row).  Zero-positive rows (incl. padded rows)
        # contribute 0 instead of NaN.
        per_row = (p_row - c_row * lse) / jnp.maximum(c_row, 1.0)
        # Lane-dense (8,128) output block: single unmasked full-vreg store.
        out_ref[...] = jnp.full(out_ref.shape, -jnp.sum(per_row), jnp.float32)


def supcon_loss2(x_features, x_labels, y_features, y_labels, temperature=0.2,
                 *, tm=128, tn=None, max_resident_bytes=6 * 1024 * 1024):
    """Pallas implementation of SupConLoss2.forward (returns the scalar loss)."""
    M, K = x_features.shape
    N, K2 = y_features.shape
    assert K == K2
    assert x_labels.shape[0] == M and y_labels.shape[0] == N

    feat_dtype = jnp.result_type(x_features.dtype, y_features.dtype)  # bf16 stays bf16
    dbytes = jnp.dtype(feat_dtype).itemsize

    m_pad = _round_up(M, tm)
    k_pad = _round_up(K, _LANES)                   # lane-align the contraction dim

    # N tiling: keep the whole y^T resident in VMEM when it fits (fetched from HBM
    # exactly once); otherwise stream wide blocks along the inner grid axis.
    if tn is None:
        n_res = _round_up(N, 512)
        if k_pad * n_res * dbytes <= max_resident_bytes:
            tn = n_res
        else:
            tn = max(512, ((2 * 1024 * 1024) // (k_pad * dbytes)) // 512 * 512)
            tn = min(tn, n_res)
    assert tn % 512 == 0, "tn must be a multiple of 512"
    n_pad = _round_up(N, tn)
    num_chunks = tn // _LANES

    inv_t = 1.0 / float(temperature)

    # Fold 1/temperature into x (in f32, before any bf16 cast).
    xp = jnp.zeros((m_pad, k_pad), feat_dtype).at[:M, :K].set(
        (x_features.astype(jnp.float32) * inv_t).astype(feat_dtype))
    # Pre-transposed RHS: the kernel does plain (tm,K)@(K,128) dots (no XLU transpose).
    ytp = jnp.zeros((k_pad, n_pad), feat_dtype).at[:K, :N].set(
        y_features.astype(feat_dtype).T)

    # Sentinel-padded labels: padded x rows / y cols can never match anything
    # (assumes real labels never use INT32_MIN or INT32_MIN + 1).
    x_sent = jnp.iinfo(jnp.int32).min + 1
    y_sent = jnp.iinfo(jnp.int32).min
    xl = jnp.full((m_pad, 1), x_sent, jnp.int32).at[:M, 0].set(
        x_labels.astype(jnp.int32).reshape(-1))
    yl = jnp.full((1, n_pad), y_sent, jnp.int32).at[0, :N].set(
        y_labels.astype(jnp.int32).reshape(-1))
    # Column bias: 0 for valid columns, -1e30 for padded ones (keeps them out of LSE).
    colb = jnp.where(jnp.arange(n_pad) < N, 0.0, _NEG_BIG).astype(
        jnp.float32).reshape(1, n_pad)

    grid_m = m_pad // tm
    grid_n = n_pad // tn

    kernel = functools.partial(_supcon_kernel, num_chunks=num_chunks)

    # y^T is read once when resident (grid_n == 1); otherwise re-streamed per M tile.
    y_passes = 1 if grid_n == 1 else grid_m
    cost = pl.CostEstimate(
        flops=2 * m_pad * n_pad * k_pad,
        transcendentals=2 * m_pad * n_pad,          # two exps per sim element
        bytes_accessed=(m_pad * k_pad + y_passes * k_pad * n_pad) * dbytes
                       + (m_pad + 2 * n_pad) * 4 + grid_m * 8 * 128 * 4)

    # VMEM: double-buffered x / y^T blocks + 4 lane-parallel accumulators + slack.
    vmem_needed = 2 * (tm * k_pad + k_pad * tn) * dbytes + 4 * tm * _LANES * 4
    vmem_limit = min(48 * 1024 * 1024,
                     max(32 * 1024 * 1024, int(vmem_needed * 1.5)))

    partials = pl.pallas_call(
        kernel,
        out_shape=jax.ShapeDtypeStruct((grid_m, 8, 128), jnp.float32),
        grid_spec=pltpu.PrefetchScalarGridSpec(
            num_scalar_prefetch=0,
            grid=(grid_m, grid_n),
            in_specs=[
                pl.BlockSpec((tm, k_pad), lambda i, j: (i, 0)),   # x tile (pre-scaled)
                pl.BlockSpec((k_pad, tn), lambda i, j: (0, j)),   # y^T block
                pl.BlockSpec((tm, 1), lambda i, j: (i, 0)),       # x labels
                pl.BlockSpec((1, tn), lambda i, j: (0, j)),       # y labels
                pl.BlockSpec((1, tn), lambda i, j: (0, j)),       # column bias
            ],
            out_specs=pl.BlockSpec((1, 8, 128), lambda i, j: (i, 0, 0)),
            scratch_shapes=[pltpu.VMEM((tm, _LANES), jnp.float32)] * 4,
        ),
        compiler_params=pltpu.CompilerParams(
            dimension_semantics=("parallel", "arbitrary"),  # M across TCs on v7x
            vmem_limit_bytes=vmem_limit),
        cost_estimate=cost,
    )(xp, ytp, xl, yl, colb)

    # Tiny final reduction over per-M-tile partial sums (outside the kernel).
    return jnp.sum(partials[:, 0, 0]) / M


def _reference(x_features, x_labels, y_features, y_labels, temperature=0.2):
    """Pure-JAX reference mirroring the PyTorch module (f32 math)."""
    xf = x_features.astype(jnp.float32)
    yf = y_features.astype(jnp.float32)
    xl = x_labels.reshape(-1, 1)
    yl = y_labels.reshape(-1, 1)
    label_mask = (xl == yl.T).astype(jnp.float32)
    sim = jnp.matmul(xf, yf.T) / temperature
    sim = sim - jnp.max(sim, axis=1, keepdims=True)
    exp_sim = jnp.exp(sim)
    log_prob = sim - jnp.log(jnp.sum(exp_sim, axis=1, keepdims=True))
    per = jnp.sum(log_prob * label_mask, axis=1) / jnp.sum(label_mask, axis=1)
    return -jnp.mean(per)


if __name__ == "__main__":
    key = jax.random.PRNGKey(0)

    def make_case(m, n, k, kk):
        kx, ky, klx, kly = jax.random.split(kk, 4)
        x = jax.random.normal(kx, (m, k), dtype=jnp.float32)
        y = jax.random.normal(ky, (n, k), dtype=jnp.float32)
        x = x / jnp.linalg.norm(x, axis=1, keepdims=True)
        y = y / jnp.linalg.norm(y, axis=1, keepdims=True)
        xlab = jax.random.randint(klx, (m,), 0, 3, dtype=jnp.int32)
        ylab = jax.random.randint(kly, (n,), 0, 3, dtype=jnp.int32)
        # Guarantee every x row has >= 1 positive among y (the PyTorch code assumes it).
        ylab = ylab.at[:3].set(jnp.array([0, 1, 2], dtype=jnp.int32))
        return x, xlab, y, ylab

    k0, k1, k2 = jax.random.split(key, 3)

    # Case 1: f32, M/N/K padding, resident y^T, straight-line chunk loop.
    x, xlab, y, ylab = make_case(500, 500, 96, k0)
    loss = jax.block_until_ready(supcon_loss2(x, xlab, y, ylab, temperature=0.2))
    ref = _reference(x, xlab, y, ylab, temperature=0.2)
    assert jnp.allclose(loss, ref, atol=1e-2, rtol=1e-2), (loss, ref)

    # Case 2: bf16 features (MXU in bf16, all post-matmul math in f32).
    xb, yb = x.astype(jnp.bfloat16), y.astype(jnp.bfloat16)
    loss_bf16 = jax.block_until_ready(
        supcon_loss2(xb, xlab, yb, ylab, temperature=0.2))
    ref_bf16 = _reference(xb, xlab, yb, ylab, temperature=0.2)
    assert jnp.allclose(loss_bf16, ref_bf16, atol=3e-2, rtol=3e-2), (loss_bf16, ref_bf16)

    # Case 3: multi-N-block grid (streaming path + cross-step LSE carry) via tn override.
    x3, xl3, y3, yl3 = make_case(300, 1300, 96, k1)
    loss3 = jax.block_until_ready(
        supcon_loss2(x3, xl3, y3, yl3, temperature=0.2, tn=512))
    ref3 = _reference(x3, xl3, y3, yl3, temperature=0.2)
    assert jnp.allclose(loss3, ref3, atol=1e-2, rtol=1e-2), (loss3, ref3)

    # Case 4: resident y^T with a long in-kernel chunk loop (fori_loop path).
    x4, xl4, y4, yl4 = make_case(200, 2500, 96, k2)
    loss4 = jax.block_until_ready(supcon_loss2(x4, xl4, y4, yl4, temperature=0.2))
    ref4 = _reference(x4, xl4, y4, yl4, temperature=0.2)
    assert jnp.allclose(loss4, ref4, atol=1e-2, rtol=1e-2), (loss4, ref4)

    print("KERNEL_OK")
</pallas_src>

<mosaic_0001>
module attributes {stable_mosaic.version = 11 : i64} {
  func.func @_supcon_kernel(%arg0: i32, %arg1: i32, %arg2: memref<128x128xf32, #tpu.memory_space<vmem>>, %arg3: memref<128x512xf32, #tpu.memory_space<vmem>>, %arg4: memref<128x1xi32, #tpu.memory_space<vmem>>, %arg5: memref<1x512xi32, #tpu.memory_space<vmem>>, %arg6: memref<1x512xf32, #tpu.memory_space<vmem>>, %arg7: memref<1x8x128xf32, #tpu.memory_space<vmem>>, %arg8: memref<128x128xf32, #tpu.memory_space<vmem>>, %arg9: memref<128x128xf32, #tpu.memory_space<vmem>>, %arg10: memref<128x128xf32, #tpu.memory_space<vmem>>, %arg11: memref<128x128xf32, #tpu.memory_space<vmem>>) attributes {dimension_semantics = [#tpu.dimension_semantics<parallel>, #tpu.dimension_semantics<arbitrary>], iteration_bounds = array<i64: 4, 1>, scalar_prefetch = 0 : i64, scratch_operands = 4 : i64, tpu.core_type = #tpu.core_type<tc>, window_params = [{transform_indices = @transform_0, window_bounds = array<i64: 128, 128>}, {transform_indices = @transform_1, window_bounds = array<i64: 128, 512>}, {transform_indices = @transform_2, window_bounds = array<i64: 128, 1>}, {transform_indices = @transform_3, window_bounds = array<i64: 1, 512>}, {transform_indices = @transform_4, window_bounds = array<i64: 1, 512>}, {transform_indices = @transform_5, window_bounds = array<i64: 1, 8, 128>}]} {
    %c0_i32 = arith.constant 0 : i32
    %0 = arith.cmpi eq, %arg1, %c0_i32 : i32
    %1 = arith.extui %0 : i1 to i32
    %c0_i32_0 = arith.constant 0 : i32
    %2 = arith.cmpi ne, %1, %c0_i32_0 : i32
    scf.if %2 {
      %cst_112 = arith.constant -1.000000e+30 : f32
      %135 = vector.broadcast %cst_112 : f32 to vector<128x128xf32>
      %c0_113 = arith.constant 0 : index
      %c0_114 = arith.constant 0 : index
      %136 = vector.load %arg8[%c0_113, %c0_114] : memref<128x128xf32, #tpu.memory_space<vmem>>, vector<128x128xf32>
      tpu.vector_store %arg8[%c0_113, %c0_114], %135 {strides = array<i32>} : memref<128x128xf32, #tpu.memory_space<vmem>>, vector<128x128xf32>,
      %cst_115 = arith.constant 0.000000e+00 : f32
      %137 = vector.broadcast %cst_115 : f32 to vector<128x128xf32>
      %c0_116 = arith.constant 0 : index
      %c0_117 = arith.constant 0 : index
      %138 = vector.load %arg9[%c0_116, %c0_117] : memref<128x128xf32, #tpu.memory_space<vmem>>, vector<128x128xf32>
      tpu.vector_store %arg9[%c0_116, %c0_117], %137 {strides = array<i32>} : memref<128x128xf32, #tpu.memory_space<vmem>>, vector<128x128xf32>,
      %cst_118 = arith.constant 0.000000e+00 : f32
      %139 = vector.broadcast %cst_118 : f32 to vector<128x128xf32>
      %c0_119 = arith.constant 0 : index
      %c0_120 = arith.constant 0 : index
      %140 = vector.load %arg10[%c0_119, %c0_120] : memref<128x128xf32, #tpu.memory_space<vmem>>, vector<128x128xf32>
      tpu.vector_store %arg10[%c0_119, %c0_120], %139 {strides = array<i32>} : memref<128x128xf32, #tpu.memory_space<vmem>>, vector<128x128xf32>,
      %cst_121 = arith.constant 0.000000e+00 : f32
      %141 = vector.broadcast %cst_121 : f32 to vector<128x128xf32>
      %c0_122 = arith.constant 0 : index
      %c0_123 = arith.constant 0 : index
      %142 = vector.load %arg11[%c0_122, %c0_123] : memref<128x128xf32, #tpu.memory_space<vmem>>, vector<128x128xf32>
      tpu.vector_store %arg11[%c0_122, %c0_123], %141 {strides = array<i32>} : memref<128x128xf32, #tpu.memory_space<vmem>>, vector<128x128xf32>,
    } else {
    }
    %c0 = arith.constant 0 : index
    %c0_1 = arith.constant 0 : index
    %3 = vector.load %arg4[%c0, %c0_1] : memref<128x1xi32, #tpu.memory_space<vmem>>, vector<128x1xi32>
    %c0_2 = arith.constant 0 : index
    %c0_3 = arith.constant 0 : index
    %4 = vector.load %arg2[%c0_2, %c0_3] : memref<128x128xf32, #tpu.memory_space<vmem>>, vector<128x128xf32>
    %c0_4 = arith.constant 0 : index
    %c0_5 = arith.constant 0 : index
    %5 = vector.load %arg3[%c0_4, %c0_5] : memref<128x512xf32, #tpu.memory_space<vmem>>, vector<128x128xf32>
    %cst = arith.constant dense<0.000000e+00> : vector<128x128xf32>
    %6 = tpu.matmul %4, %5, %cst {dimension_numbers = #tpu.dot_dimension_numbers<[1], [0], [0], [1], [0, 0, 1, 1], [], []>} : vector<128x128xf32>, vector<128x128xf32>, vector<128x128xf32> -> vector<128x128xf32>
    %c0_6 = arith.constant 0 : index
    %c0_7 = arith.constant 0 : index
    %7 = vector.load %arg6[%c0_6, %c0_7] : memref<1x512xf32, #tpu.memory_space<vmem>>, vector<1x128xf32>
    %8 = vector.broadcast %7 : vector<1x128xf32> to vector<128x128xf32>
    %9 = arith.addf %6, %8 : vector<128x128xf32>
    %c0_8 = arith.constant 0 : index
    %c0_9 = arith.constant 0 : index
    %10 = vector.load %arg5[%c0_8, %c0_9] : memref<1x512xi32, #tpu.memory_space<vmem>>, vector<1x128xi32>
    %11 = vector.broadcast %3 : vector<128x1xi32> to vector<128x128xi32>
    %12 = vector.broadcast %10 : vector<1x128xi32> to vector<128x128xi32>
    %13 = arith.cmpi eq, %11, %12 : vector<128x128xi32>
    %c0_10 = arith.constant 0 : index
    %c0_11 = arith.constant 0 : index
    %14 = vector.load %arg8[%c0_10, %c0_11] : memref<128x128xf32, #tpu.memory_space<vmem>>, vector<128x128xf32>
    %15 = arith.maximumf %14, %9 : vector<128x128xf32>
    %c0_12 = arith.constant 0 : index
    %c0_13 = arith.constant 0 : index
    %16 = vector.load %arg9[%c0_12, %c0_13] : memref<128x128xf32, #tpu.memory_space<vmem>>, vector<128x128xf32>
    %17 = arith.subf %14, %15 : vector<128x128xf32>
    %18 = math.exp %17 : vector<128x128xf32>
    %19 = arith.mulf %16, %18 : vector<128x128xf32>
    %20 = arith.subf %9, %15 : vector<128x128xf32>
    %21 = math.exp %20 : vector<128x128xf32>
    %22 = arith.addf %19, %21 : vector<128x128xf32>
    %c0_14 = arith.constant 0 : index
    %c0_15 = arith.constant 0 : index
    %23 = vector.load %arg9[%c0_14, %c0_15] : memref<128x128xf32, #tpu.memory_space<vmem>>, vector<128x128xf32>
    tpu.vector_store %arg9[%c0_14, %c0_15], %22 {strides = array<i32>} : memref<128x128xf32, #tpu.memory_space<vmem>>, vector<128x128xf32>,
    %c0_16 = arith.constant 0 : index
    %c0_17 = arith.constant 0 : index
    %24 = vector.load %arg8[%c0_16, %c0_17] : memref<128x128xf32, #tpu.memory_space<vmem>>, vector<128x128xf32>
    tpu.vector_store %arg8[%c0_16, %c0_17], %15 {strides = array<i32>} : memref<128x128xf32, #tpu.memory_space<vmem>>, vector<128x128xf32>,
    %c0_18 = arith.constant 0 : index
    %c0_19 = arith.constant 0 : index
    %25 = vector.load %arg10[%c0_18, %c0_19] : memref<128x128xf32, #tpu.memory_space<vmem>>, vector<128x128xf32>
    %cst_20 = arith.constant 0.000000e+00 : f32
    %26 = vector.broadcast %cst_20 : f32 to vector<128x128xf32>
    %27 = arith.select %13, %9, %26 : vector<128x128xi1>, vector<128x128xf32>
    %28 = arith.addf %25, %27 : vector<128x128xf32>
    %c0_21 = arith.constant 0 : index
    %c0_22 = arith.constant 0 : index
    %29 = vector.load %arg10[%c0_21, %c0_22] : memref<128x128xf32, #tpu.memory_space<vmem>>, vector<128x128xf32>
    tpu.vector_store %arg10[%c0_21, %c0_22], %28 {strides = array<i32>} : memref<128x128xf32, #tpu.memory_space<vmem>>, vector<128x128xf32>,
    %c0_23 = arith.constant 0 : index
    %c0_24 = arith.constant 0 : index
    %30 = vector.load %arg11[%c0_23, %c0_24] : memref<128x128xf32, #tpu.memory_space<vmem>>, vector<128x128xf32>
    %cst_25 = arith.constant 1.000000e+00 : f32
    %cst_26 = arith.constant 0.000000e+00 : f32
    %31 = vector.broadcast %cst_25 : f32 to vector<128x128xf32>
    %32 = vector.broadcast %cst_26 : f32 to vector<128x128xf32>
    %33 = arith.select %13, %31, %32 : vector<128x128xi1>, vector<128x128xf32>
    %34 = arith.addf %30, %33 : vector<128x128xf32>
    %c0_27 = arith.constant 0 : index
    %c0_28 = arith.constant 0 : index
    %35 = vector.load %arg11[%c0_27, %c0_28] : memref<128x128xf32, #tpu.memory_space<vmem>>, vector<128x128xf32>
    tpu.vector_store %arg11[%c0_27, %c0_28], %34 {strides = array<i32>} : memref<128x128xf32, #tpu.memory_space<vmem>>, vector<128x128xf32>,
    %c0_29 = arith.constant 0 : index
    %c0_30 = arith.constant 0 : index
    %36 = vector.load %arg2[%c0_29, %c0_30] : memref<128x128xf32, #tpu.memory_space<vmem>>, vector<128x128xf32>
    %c0_31 = arith.constant 0 : index
    %c128 = arith.constant 128 : index
    %37 = vector.load %arg3[%c0_31, %c128] : memref<128x512xf32, #tpu.memory_space<vmem>>, vector<128x128xf32>
    %cst_32 = arith.constant dense<0.000000e+00> : vector<128x128xf32>
    %38 = tpu.matmul %36, %37, %cst_32 {dimension_numbers = #tpu.dot_dimension_numbers<[1], [0], [0], [1], [0, 0, 1, 1], [], []>} : vector<128x128xf32>, vector<128x128xf32>, vector<128x128xf32> -> vector<128x128xf32>
    %c0_33 = arith.constant 0 : index
    %c128_34 = arith.constant 128 : index
    %39 = vector.load %arg6[%c0_33, %c128_34] : memref<1x512xf32, #tpu.memory_space<vmem>>, vector<1x128xf32>
    %40 = vector.broadcast %39 : vector<1x128xf32> to vector<128x128xf32>
    %41 = arith.addf %38, %40 : vector<128x128xf32>
    %c0_35 = arith.constant 0 : index
    %c128_36 = arith.constant 128 : index
    %42 = vector.load %arg5[%c0_35, %c128_36] : memref<1x512xi32, #tpu.memory_space<vmem>>, vector<1x128xi32>
    %43 = vector.broadcast %3 : vector<128x1xi32> to vector<128x128xi32>
    %44 = vector.broadcast %42 : vector<1x128xi32> to vector<128x128xi32>
    %45 = arith.cmpi eq, %43, %44 : vector<128x128xi32>
    %c0_37 = arith.constant 0 : index
    %c0_38 = arith.constant 0 : index
    %46 = vector.load %arg8[%c0_37, %c0_38] : memref<128x128xf32, #tpu.memory_space<vmem>>, vector<128x128xf32>
    %47 = arith.maximumf %46, %41 : vector<128x128xf32>
    %c0_39 = arith.constant 0 : index
    %c0_40 = arith.constant 0 : index
    %48 = vector.load %arg9[%c0_39, %c0_40] : memref<128x128xf32, #tpu.memory_space<vmem>>, vector<128x128xf32>
    %49 = arith.subf %46, %47 : vector<128x128xf32>
    %50 = math.exp %49 : vector<128x128xf32>
    %51 = arith.mulf %48, %50 : vector<128x128xf32>
    %52 = arith.subf %41, %47 : vector<128x128xf32>
    %53 = math.exp %52 : vector<128x128xf32>
    %54 = arith.addf %51, %53 : vector<128x128xf32>
    %c0_41 = arith.constant 0 : index
    %c0_42 = arith.constant 0 : index
    %55 = vector.load %arg9[%c0_41, %c0_42] : memref<128x128xf32, #tpu.memory_space<vmem>>, vector<128x128xf32>
    tpu.vector_store %arg9[%c0_41, %c0_42], %54 {strides = array<i32>} : memref<128x128xf32, #tpu.memory_space<vmem>>, vector<128x128xf32>,
    %c0_43 = arith.constant 0 : index
    %c0_44 = arith.constant 0 : index
    %56 = vector.load %arg8[%c0_43, %c0_44] : memref<128x128xf32, #tpu.memory_space<vmem>>, vector<128x128xf32>
    tpu.vector_store %arg8[%c0_43, %c0_44], %47 {strides = array<i32>} : memref<128x128xf32, #tpu.memory_space<vmem>>, vector<128x128xf32>,
    %c0_45 = arith.constant 0 : index
    %c0_46 = arith.constant 0 : index
    %57 = vector.load %arg10[%c0_45, %c0_46] : memref<128x128xf32, #tpu.memory_space<vmem>>, vector<128x128xf32>
    %cst_47 = arith.constant 0.000000e+00 : f32
    %58 = vector.broadcast %cst_47 : f32 to vector<128x128xf32>
    %59 = arith.select %45, %41, %58 : vector<128x128xi1>, vector<128x128xf32>
    %60 = arith.addf %57, %59 : vector<128x128xf32>
    %c0_48 = arith.constant 0 : index
    %c0_49 = arith.constant 0 : index
    %61 = vector.load %arg10[%c0_48, %c0_49] : memref<128x128xf32, #tpu.memory_space<vmem>>, vector<128x128xf32>
    tpu.vector_store %arg10[%c0_48, %c0_49], %60 {strides = array<i32>} : memref<128x128xf32, #tpu.memory_space<vmem>>, vector<128x128xf32>,
    %c0_50 = arith.constant 0 : index
    %c0_51 = arith.constant 0 : index
    %62 = vector.load %arg11[%c0_50, %c0_51] : memref<128x128xf32, #tpu.memory_space<vmem>>, vector<128x128xf32>
    %cst_52 = arith.constant 1.000000e+00 : f32
    %cst_53 = arith.constant 0.000000e+00 : f32
    %63 = vector.broadcast %cst_52 : f32 to vector<128x128xf32>
    %64 = vector.broadcast %cst_53 : f32 to vector<128x128xf32>
    %65 = arith.select %45, %63, %64 : vector<128x128xi1>, vector<128x128xf32>
    %66 = arith.addf %62, %65 : vector<128x128xf32>
    %c0_54 = arith.constant 0 : index
    %c0_55 = arith.constant 0 : index
    %67 = vector.load %arg11[%c0_54, %c0_55] : memref<128x128xf32, #tpu.memory_space<vmem>>, vector<128x128xf32>
    tpu.vector_store %arg11[%c0_54, %c0_55], %66 {strides = array<i32>} : memref<128x128xf32, #tpu.memory_space<vmem>>, vector<128x128xf32>,
    %c0_56 = arith.constant 0 : index
    %c0_57 = arith.constant 0 : index
    %68 = vector.load %arg2[%c0_56, %c0_57] : memref<128x128xf32, #tpu.memory_space<vmem>>, vector<128x128xf32>
    %c0_58 = arith.constant 0 : index
    %c256 = arith.constant 256 : index
    %69 = vector.load %arg3[%c0_58, %c256] : memref<128x512xf32, #tpu.memory_space<vmem>>, vector<128x128xf32>
    %cst_59 = arith.constant dense<0.000000e+00> : vector<128x128xf32>
    %70 = tpu.matmul %68, %69, %cst_59 {dimension_numbers = #tpu.dot_dimension_numbers<[1], [0], [0], [1], [0, 0, 1, 1], [], []>} : vector<128x128xf32>, vector<128x128xf32>, vector<128x128xf32> -> vector<128x128xf32>
    %c0_60 = arith.constant 0 : index
    %c256_61 = arith.constant 256 : index
    %71 = vector.load %arg6[%c0_60, %c256_61] : memref<1x512xf32, #tpu.memory_space<vmem>>, vector<1x128xf32>
    %72 = vector.broadcast %71 : vector<1x128xf32> to vector<128x128xf32>
    %73 = arith.addf %70, %72 : vector<128x128xf32>
    %c0_62 = arith.constant 0 : index
    %c256_63 = arith.constant 256 : index
    %74 = vector.load %arg5[%c0_62, %c256_63] : memref<1x512xi32, #tpu.memory_space<vmem>>, vector<1x128xi32>
    %75 = vector.broadcast %3 : vector<128x1xi32> to vector<128x128xi32>
    %76 = vector.broadcast %74 : vector<1x128xi32> to vector<128x128xi32>
    %77 = arith.cmpi eq, %75, %76 : vector<128x128xi32>
    %c0_64 = arith.constant 0 : index
    %c0_65 = arith.constant 0 : index
    %78 = vector.load %arg8[%c0_64, %c0_65] : memref<128x128xf32, #tpu.memory_space<vmem>>, vector<128x128xf32>
    %79 = arith.maximumf %78, %73 : vector<128x128xf32>
    %c0_66 = arith.constant 0 : index
    %c0_67 = arith.constant 0 : index
    %80 = vector.load %arg9[%c0_66, %c0_67] : memref<128x128xf32, #tpu.memory_space<vmem>>, vector<128x128xf32>
    %81 = arith.subf %78, %79 : vector<128x128xf32>
    %82 = math.exp %81 : vector<128x128xf32>
    %83 = arith.mulf %80, %82 : vector<128x128xf32>
    %84 = arith.subf %73, %79 : vector<128x128xf32>
    %85 = math.exp %84 : vector<128x128xf32>
    %86 = arith.addf %83, %85 : vector<128x128xf32>
    %c0_68 = arith.constant 0 : index
    %c0_69 = arith.constant 0 : index
    %87 = vector.load %arg9[%c0_68, %c0_69] : memref<128x128xf32, #tpu.memory_space<vmem>>, vector<128x128xf32>
    tpu.vector_store %arg9[%c0_68, %c0_69], %86 {strides = array<i32>} : memref<128x128xf32, #tpu.memory_space<vmem>>, vector<128x128xf32>,
    %c0_70 = arith.constant 0 : index
    %c0_71 = arith.constant 0 : index
    %88 = vector.load %arg8[%c0_70, %c0_71] : memref<128x128xf32, #tpu.memory_space<vmem>>, vector<128x128xf32>
    tpu.vector_store %arg8[%c0_70, %c0_71], %79 {strides = array<i32>} : memref<128x128xf32, #tpu.memory_space<vmem>>, vector<128x128xf32>,
    %c0_72 = arith.constant 0 : index
    %c0_73 = arith.constant 0 : index
    %89 = vector.load %arg10[%c0_72, %c0_73] : memref<128x128xf32, #tpu.memory_space<vmem>>, vector<128x128xf32>
    %cst_74 = arith.constant 0.000000e+00 : f32
    %90 = vector.broadcast %cst_74 : f32 to vector<128x128xf32>
    %91 = arith.select %77, %73, %90 : vector<128x128xi1>, vector<128x128xf32>
    %92 = arith.addf %89, %91 : vector<128x128xf32>
    %c0_75 = arith.constant 0 : index
    %c0_76 = arith.constant 0 : index
    %93 = vector.load %arg10[%c0_75, %c0_76] : memref<128x128xf32, #tpu.memory_space<vmem>>, vector<128x128xf32>
    tpu.vector_store %arg10[%c0_75, %c0_76], %92 {strides = array<i32>} : memref<128x128xf32, #tpu.memory_space<vmem>>, vector<128x128xf32>,
    %c0_77 = arith.constant 0 : index
    %c0_78 = arith.constant 0 : index
    %94 = vector.load %arg11[%c0_77, %c0_78] : memref<128x128xf32, #tpu.memory_space<vmem>>, vector<128x128xf32>
    %cst_79 = arith.constant 1.000000e+00 : f32
    %cst_80 = arith.constant 0.000000e+00 : f32
    %95 = vector.broadcast %cst_79 : f32 to vector<128x128xf32>
    %96 = vector.broadcast %cst_80 : f32 to vector<128x128xf32>
    %97 = arith.select %77, %95, %96 : vector<128x128xi1>, vector<128x128xf32>
    %98 = arith.addf %94, %97 : vector<128x128xf32>
    %c0_81 = arith.constant 0 : index
    %c0_82 = arith.constant 0 : index
    %99 = vector.load %arg11[%c0_81, %c0_82] : memref<128x128xf32, #tpu.memory_space<vmem>>, vector<128x128xf32>
    tpu.vector_store %arg11[%c0_81, %c0_82], %98 {strides = array<i32>} : memref<128x128xf32, #tpu.memory_space<vmem>>, vector<128x128xf32>,
    %c0_83 = arith.constant 0 : index
    %c0_84 = arith.constant 0 : index
    %100 = vector.load %arg2[%c0_83, %c0_84] : memref<128x128xf32, #tpu.memory_space<vmem>>, vector<128x128xf32>
    %c0_85 = arith.constant 0 : index
    %c384 = arith.constant 384 : index
    %101 = vector.load %arg3[%c0_85, %c384] : memref<128x512xf32, #tpu.memory_space<vmem>>, vector<128x128xf32>
    %cst_86 = arith.constant dense<0.000000e+00> : vector<128x128xf32>
    %102 = tpu.matmul %100, %101, %cst_86 {dimension_numbers = #tpu.dot_dimension_numbers<[1], [0], [0], [1], [0, 0, 1, 1], [], []>} : vector<128x128xf32>, vector<128x128xf32>, vector<128x128xf32> -> vector<128x128xf32>
    %c0_87 = arith.constant 0 : index
    %c384_88 = arith.constant 384 : index
    %103 = vector.load %arg6[%c0_87, %c384_88] : memref<1x512xf32, #tpu.memory_space<vmem>>, vector<1x128xf32>
    %104 = vector.broadcast %103 : vector<1x128xf32> to vector<128x128xf32>
    %105 = arith.addf %102, %104 : vector<128x128xf32>
    %c0_89 = arith.constant 0 : index
    %c384_90 = arith.constant 384 : index
    %106 = vector.load %arg5[%c0_89, %c384_90] : memref<1x512xi32, #tpu.memory_space<vmem>>, vector<1x128xi32>
    %107 = vector.broadcast %3 : vector<128x1xi32> to vector<128x128xi32>
    %108 = vector.broadcast %106 : vector<1x128xi32> to vector<128x128xi32>
    %109 = arith.cmpi eq, %107, %108 : vector<128x128xi32>
    %c0_91 = arith.constant 0 : index
    %c0_92 = arith.constant 0 : index
    %110 = vector.load %arg8[%c0_91, %c0_92] : memref<128x128xf32, #tpu.memory_space<vmem>>, vector<128x128xf32>
    %111 = arith.maximumf %110, %105 : vector<128x128xf32>
    %c0_93 = arith.constant 0 : index
    %c0_94 = arith.constant 0 : index
    %112 = vector.load %arg9[%c0_93, %c0_94] : memref<128x128xf32, #tpu.memory_space<vmem>>, vector<128x128xf32>
    %113 = arith.subf %110, %111 : vector<128x128xf32>
    %114 = math.exp %113 : vector<128x128xf32>
    %115 = arith.mulf %112, %114 : vector<128x128xf32>
    %116 = arith.subf %105, %111 : vector<128x128xf32>
    %117 = math.exp %116 : vector<128x128xf32>
    %118 = arith.addf %115, %117 : vector<128x128xf32>
    %c0_95 = arith.constant 0 : index
    %c0_96 = arith.constant 0 : index
    %119 = vector.load %arg9[%c0_95, %c0_96] : memref<128x128xf32, #tpu.memory_space<vmem>>, vector<128x128xf32>
    tpu.vector_store %arg9[%c0_95, %c0_96], %118 {strides = array<i32>} : memref<128x128xf32, #tpu.memory_space<vmem>>, vector<128x128xf32>,
    %c0_97 = arith.constant 0 : index
    %c0_98 = arith.constant 0 : index
    %120 = vector.load %arg8[%c0_97, %c0_98] : memref<128x128xf32, #tpu.memory_space<vmem>>, vector<128x128xf32>
    tpu.vector_store %arg8[%c0_97, %c0_98], %111 {strides = array<i32>} : memref<128x128xf32, #tpu.memory_space<vmem>>, vector<128x128xf32>,
    %c0_99 = arith.constant 0 : index
    %c0_100 = arith.constant 0 : index
    %121 = vector.load %arg10[%c0_99, %c0_100] : memref<128x128xf32, #tpu.memory_space<vmem>>, vector<128x128xf32>
    %cst_101 = arith.constant 0.000000e+00 : f32
    %122 = vector.broadcast %cst_101 : f32 to vector<128x128xf32>
    %123 = arith.select %109, %105, %122 : vector<128x128xi1>, vector<128x128xf32>
    %124 = arith.addf %121, %123 : vector<128x128xf32>
    %c0_102 = arith.constant 0 : index
    %c0_103 = arith.constant 0 : index
    %125 = vector.load %arg10[%c0_102, %c0_103] : memref<128x128xf32, #tpu.memory_space<vmem>>, vector<128x128xf32>
    tpu.vector_store %arg10[%c0_102, %c0_103], %124 {strides = array<i32>} : memref<128x128xf32, #tpu.memory_space<vmem>>, vector<128x128xf32>,
    %c0_104 = arith.constant 0 : index
    %c0_105 = arith.constant 0 : index
    %126 = vector.load %arg11[%c0_104, %c0_105] : memref<128x128xf32, #tpu.memory_space<vmem>>, vector<128x128xf32>
    %cst_106 = arith.constant 1.000000e+00 : f32
    %cst_107 = arith.constant 0.000000e+00 : f32
    %127 = vector.broadcast %cst_106 : f32 to vector<128x128xf32>
    %128 = vector.broadcast %cst_107 : f32 to vector<128x128xf32>
    %129 = arith.select %109, %127, %128 : vector<128x128xi1>, vector<128x128xf32>
    %130 = arith.addf %126, %129 : vector<128x128xf32>
    %c0_108 = arith.constant 0 : index
    %c0_109 = arith.constant 0 : index
    %131 = vector.load %arg11[%c0_108, %c0_109] : memref<128x128xf32, #tpu.memory_space<vmem>>, vector<128x128xf32>
    tpu.vector_store %arg11[%c0_108, %c0_109], %130 {strides = array<i32>} : memref<128x128xf32, #tpu.memory_space<vmem>>, vector<128x128xf32>,
    %c0_i32_110 = arith.constant 0 : i32
    %132 = arith.cmpi eq, %arg1, %c0_i32_110 : i32
    %133 = arith.extui %132 : i1 to i32
    %c0_i32_111 = arith.constant 0 : i32
    %134 = arith.cmpi ne, %133, %c0_i32_111 : i32
    scf.if %134 {
      %c0_112 = arith.constant 0 : index
      %c0_113 = arith.constant 0 : index
      %135 = vector.load %arg8[%c0_112, %c0_113] : memref<128x128xf32, #tpu.memory_space<vmem>>, vector<128x128xf32>
      %cst_114 = arith.constant dense<0xFF800000> : vector<128xf32>
      %136 = vector.multi_reduction <maximumf>, %135, %cst_114 [1] : vector<128x128xf32> to vector<128xf32>
      %137 = vector.shape_cast %136 : vector<128xf32> to vector<128x1xf32>
      %c0_115 = arith.constant 0 : index
      %c0_116 = arith.constant 0 : index
      %138 = vector.load %arg9[%c0_115, %c0_116] : memref<128x128xf32, #tpu.memory_space<vmem>>, vector<128x128xf32>
      %139 = vector.broadcast %137 : vector<128x1xf32> to vector<128x128xf32>
      %140 = arith.subf %135, %139 : vector<128x128xf32>
      %141 = math.exp %140 : vector<128x128xf32>
      %142 = arith.mulf %138, %141 : vector<128x128xf32>
      %cst_117 = arith.constant dense<0.000000e+00> : vector<128xf32>
      %143 = vector.multi_reduction <add>, %142, %cst_117 [1] : vector<128x128xf32> to vector<128xf32>
      %144 = vector.shape_cast %143 : vector<128xf32> to vector<128x1xf32>
      %145 = math.log %144 : vector<128x1xf32>
      %146 = arith.addf %137, %145 : vector<128x1xf32>
      %c0_118 = arith.constant 0 : index
      %c0_119 = arith.constant 0 : index
      %147 = vector.load %arg10[%c0_118, %c0_119] : memref<128x128xf32, #tpu.memory_space<vmem>>, vector<128x128xf32>
      %cst_120 = arith.constant dense<0.000000e+00> : vector<128xf32>
      %148 = vector.multi_reduction <add>, %147, %cst_120 [1] : vector<128x128xf32> to vector<128xf32>
      %149 = vector.shape_cast %148 : vector<128xf32> to vector<128x1xf32>
      %c0_121 = arith.constant 0 : index
      %c0_122 = arith.constant 0 : index
      %150 = vector.load %arg11[%c0_121, %c0_122] : memref<128x128xf32, #tpu.memory_space<vmem>>, vector<128x128xf32>
      %cst_123 = arith.constant dense<0.000000e+00> : vector<128xf32>
      %151 = vector.multi_reduction <add>, %150, %cst_123 [1] : vector<128x128xf32> to vector<128xf32>
      %152 = vector.shape_cast %151 : vector<128xf32> to vector<128x1xf32>
      %153 = arith.mulf %152, %146 : vector<128x1xf32>
      %154 = arith.subf %149, %153 : vector<128x1xf32>
      %cst_124 = arith.constant 1.000000e+00 : f32
      %155 = vector.broadcast %cst_124 : f32 to vector<128x1xf32>
      %156 = arith.maximumf %152, %155 : vector<128x1xf32>
      %157 = arith.divf %154, %156 : vector<128x1xf32>
      %158 = vector.shape_cast %157 : vector<128x1xf32> to vector<1x128x1xf32>
      %cst_125 = arith.constant dense<0.000000e+00> : vector<1xf32>
      %159 = vector.multi_reduction <add>, %158, %cst_125 [1, 2] : vector<1x128x1xf32> to vector<1xf32>
      %160 = vector.shape_cast %159 : vector<1xf32> to vector<1x1x1xf32>
      %161 = vector.extract %160[0, 0, 0] : f32 from vector<1x1x1xf32>
      %cst_126 = arith.constant 0.000000e+00 : f32
      %162 = arith.subf %cst_126, %161 : f32
      %163 = vector.broadcast %162 : f32 to vector<1x8x128xf32>
      %c0_127 = arith.constant 0 : index
      %c0_128 = arith.constant 0 : index
      %c0_129 = arith.constant 0 : index
      %164 = vector.load %arg7[%c0_127, %c0_128, %c0_129] : memref<1x8x128xf32, #tpu.memory_space<vmem>>, vector<1x8x128xf32>
      tpu.vector_store %arg7[%c0_127, %c0_128, %c0_129], %163 {strides = array<i32>} : memref<1x8x128xf32, #tpu.memory_space<vmem>>, vector<1x8x128xf32>,
    } else {
    }
    return
  }
  func.func @transform_0(%arg0: i32, %arg1: i32) -> (i32, i32) {
    %c0_i32 = arith.constant 0 : i32
    %c0_i32_0 = arith.constant 0 : i32
    return %arg0, %c0_i32 : i32, i32
  }
  func.func @transform_1(%arg0: i32, %arg1: i32) -> (i32, i32) {
    %c0_i32 = arith.constant 0 : i32
    %c0_i32_0 = arith.constant 0 : i32
    return %c0_i32, %arg1 : i32, i32
  }
  func.func @transform_2(%arg0: i32, %arg1: i32) -> (i32, i32) {
    %c0_i32 = arith.constant 0 : i32
    %c0_i32_0 = arith.constant 0 : i32
    return %arg0, %c0_i32 : i32, i32
  }
  func.func @transform_3(%arg0: i32, %arg1: i32) -> (i32, i32) {
    %c0_i32 = arith.constant 0 : i32
    %c0_i32_0 = arith.constant 0 : i32
    return %c0_i32, %arg1 : i32, i32
  }
  func.func @transform_4(%arg0: i32, %arg1: i32) -> (i32, i32) {
    %c0_i32 = arith.constant 0 : i32
    %c0_i32_0 = arith.constant 0 : i32
    return %c0_i32, %arg1 : i32, i32
  }
  func.func @transform_5(%arg0: i32, %arg1: i32) -> (i32, i32, i32) {
    %c0_i32 = arith.constant 0 : i32
    %c0_i32_0 = arith.constant 0 : i32
    %c0_i32_1 = arith.constant 0 : i32
    return %arg0, %c0_i32, %c0_i32_0 : i32, i32, i32
  }
}

</mosaic_0001>

<llo_original>
// kernel: tpu_custom_call.1
$region0: #{tpu_custom_call.1}
  #allocation0 [shape = 'u32[]', space=smem, size = 0x4, offset = 0x4, fixed_abs, tag = 'smem constant byte address 0x4 - core index']
  #allocation1 [shape = 'u32[144,128]{1,0:T(1,128)}', space=vmem, size = 0x12000, scoped, tag = 'internal scratch']
  #allocation2 [shape = 'f32[128,128]{1,0:T(8,128)}', space=vmem, size = 0x10000, scoped, tag = 'scratch operand']
  #allocation3 [shape = 'f32[128,128]{1,0:T(8,128)}', space=vmem, size = 0x10000, scoped, tag = 'scratch operand']
  #allocation4 [shape = 'f32[128,128]{1,0:T(8,128)}', space=vmem, size = 0x10000, scoped, tag = 'scratch operand']
  #allocation5 [shape = 'f32[128,128]{1,0:T(8,128)}', space=vmem, size = 0x10000, scoped, tag = 'scratch operand']
  %s0 = inlined_call_operand.vmem [shape: f32[512,128], index: 0, kind: input, shape index: {}]
  %s1 = inlined_call_operand.hbm [shape: f32[128,512], index: 1, kind: input, shape index: {}]
  %s2 = inlined_call_operand.vmem [shape: s32[512,1], index: 2, kind: input, shape index: {}]
  %s3 = inlined_call_operand.vmem [shape: s32[1,512], index: 3, kind: input, shape index: {}]
  %s4 = inlined_call_operand.vmem [shape: f32[1,512], index: 4, kind: input, shape index: {}]
  %s5 = inlined_call_operand.hbm [shape: f32[4,8,128], index: 5, kind: output, shape index: {}]
  %s6 = sld [smem:[#allocation0]]
  $region65: #{tpu_custom_call.1} parent=0
    _
  %s8 = ssub.s32 1, %s6
  %s9 = scalar_select 0, %s8, %s6
  $region1: #{tpu_custom_call.1} parent=0
    #allocation6 [shape = 'u8[262144]{0}', space=vmem, size = 0x40000, scoped, tag = 'input window, operand 1, single buffered']
    #allocation7 [shape = 's32[2]{0}', space=sflag, size = 0x8, scoped, tag = 'scoped memory for tpu_custom_call.1']
    #allocation8 [shape = 's32[2]{0}', space=sflag, size = 0x8, scoped, tag = 'scoped memory for tpu_custom_call.1']
    #allocation9 [shape = 'u8[8192]{0}', space=vmem, size = 0x2000, scoped, tag = 'output window, operand 0']
    %10 = vsyncpa [#allocation7], 0
    %11 = vsyncpa [#allocation8], 0
    %s12 = scalar_lea.sflag [#allocation8], 1
    %13 = vsyncpa %s12, 0
    loop: start=0, step=1, limit=6
    $region2: #{tpu_custom_call.1} parent=1 // loop_pre_header
      _
    $region3: #{tpu_custom_call.1} parent=1 // loop_header
      %s15 = sphi 0, %s19
      %p16 = scmp.ge.s32.totalorder %s15, 6
      %s22 = sphi 0, %s34
      %s23 = sphi 0, %s30
      %s24 = sphi 0, %s22
      %s25 = sphi 0, %s23
      %s26 = sphi 0, %s24
      %s27 = sphi 0, %s25
      %s37 = sphi 0, %s39
      %s40 = sphi 0, %s37
      %s41 = sphi 0, %s40
      %s57 = sphi 0, %s41
      %s63 = sphi 0, %s65
      %s66 = sphi 0, %s63
      %s67 = sphi 0, %s66
      %s83 = sphi 0, %s67
      %s89 = sphi 0, %s91
      %s92 = sphi 0, %s89
      %s93 = sphi 0, %s92
      %s109 = sphi 0, %s93
      %s115 = sphi 0, %s117
      %s118 = sphi 0, %s115
      %s119 = sphi 0, %s118
      %s135 = sphi 0, %s119
      %s141 = sphi 0, %s143
      %s144 = sphi 0, %s141
      %s145 = sphi 0, %s144
      %s161 = sphi 0, %s145
      %s167 = sphi 0, %s169
      %s170 = sphi 0, %s167
      %s171 = sphi 0, %s170
      %s187 = sphi 0, %s171
    $region4: #{tpu_custom_call.1} parent=1 // loop_header_branch
      %18 = sbr.rel (%p16) target = $region8
    $region5: #{tpu_custom_call.1} parent=1 // loop_body
      %s20 = ssub.s32 %s15, 1
      %s21 = ssub.s32 %s15, 2
      %s28 = sadd.s32 1, %s23
      %p29 = scmp.ge.s32.totalorder %s28, 1
      %s30 = scalar_select %p29, 0, %s28
      %s31 = sadd.s32 1, %s22
      %s32 = scalar_select %p29, %s31, %s22
      %p33 = scmp.ge.s32.totalorder %s32, 4
      %s34 = scalar_select %p33, 0, %s32
      %s35 = ssub.s32 %s22, %s34
      %p36 = scmp.eq.s32.totalorder %s35, 0
      %s38 = sadd.s32 %s37, 1
      %s39 = scalar_select %p36, %s37, %s38
      %p42 = pneg %p36
      %p43 = scmp.eq.s32.totalorder %s15, 3
      %p44 = por %p42, %p43
      %p45 = scmp.ne.s32.totalorder %s37, %s40
      %p46 = scmp.eq.s32.totalorder %s15, 0
      %p47 = por %p45, %p46
      %p48 = scmp.ne.s32.totalorder %s37, %s40
      %p49 = scmp.eq.s32.totalorder %s20, 3
      %p50 = por %p48, %p49
      %p51 = scmp.ne.s32.totalorder %s40, %s41
      %p52 = scmp.eq.s32.totalorder %s20, 0
      %p53 = por %p51, %p52
      %p54 = scmp.ne.s32.totalorder %s40, %s41
      %p55 = scmp.eq.s32.totalorder %s21, 3
      %p56 = por %p54, %p55
      %p58 = scmp.ne.s32.totalorder %s41, %s57
      %p59 = scmp.eq.s32.totalorder %s21, 0
      %p60 = por %p58, %p59
      %s61 = ssub.s32 %s23, %s30
      %p62 = scmp.eq.s32.totalorder %s61, 0
      %s64 = sadd.s32 %s63, 1
      %s65 = scalar_select %p62, %s63, %s64
      %p68 = pneg %p62
      %p69 = scmp.eq.s32.totalorder %s15, 3
      %p70 = por %p68, %p69
      %p71 = scmp.ne.s32.totalorder %s63, %s66
      %p72 = scmp.eq.s32.totalorder %s15, 0
      %p73 = por %p71, %p72
      %p74 = scmp.ne.s32.totalorder %s63, %s66
      %p75 = scmp.eq.s32.totalorder %s20, 3
      %p76 = por %p74, %p75
      %p77 = scmp.ne.s32.totalorder %s66, %s67
      %p78 = scmp.eq.s32.totalorder %s20, 0
      %p79 = por %p77, %p78
      %p80 = scmp.ne.s32.totalorder %s66, %s67
      %p81 = scmp.eq.s32.totalorder %s21, 3
      %p82 = por %p80, %p81
      %p84 = scmp.ne.s32.totalorder %s67, %s83
      %p85 = scmp.eq.s32.totalorder %s21, 0
      %p86 = por %p84, %p85
      %s87 = ssub.s32 %s22, %s34
      %p88 = scmp.eq.s32.totalorder %s87, 0
      %s90 = sadd.s32 %s89, 1
      %s91 = scalar_select %p88, %s89, %s90
      %p94 = pneg %p88
      %p95 = scmp.eq.s32.totalorder %s15, 3
      %p96 = por %p94, %p95
      %p97 = scmp.ne.s32.totalorder %s89, %s92
      %p98 = scmp.eq.s32.totalorder %s15, 0
      %p99 = por %p97, %p98
      %p100 = scmp.ne.s32.totalorder %s89, %s92
      %p101 = scmp.eq.s32.totalorder %s20, 3
      %p102 = por %p100, %p101
      %p103 = scmp.ne.s32.totalorder %s92, %s93
      %p104 = scmp.eq.s32.totalorder %s20, 0
      %p105 = por %p103, %p104
      %p106 = scmp.ne.s32.totalorder %s92, %s93
      %p107 = scmp.eq.s32.totalorder %s21, 3
      %p108 = por %p106, %p107
      %p110 = scmp.ne.s32.totalorder %s93, %s109
      %p111 = scmp.eq.s32.totalorder %s21, 0
      %p112 = por %p110, %p111
      %s113 = ssub.s32 %s23, %s30
      %p114 = scmp.eq.s32.totalorder %s113, 0
      %s116 = sadd.s32 %s115, 1
      %s117 = scalar_select %p114, %s115, %s116
      %p120 = pneg %p114
      %p121 = scmp.eq.s32.totalorder %s15, 3
      %p122 = por %p120, %p121
      %p123 = scmp.ne.s32.totalorder %s115, %s118
      %p124 = scmp.eq.s32.totalorder %s15, 0
      %p125 = por %p123, %p124
      %p126 = scmp.ne.s32.totalorder %s115, %s118
      %p127 = scmp.eq.s32.totalorder %s20, 3
      %p128 = por %p126, %p127
      %p129 = scmp.ne.s32.totalorder %s118, %s119
      %p130 = scmp.eq.s32.totalorder %s20, 0
      %p131 = por %p129, %p130
      %p132 = scmp.ne.s32.totalorder %s118, %s119
      %p133 = scmp.eq.s32.totalorder %s21, 3
      %p134 = por %p132, %p133
      %p136 = scmp.ne.s32.totalorder %s119, %s135
      %p137 = scmp.eq.s32.totalorder %s21, 0
      %p138 = por %p136, %p137
      %s139 = ssub.s32 %s23, %s30
      %p140 = scmp.eq.s32.totalorder %s139, 0
      %s142 = sadd.s32 %s141, 1
      %s143 = scalar_select %p140, %s141, %s142
      %p146 = pneg %p140
      %p147 = scmp.eq.s32.totalorder %s15, 3
      %p148 = por %p146, %p147
      %p149 = scmp.ne.s32.totalorder %s141, %s144
      %p150 = scmp.eq.s32.totalorder %s15, 0
      %p151 = por %p149, %p150
      %p152 = scmp.ne.s32.totalorder %s141, %s144
      %p153 = scmp.eq.s32.totalorder %s20, 3
      %p154 = por %p152, %p153
      %p155 = scmp.ne.s32.totalorder %s144, %s145
      %p156 = scmp.eq.s32.totalorder %s20, 0
      %p157 = por %p155, %p156
      %p158 = scmp.ne.s32.totalorder %s144, %s145
      %p159 = scmp.eq.s32.totalorder %s21, 3
      %p160 = por %p158, %p159
      %p162 = scmp.ne.s32.totalorder %s145, %s161
      %p163 = scmp.eq.s32.totalorder %s21, 0
      %p164 = por %p162, %p163
      %s165 = ssub.s32 %s22, %s34
      %p166 = scmp.eq.s32.totalorder %s165, 0
      %s168 = sadd.s32 %s167, 1
      %s169 = scalar_select %p166, %s167, %s168
      %p172 = pneg %p166
      %p173 = scmp.eq.s32.totalorder %s15, 3
      %p174 = por %p172, %p173
      %p175 = scmp.ne.s32.totalorder %s167, %s170
      %p176 = scmp.eq.s32.totalorder %s15, 0
      %p177 = por %p175, %p176
      %p178 = scmp.ne.s32.totalorder %s167, %s170
      %p179 = scmp.eq.s32.totalorder %s20, 3
      %p180 = por %p178, %p179
      %p181 = scmp.ne.s32.totalorder %s170, %s171
      %p182 = scmp.eq.s32.totalorder %s20, 0
      %p183 = por %p181, %p182
      %p184 = scmp.ne.s32.totalorder %s170, %s171
      %p185 = scmp.eq.s32.totalorder %s21, 3
      %p186 = por %p184, %p185
      %p188 = scmp.ne.s32.totalorder %s171, %s187
      %p189 = scmp.eq.s32.totalorder %s21, 0
      %p190 = por %p188, %p189
      %p191 = scmp.le.s32.totalorder 1, %s15
      %p192 = scmp.lt.s32.totalorder %s15, 5
      %p193 = pnand %p191, %p192
      %p194 = pneg %p193
      // Predicated region
      $region9: #{tpu_custom_call.1} parent=5 // pred_check
        _
      $region10: #{tpu_custom_call.1} parent=5 // pred_check_branch
        %196 = sbr.rel (%p193) target = $region12
      $region11: #{tpu_custom_call.1} parent=5 // pred_region
        %s197 = ssub.s32 %s15, 1
        // Predicated region
        $region13: #{tpu_custom_call.1} parent=11 // pred_check
          %p198 = pneg %p79
        $region14: #{tpu_custom_call.1} parent=11 // pred_check_branch
          %200 = sbr.rel (%p198) target = $region16
        $region15: #{tpu_custom_call.1} parent=11 // pred_region
          %s201 = smul.u32 4, %s25
          %s203 = ssub.s32 8192, 8192
          %204 = vsyncadd [#allocation7], %s203
          %s205 = smul.addr %s201, 128
          %s206 = scalar_lea.hbm %s1, %s205
          %s207 = sshll.u32 [#allocation6], 4
          %s208 = int_to_ptr.vmem [resolvable:$true] %s207
          %213 = dma.hbm_to_vmem [thread:$0]  %s206, 8192, %s208, [#allocation7], 512, 512, 32
        $region16: #{tpu_custom_call.1} parent=11 // pred_fallthru
          _
        // Predicated region
        $region17: #{tpu_custom_call.1} parent=11 // pred_check
          %p214 = pneg %p131
        $region18: #{tpu_custom_call.1} parent=11 // pred_check_branch
          %216 = sbr.rel (%p214) target = $region20
        $region19: #{tpu_custom_call.1} parent=11 // pred_region
          %s217 = smul.u32 4, %s25
          %p218 = scmp.lt.s32.totalorder %s217, 3
          %s219 = scalar_select %p218, %s217, 3
          %s220 = scalar_lea.vmem %s3, %s219
          %s221 = smul.u32 4, %s25
        $region20: #{tpu_custom_call.1} parent=11 // pred_fallthru
          _
        // Predicated region
        $region21: #{tpu_custom_call.1} parent=11 // pred_check
          %p222 = pneg %p157
        $region22: #{tpu_custom_call.1} parent=11 // pred_check_branch
          %224 = sbr.rel (%p222) target = $region24
        $region23: #{tpu_custom_call.1} parent=11 // pred_region
          %s225 = smul.u32 4, %s25
          %p226 = scmp.lt.s32.totalorder %s225, 3
          %s227 = scalar_select %p226, %s225, 3
          %s228 = scalar_lea.vmem %s4, %s227
          %s229 = smul.u32 4, %s25
        $region24: #{tpu_custom_call.1} parent=11 // pred_fallthru
          _
      $region12: #{tpu_custom_call.1} parent=5 // pred_fallthru
        _
      %p230 = scmp.lt.s32.totalorder %s15, 4
      // Predicated region
      $region25: #{tpu_custom_call.1} parent=5 // pred_check
        %p231 = pneg %p230
      $region26: #{tpu_custom_call.1} parent=5 // pred_check_branch
        %233 = sbr.rel (%p231) target = $region28
      $region27: #{tpu_custom_call.1} parent=5 // pred_region
        // Predicated region
        $region29: #{tpu_custom_call.1} parent=27 // pred_check
          %p234 = pneg %p47
        $region30: #{tpu_custom_call.1} parent=27 // pred_check_branch
          %236 = sbr.rel (%p234) target = $region32
        $region31: #{tpu_custom_call.1} parent=27 // pred_region
          %s237 = smul.u32 16, %s22
          %p238 = scmp.lt.s32.totalorder %s237, 63
          %s239 = scalar_select %p238, %s237, 63
          %s240 = smul.addr %s239, 8
          %s241 = scalar_lea.vmem %s0, %s240
          %s242 = smul.u32 16, %s22
        $region32: #{tpu_custom_call.1} parent=27 // pred_fallthru
          _
        // Predicated region
        $region33: #{tpu_custom_call.1} parent=27 // pred_check
          %p243 = pneg %p99
        $region34: #{tpu_custom_call.1} parent=27 // pred_check_branch
          %245 = sbr.rel (%p243) target = $region36
        $region35: #{tpu_custom_call.1} parent=27 // pred_region
          %s246 = smul.u32 16, %s22
          %p247 = scmp.lt.s32.totalorder %s246, 63
          %s248 = scalar_select %p247, %s246, 63
          %s249 = smul.addr %s248, 8
          %s250 = scalar_lea.vmem %s2, %s249
          %s251 = smul.u32 16, %s22
        $region36: #{tpu_custom_call.1} parent=27 // pred_fallthru
          _
      $region28: #{tpu_custom_call.1} parent=5 // pred_fallthru
        _
      %p252 = scmp.le.s32.totalorder 1, %s15
      %p253 = scmp.lt.s32.totalorder %s15, 5
      %p254 = pnand %p252, %p253
      %p255 = pneg %p254
      // Predicated region
      $region37: #{tpu_custom_call.1} parent=5 // pred_check
        _
      $region38: #{tpu_custom_call.1} parent=5 // pred_check_branch
        %257 = sbr.rel (%p254) target = $region40
      $region39: #{tpu_custom_call.1} parent=5 // pred_region
        %s258 = ssub.s32 %s15, 1
        // Predicated region
        $region41: #{tpu_custom_call.1} parent=39 // pred_check
          %p259 = pneg %p79
        $region42: #{tpu_custom_call.1} parent=39 // pred_check_branch
          %261 = sbr.rel (%p259) target = $region44
        $region43: #{tpu_custom_call.1} parent=39 // pred_region
          %262 = dma.done [#allocation7], 8192
        $region44: #{tpu_custom_call.1} parent=39 // pred_fallthru
          _
        %s263 = smul.u32 16, %s24
        %p264 = scmp.lt.s32.totalorder %s263, 63
        %s265 = scalar_select %p264, %s263, 63
        %s266 = smul.addr %s265, 8
        %s267 = scalar_lea.vmem %s0, %s266
        %p268 = pneg %p53
        %p269 = pneg %p50
        %p270 = pneg %p79
        %p271 = pneg %p76
        %s272 = smul.u32 16, %s24
        %p273 = scmp.lt.s32.totalorder %s272, 63
        %s274 = scalar_select %p273, %s272, 63
        %s275 = smul.addr %s274, 8
        %s276 = scalar_lea.vmem %s2, %s275
        %p277 = pneg %p105
        %p278 = pneg %p102
        %s279 = smul.u32 4, %s25
        %p280 = scmp.lt.s32.totalorder %s279, 3
        %s281 = scalar_select %p280, %s279, 3
        %s282 = scalar_lea.vmem %s3, %s281
        %p283 = pneg %p131
        %p284 = pneg %p128
        %s285 = smul.u32 4, %s25
        %p286 = scmp.lt.s32.totalorder %s285, 3
        %s287 = scalar_select %p286, %s285, 3
        %s288 = scalar_lea.vmem %s4, %s287
        %p289 = pneg %p157
        %p290 = pneg %p154
        %p291 = pneg %p183
        %p292 = pneg %p180
        %s293 = sand.u32 %s170, 1
        %s294 = scalar_lea.sflag [#allocation8], %s293
        %s295 = sand.u32 %s170, 1
        %s296 = smul.addr %s295, 8
        %s297 = scalar_lea.vmem [#allocation9], %s296
        %s298 = smul.u32 16, %s24
        %p299 = scmp.lt.s32.totalorder %s298, 63
        %s300 = scalar_select %p299, %s298, 63
        %s301 = smul.addr %s300, 8
        %s302 = scalar_lea.vmem %s0, %s301
        %s303 = smul.u32 16, %s24
        %s304 = smul.u32 4, %s25
        %s305 = smul.u32 16, %s24
        %p306 = scmp.lt.s32.totalorder %s305, 63
        %s307 = scalar_select %p306, %s305, 63
        %s308 = smul.addr %s307, 8
        %s309 = scalar_lea.vmem %s2, %s308
        %s310 = smul.u32 16, %s24
        %s311 = smul.u32 4, %s25
        %p312 = scmp.lt.s32.totalorder %s311, 3
        %s313 = scalar_select %p312, %s311, 3
        %s314 = scalar_lea.vmem %s3, %s313
        %s315 = smul.u32 4, %s25
        %s316 = smul.u32 4, %s25
        %p317 = scmp.lt.s32.totalorder %s316, 3
        %s318 = scalar_select %p317, %s316, 3
        %s319 = scalar_lea.vmem %s4, %s318
        %s320 = smul.u32 4, %s25
        %p321 = scmp.eq.s32.totalorder %s25, 0
        // Predicated region
        $region45: #{tpu_custom_call.1} parent=39 // pred_check
          %p322 = pneg %p321
        $region46: #{tpu_custom_call.1} parent=39 // pred_check_branch
          %324 = sbr.rel (%p322) target = $region48
        $region47: #{tpu_custom_call.1} parent=39 // pred_region
          %325 = vst [vmem:[#allocation2] sm:$0xff] -1e+30
          %326 = vst [vmem:[#allocation2 + $0x8] sm:$0xff] -1e+30
          %327 = vst [vmem:[#allocation2 + $0x10] sm:$0xff] -1e+30
          %328 = vst [vmem:[#allocation2 + $0x18] sm:$0xff] -1e+30
          %329 = vst [vmem:[#allocation2 + $0x20] sm:$0xff] -1e+30
          %330 = vst [vmem:[#allocation2 + $0x28] sm:$0xff] -1e+30
          %331 = vst [vmem:[#allocation2 + $0x30] sm:$0xff] -1e+30
          %332 = vst [vmem:[#allocation2 + $0x38] sm:$0xff] -1e+30
          %333 = vst [vmem:[#allocation2 + $0x40] sm:$0xff] -1e+30
          %334 = vst [vmem:[#allocation2 + $0x48] sm:$0xff] -1e+30
          %335 = vst [vmem:[#allocation2 + $0x50] sm:$0xff] -1e+30
          %336 = vst [vmem:[#allocation2 + $0x58] sm:$0xff] -1e+30
          %337 = vst [vmem:[#allocation2 + $0x60] sm:$0xff] -1e+30
          %338 = vst [vmem:[#allocation2 + $0x68] sm:$0xff] -1e+30
          %339 = vst [vmem:[#allocation2 + $0x70] sm:$0xff] -1e+30
          %340 = vst [vmem:[#allocation2 + $0x78] sm:$0xff] -1e+30
          %341 = vst [vmem:[#allocation3] sm:$0xff] 0.0
          %342 = vst [vmem:[#allocation3 + $0x8] sm:$0xff] 0.0
          %343 = vst [vmem:[#allocation3 + $0x10] sm:$0xff] 0.0
          %344 = vst [vmem:[#allocation3 + $0x18] sm:$0xff] 0.0
          %345 = vst [vmem:[#allocation3 + $0x20] sm:$0xff] 0.0
          %346 = vst [vmem:[#allocation3 + $0x28] sm:$0xff] 0.0
          %347 = vst [vmem:[#allocation3 + $0x30] sm:$0xff] 0.0
          %348 = vst [vmem:[#allocation3 + $0x38] sm:$0xff] 0.0
          %349 = vst [vmem:[#allocation3 + $0x40] sm:$0xff] 0.0
          %350 = vst [vmem:[#allocation3 + $0x48] sm:$0xff] 0.0
          %351 = vst [vmem:[#allocation3 + $0x50] sm:$0xff] 0.0
          %352 = vst [vmem:[#allocation3 + $0x58] sm:$0xff] 0.0
          %353 = vst [vmem:[#allocation3 + $0x60] sm:$0xff] 0.0
          %354 = vst [vmem:[#allocation3 + $0x68] sm:$0xff] 0.0
          %355 = vst [vmem:[#allocation3 + $0x70] sm:$0xff] 0.0
          %356 = vst [vmem:[#allocation3 + $0x78] sm:$0xff] 0.0
          %357 = vst [vmem:[#allocation4] sm:$0xff] 0.0
          %358 = vst [vmem:[#allocation4 + $0x8] sm:$0xff] 0.0
          %359 = vst [vmem:[#allocation4 + $0x10] sm:$0xff] 0.0
          %360 = vst [vmem:[#allocation4 + $0x18] sm:$0xff] 0.0
          %361 = vst [vmem:[#allocation4 + $0x20] sm:$0xff] 0.0
          %362 = vst [vmem:[#allocation4 + $0x28] sm:$0xff] 0.0
          %363 = vst [vmem:[#allocation4 + $0x30] sm:$0xff] 0.0
          %364 = vst [vmem:[#allocation4 + $0x38] sm:$0xff] 0.0
          %365 = vst [vmem:[#allocation4 + $0x40] sm:$0xff] 0.0
          %366 = vst [vmem:[#allocation4 + $0x48] sm:$0xff] 0.0
          %367 = vst [vmem:[#allocation4 + $0x50] sm:$0xff] 0.0
          %368 = vst [vmem:[#allocation4 + $0x58] sm:$0xff] 0.0
          %369 = vst [vmem:[#allocation4 + $0x60] sm:$0xff] 0.0
          %370 = vst [vmem:[#allocation4 + $0x68] sm:$0xff] 0.0
          %371 = vst [vmem:[#allocation4 + $0x70] sm:$0xff] 0.0
          %372 = vst [vmem:[#allocation4 + $0x78] sm:$0xff] 0.0
          %373 = vst [vmem:[#allocation5] sm:$0xff] 0.0
          %374 = vst [vmem:[#allocation5 + $0x8] sm:$0xff] 0.0
          %375 = vst [vmem:[#allocation5 + $0x10] sm:$0xff] 0.0
          %376 = vst [vmem:[#allocation5 + $0x18] sm:$0xff] 0.0
          %377 = vst [vmem:[#allocation5 + $0x20] sm:$0xff] 0.0
          %378 = vst [vmem:[#allocation5 + $0x28] sm:$0xff] 0.0
          %379 = vst [vmem:[#allocation5 + $0x30] sm:$0xff] 0.0
          %380 = vst [vmem:[#allocation5 + $0x38] sm:$0xff] 0.0
          %381 = vst [vmem:[#allocation5 + $0x40] sm:$0xff] 0.0
          %382 = vst [vmem:[#allocation5 + $0x48] sm:$0xff] 0.0
          %383 = vst [vmem:[#allocation5 + $0x50] sm:$0xff] 0.0
          %384 = vst [vmem:[#allocation5 + $0x58] sm:$0xff] 0.0
          %385 = vst [vmem:[#allocation5 + $0x60] sm:$0xff] 0.0
          %386 = vst [vmem:[#allocation5 + $0x68] sm:$0xff] 0.0
          %387 = vst [vmem:[#allocation5 + $0x70] sm:$0xff] 0.0
          %388 = vst [vmem:[#allocation5 + $0x78] sm:$0xff] 0.0
        $region48: #{tpu_custom_call.1} parent=39 // pred_fallthru
          _
        %v389 = vld [vmem:[%s309] sm:$0xff]
        %v390 = vld [vmem:[%s309 + $0x8] sm:$0xff]
        %v391 = vld [vmem:[%s309 + $0x10] sm:$0xff]
        %v392 = vld [vmem:[%s309 + $0x18] sm:$0xff]
        %v393 = vld [vmem:[%s309 + $0x20] sm:$0xff]
        %v394 = vld [vmem:[%s309 + $0x28] sm:$0xff]
        %v395 = vld [vmem:[%s309 + $0x30] sm:$0xff]
        %v396 = vld [vmem:[%s309 + $0x38] sm:$0xff]
        %v397 = vld [vmem:[%s309 + $0x40] sm:$0xff]
        %v398 = vld [vmem:[%s309 + $0x48] sm:$0xff]
        %v399 = vld [vmem:[%s309 + $0x50] sm:$0xff]
        %v400 = vld [vmem:[%s309 + $0x58] sm:$0xff]
        %v401 = vld [vmem:[%s309 + $0x60] sm:$0xff]
        %v402 = vld [vmem:[%s309 + $0x68] sm:$0xff]
        %v403 = vld [vmem:[%s309 + $0x70] sm:$0xff]
        %v404 = vld [vmem:[%s309 + $0x78] sm:$0xff]
        %v405 = vld [vmem:[%s302] sm:$0xff]
        %v406 = vld [vmem:[%s302 + $0x8] sm:$0xff]
        %v407 = vld [vmem:[%s302 + $0x10] sm:$0xff]
        %v408 = vld [vmem:[%s302 + $0x18] sm:$0xff]
        %v409 = vld [vmem:[%s302 + $0x20] sm:$0xff]
        %v410 = vld [vmem:[%s302 + $0x28] sm:$0xff]
        %v411 = vld [vmem:[%s302 + $0x30] sm:$0xff]
        %v412 = vld [vmem:[%s302 + $0x38] sm:$0xff]
        %v413 = vld [vmem:[%s302 + $0x40] sm:$0xff]
        %v414 = vld [vmem:[%s302 + $0x48] sm:$0xff]
        %v415 = vld [vmem:[%s302 + $0x50] sm:$0xff]
        %v416 = vld [vmem:[%s302 + $0x58] sm:$0xff]
        %v417 = vld [vmem:[%s302 + $0x60] sm:$0xff]
        %v418 = vld [vmem:[%s302 + $0x68] sm:$0xff]
        %v419 = vld [vmem:[%s302 + $0x70] sm:$0xff]
        %v420 = vld [vmem:[%s302 + $0x78] sm:$0xff]
        %v421 = vld [vmem:[#allocation6] sm:$0xff]
        %v422 = vld [vmem:[#allocation6 + $0x20] sm:$0xff]
        %v423 = vld [vmem:[#allocation6 + $0x40] sm:$0xff]
        %v424 = vld [vmem:[#allocation6 + $0x60] sm:$0xff]
        %v425 = vld [vmem:[#allocation6 + $0x80] sm:$0xff]
        %v426 = vld [vmem:[#allocation6 + $0xa0] sm:$0xff]
        %v427 = vld [vmem:[#allocation6 + $0xc0] sm:$0xff]
        %v428 = vld [vmem:[#allocation6 + $0xe0] sm:$0xff]
        %v429 = vld [vmem:[#allocation6 + $0x100] sm:$0xff]
        %v430 = vld [vmem:[#allocation6 + $0x120] sm:$0xff]
        %v431 = vld [vmem:[#allocation6 + $0x140] sm:$0xff]
        %v432 = vld [vmem:[#allocation6 + $0x160] sm:$0xff]
        %v433 = vld [vmem:[#allocation6 + $0x180] sm:$0xff]
        %v434 = vld [vmem:[#allocation6 + $0x1a0] sm:$0xff]
        %v435 = vld [vmem:[#allocation6 + $0x1c0] sm:$0xff]
        %v436 = vld [vmem:[#allocation6 + $0x1e0] sm:$0xff]
        %v437 = vld [vmem:[%s319] sm:$0x1]
        %v439 = vlaneseq
        %v440 = vshrl.u32 %v439, 7
        %v441 = vsub.s32 0, %v440
        %v442 = vrot.slane %v437, %v441
        %444 = vmatprep.subr.mxu0 0.0
        %445 = vmatpush1.msra.mxu0 %v436
        %446 = vmatprep.subr.mxu0 0.0
        %447 = vmatpush1.msra.mxu0 %v435
        %448 = vmatprep.subr.mxu0 0.0
        %449 = vmatpush1.msra.mxu0 %v434
        %450 = vmatprep.subr.mxu0 0.0
        %451 = vmatpush1.msra.mxu0 %v433
        %452 = vmatprep.subr.mxu0 0.0
        %453 = vmatpush1.msra.mxu0 %v432
        %454 = vmatprep.subr.mxu0 0.0
        %455 = vmatpush1.msra.mxu0 %v431
        %456 = vmatprep.subr.mxu0 0.0
        %457 = vmatpush1.msra.mxu0 %v430
        %458 = vmatprep.subr.mxu0 0.0
        %459 = vmatpush1.msra.mxu0 %v429
        %460 = vmatprep.subr.mxu0 0.0
        %461 = vmatpush1.msra.mxu0 %v428
        %462 = vmatprep.subr.mxu0 0.0
        %463 = vmatpush1.msra.mxu0 %v427
        %464 = vmatprep.subr.mxu0 0.0
        %465 = vmatpush1.msra.mxu0 %v426
        %466 = vmatprep.subr.mxu0 0.0
        %467 = vmatpush1.msra.mxu0 %v425
        %468 = vmatprep.subr.mxu0 0.0
        %469 = vmatpush1.msra.mxu0 %v424
        %470 = vmatprep.subr.mxu0 0.0
        %471 = vmatpush1.msra.mxu0 %v423
        %472 = vmatprep.subr.mxu0 0.0
        %473 = vmatpush1.msra.mxu0 %v422
        %474 = vmatprep.subr.mxu0 0.0
        %475 = vmatpush1.msra.mxu0 %v421
        %476 = vmatprep.subr.mxu0 0.0
        %477 = vmatpush2.msra.mxu0 0.0
        %478 = vmatprep.subr.mxu0 0.0
        %479 = vmatpush2.msra.mxu0 0.0
        %480 = vmatprep.subr.mxu0 0.0
        %481 = vmatpush2.msra.mxu0 0.0
        %482 = vmatprep.subr.mxu0 0.0
        %483 = vmatpush2.msra.mxu0 0.0
        %484 = vmatprep.subr.mxu0 0.0
        %485 = vmatpush2.msra.mxu0 0.0
        %486 = vmatprep.subr.mxu0 0.0
        %487 = vmatpush2.msra.mxu0 0.0
        %488 = vmatprep.subr.mxu0 0.0
        %489 = vmatpush2.msra.mxu0 0.0
        %490 = vmatprep.subr.mxu0 0.0
        %491 = vmatpush2.msra.mxu0 0.0
        %492 = vmatprep.subr.mxu0 0.0
        %493 = vmatpush2.msra.mxu0 0.0
        %494 = vmatprep.subr.mxu0 0.0
        %495 = vmatpush2.msra.mxu0 0.0
        %496 = vmatprep.subr.mxu0 0.0
        %497 = vmatpush2.msra.mxu0 0.0
        %498 = vmatprep.subr.mxu0 0.0
        %499 = vmatpush2.msra.mxu0 0.0
        %500 = vmatprep.subr.mxu0 0.0
        %501 = vmatpush2.msra.mxu0 0.0
        %502 = vmatprep.subr.mxu0 0.0
        %503 = vmatpush2.msra.mxu0 0.0
        %504 = vmatprep.subr.mxu0 0.0
        %505 = vmatpush2.msra.mxu0 0.0
        %506 = vmatprep.subr.mxu0 0.0
        %507 = vmatpush2.msra.mxu0 0.0
        %508 = vmatprep.mubr.f32.mxu0 0.0
        %509 = vmatmul.mubr.f32.gmra.mxu0 %v405
        %v510 = vpop.f32.mrf.mxu0
        %v511 = vadd.f32 %v442, %v510
        %v512 = vpop.f32.mrf.mxu0
        %513 = vmatprep.mubr.f32.mxu0 0.0
        %514 = vmatmul.mubr.f32.gmra.mxu0 %v406
        %v515 = vpop.f32.mrf.mxu0
        %v516 = vadd.f32 %v442, %v515
        %v517 = vpop.f32.mrf.mxu0
        %518 = vmatprep.mubr.f32.mxu0 0.0
        %519 = vmatmul.mubr.f32.gmra.mxu0 %v407
        %v520 = vpop.f32.mrf.mxu0
        %v521 = vadd.f32 %v442, %v520
        %v522 = vpop.f32.mrf.mxu0
        %523 = vmatprep.mubr.f32.mxu0 0.0
        %524 = vmatmul.mubr.f32.gmra.mxu0 %v408
        %v525 = vpop.f32.mrf.mxu0
        %v526 = vadd.f32 %v442, %v525
        %v527 = vpop.f32.mrf.mxu0
        %528 = vmatprep.mubr.f32.mxu0 0.0
        %529 = vmatmul.mubr.f32.gmra.mxu0 %v409
        %v530 = vpop.f32.mrf.mxu0
        %v531 = vadd.f32 %v442, %v530
        %v532 = vpop.f32.mrf.mxu0
        %533 = vmatprep.mubr.f32.mxu0 0.0
        %534 = vmatmul.mubr.f32.gmra.mxu0 %v410
        %v535 = vpop.f32.mrf.mxu0
        %v536 = vadd.f32 %v442, %v535
        %v537 = vpop.f32.mrf.mxu0
        %538 = vmatprep.mubr.f32.mxu0 0.0
        %539 = vmatmul.mubr.f32.gmra.mxu0 %v411
        %v540 = vpop.f32.mrf.mxu0
        %v541 = vadd.f32 %v442, %v540
        %v542 = vpop.f32.mrf.mxu0
        %543 = vmatprep.mubr.f32.mxu0 0.0
        %544 = vmatmul.mubr.f32.gmra.mxu0 %v412
        %v545 = vpop.f32.mrf.mxu0
        %v546 = vadd.f32 %v442, %v545
        %v547 = vpop.f32.mrf.mxu0
        %548 = vmatprep.mubr.f32.mxu0 0.0
        %549 = vmatmul.mubr.f32.gmra.mxu0 %v413
        %v550 = vpop.f32.mrf.mxu0
        %v551 = vadd.f32 %v442, %v550
        %v552 = vpop.f32.mrf.mxu0
        %553 = vmatprep.mubr.f32.mxu0 0.0
        %554 = vmatmul.mubr.f32.gmra.mxu0 %v414
        %v555 = vpop.f32.mrf.mxu0
        %v556 = vadd.f32 %v442, %v555
        %v557 = vpop.f32.mrf.mxu0
        %558 = vmatprep.mubr.f32.mxu0 0.0
        %559 = vmatmul.mubr.f32.gmra.mxu0 %v415
        %v560 = vpop.f32.mrf.mxu0
        %v561 = vadd.f32 %v442, %v560
        %v562 = vpop.f32.mrf.mxu0
        %563 = vmatprep.mubr.f32.mxu0 0.0
        %564 = vmatmul.mubr.f32.gmra.mxu0 %v416
        %v565 = vpop.f32.mrf.mxu0
        %v566 = vadd.f32 %v442, %v565
        %v567 = vpop.f32.mrf.mxu0
        %568 = vmatprep.mubr.f32.mxu0 0.0
        %569 = vmatmul.mubr.f32.gmra.mxu0 %v417
        %v570 = vpop.f32.mrf.mxu0
        %v571 = vadd.f32 %v442, %v570
        %v572 = vpop.f32.mrf.mxu0
        %573 = vmatprep.mubr.f32.mxu0 0.0
        %574 = vmatmul.mubr.f32.gmra.mxu0 %v418
        %v575 = vpop.f32.mrf.mxu0
        %v576 = vadd.f32 %v442, %v575
        %v577 = vpop.f32.mrf.mxu0
        %578 = vmatprep.mubr.f32.mxu0 0.0
        %579 = vmatmul.mubr.f32.gmra.mxu0 %v419
        %v580 = vpop.f32.mrf.mxu0
        %v581 = vadd.f32 %v442, %v580
        %v582 = vpop.f32.mrf.mxu0
        %583 = vmatprep.mubr.f32.mxu0 0.0
        %584 = vmatmul.mubr.f32.gmra.mxu0 %v420
        %v585 = vpop.f32.mrf.mxu0
        %v586 = vadd.f32 %v442, %v585
        %v587 = vpop.f32.mrf.mxu0
        %588 = vdwg.mxu0
        %v589 = vld [vmem:[%s314] sm:$0x1]
        %590 = vset.pattern.permute.xlu0 0
        %591 = vperm.xlu0 %590, %v389
        %v592 = vpop.permute.xlu0 %591
        %593 = vset.pattern.permute.xlu0 0
        %594 = vperm.xlu0 %593, %v390
        %v595 = vpop.permute.xlu0 %594
        %596 = vset.pattern.permute.xlu0 0
        %597 = vperm.xlu0 %596, %v391
        %v598 = vpop.permute.xlu0 %597
        %599 = vset.pattern.permute.xlu0 0
        %600 = vperm.xlu0 %599, %v392
        %v601 = vpop.permute.xlu0 %600
        %602 = vset.pattern.permute.xlu0 0
        %603 = vperm.xlu0 %602, %v393
        %v604 = vpop.permute.xlu0 %603
        %605 = vset.pattern.permute.xlu0 0
        %606 = vperm.xlu0 %605, %v394
        %v607 = vpop.permute.xlu0 %606
        %608 = vset.pattern.permute.xlu0 0
        %609 = vperm.xlu0 %608, %v395
        %v610 = vpop.permute.xlu0 %609
        %611 = vset.pattern.permute.xlu0 0
        %612 = vperm.xlu0 %611, %v396
        %v613 = vpop.permute.xlu0 %612
        %614 = vset.pattern.permute.xlu0 0
        %615 = vperm.xlu0 %614, %v397
        %v616 = vpop.permute.xlu0 %615
        %617 = vset.pattern.permute.xlu0 0
        %618 = vperm.xlu0 %617, %v398
        %v619 = vpop.permute.xlu0 %618
        %620 = vset.pattern.permute.xlu0 0
        %621 = vperm.xlu0 %620, %v399
        %v622 = vpop.permute.xlu0 %621
        %623 = vset.pattern.permute.xlu0 0
        %624 = vperm.xlu0 %623, %v400
        %v625 = vpop.permute.xlu0 %624
        %626 = vset.pattern.permute.xlu0 0
        %627 = vperm.xlu0 %626, %v401
        %v628 = vpop.permute.xlu0 %627
        %629 = vset.pattern.permute.xlu0 0
        %630 = vperm.xlu0 %629, %v402
        %v631 = vpop.permute.xlu0 %630
        %632 = vset.pattern.permute.xlu0 0
        %633 = vperm.xlu0 %632, %v403
        %v634 = vpop.permute.xlu0 %633
        %635 = vset.pattern.permute.xlu0 0
        %636 = vperm.xlu0 %635, %v404
        %v637 = vpop.permute.xlu0 %636
        %v638 = vlaneseq
        %v639 = vshrl.u32 %v638, 7
        %v640 = vsub.s32 0, %v639
        %v641 = vrot.slane %v589, %v640
        %vm642 = vcmp.eq.s32.totalorder %v592, %v641
        %vm643 = vcmp.eq.s32.totalorder %v595, %v641
        %vm644 = vcmp.eq.s32.totalorder %v598, %v641
        %vm645 = vcmp.eq.s32.totalorder %v601, %v641
        %vm646 = vcmp.eq.s32.totalorder %v604, %v641
        %vm647 = vcmp.eq.s32.totalorder %v607, %v641
        %vm648 = vcmp.eq.s32.totalorder %v610, %v641
        %vm649 = vcmp.eq.s32.totalorder %v613, %v641
        %vm650 = vcmp.eq.s32.totalorder %v616, %v641
        %vm651 = vcmp.eq.s32.totalorder %v619, %v641
        %vm652 = vcmp.eq.s32.totalorder %v622, %v641
        %vm653 = vcmp.eq.s32.totalorder %v625, %v641
        %vm654 = vcmp.eq.s32.totalorder %v628, %v641
        %vm655 = vcmp.eq.s32.totalorder %v631, %v641
        %vm656 = vcmp.eq.s32.totalorder %v634, %v641
        %vm657 = vcmp.eq.s32.totalorder %v637, %v641
        %v658 = vld [vmem:[#allocation2] sm:$0xff]
        %v659 = vld [vmem:[#allocation2 + $0x8] sm:$0xff]
        %v660 = vld [vmem:[#allocation2 + $0x10] sm:$0xff]
        %v661 = vld [vmem:[#allocation2 + $0x18] sm:$0xff]
        %v662 = vld [vmem:[#allocation2 + $0x20] sm:$0xff]
        %v663 = vld [vmem:[#allocation2 + $0x28] sm:$0xff]
        %v664 = vld [vmem:[#allocation2 + $0x30] sm:$0xff]
        %v665 = vld [vmem:[#allocation2 + $0x38] sm:$0xff]
        %v666 = vld [vmem:[#allocation2 + $0x40] sm:$0xff]
        %v667 = vld [vmem:[#allocation2 + $0x48] sm:$0xff]
        %v668 = vld [vmem:[#allocation2 + $0x50] sm:$0xff]
        %v669 = vld [vmem:[#allocation2 + $0x58] sm:$0xff]
        %v670 = vld [vmem:[#allocation2 + $0x60] sm:$0xff]
        %v671 = vld [vmem:[#allocation2 + $0x68] sm:$0xff]
        %v672 = vld [vmem:[#allocation2 + $0x70] sm:$0xff]
        %v673 = vld [vmem:[#allocation2 + $0x78] sm:$0xff]
        %v674 = vmax.f32 %v658, %v511
        %v675 = vmax.f32 %v659, %v516
        %v676 = vmax.f32 %v660, %v521
        %v677 = vmax.f32 %v661, %v526
        %v678 = vmax.f32 %v662, %v531
        %v679 = vmax.f32 %v663, %v536
        %v680 = vmax.f32 %v664, %v541
        %v681 = vmax.f32 %v665, %v546
        %v682 = vmax.f32 %v666, %v551
        %v683 = vmax.f32 %v667, %v556
        %v684 = vmax.f32 %v668, %v561
        %v685 = vmax.f32 %v669, %v566
        %v686 = vmax.f32 %v670, %v571
        %v687 = vmax.f32 %v671, %v576
        %v688 = vmax.f32 %v672, %v581
        %v689 = vmax.f32 %v673, %v586
        %v690 = vld [vmem:[#allocation3] sm:$0xff]
        %v691 = vld [vmem:[#allocation3 + $0x8] sm:$0xff]
        %v692 = vld [vmem:[#allocation3 + $0x10] sm:$0xff]
        %v693 = vld [vmem:[#allocation3 + $0x18] sm:$0xff]
        %v694 = vld [vmem:[#allocation3 + $0x20] sm:$0xff]
        %v695 = vld [vmem:[#allocation3 + $0x28] sm:$0xff]
        %v696 = vld [vmem:[#allocation3 + $0x30] sm:$0xff]
        %v697 = vld [vmem:[#allocation3 + $0x38] sm:$0xff]
        %v698 = vld [vmem:[#allocation3 + $0x40] sm:$0xff]
        %v699 = vld [vmem:[#allocation3 + $0x48] sm:$0xff]
        %v700 = vld [vmem:[#allocation3 + $0x50] sm:$0xff]
        %v701 = vld [vmem:[#allocation3 + $0x58] sm:$0xff]
        %v702 = vld [vmem:[#allocation3 + $0x60] sm:$0xff]
        %v703 = vld [vmem:[#allocation3 + $0x68] sm:$0xff]
        %v704 = vld [vmem:[#allocation3 + $0x70] sm:$0xff]
        %v705 = vld [vmem:[#allocation3 + $0x78] sm:$0xff]
        %v706 = vsub.f32 %v658, %v674
        %v707 = vsub.f32 %v659, %v675
        %v708 = vsub.f32 %v660, %v676
        %v709 = vsub.f32 %v661, %v677
        %v710 = vsub.f32 %v662, %v678
        %v711 = vsub.f32 %v663, %v679
        %v712 = vsub.f32 %v664, %v680
        %v713 = vsub.f32 %v665, %v681
        %v714 = vsub.f32 %v666, %v682
        %v715 = vsub.f32 %v667, %v683
        %v716 = vsub.f32 %v668, %v684
        %v717 = vsub.f32 %v669, %v685
        %v718 = vsub.f32 %v670, %v686
        %v719 = vsub.f32 %v671, %v687
        %v720 = vsub.f32 %v672, %v688
        %v721 = vsub.f32 %v673, %v689
        %v722 = vmul.f32 %v706, 1.442695
        %v723 = vpow.pop %v722
        %v724 = vmul.f32 %v707, 1.442695
        %v725 = vpow.pop %v724
        %v726 = vmul.f32 %v708, 1.442695
        %v727 = vpow.pop %v726
        %v728 = vmul.f32 %v709, 1.442695
        %v729 = vpow.pop %v728
        %v730 = vmul.f32 %v710, 1.442695
        %v731 = vpow.pop %v730
        %v732 = vmul.f32 %v711, 1.442695
        %v733 = vpow.pop %v732
        %v734 = vmul.f32 %v712, 1.442695
        %v735 = vpow.pop %v734
        %v736 = vmul.f32 %v713, 1.442695
        %v737 = vpow.pop %v736
        %v738 = vmul.f32 %v714, 1.442695
        %v739 = vpow.pop %v738
        %v740 = vmul.f32 %v715, 1.442695
        %v741 = vpow.pop %v740
        %v742 = vmul.f32 %v716, 1.442695
        %v743 = vpow.pop %v742
        %v744 = vmul.f32 %v717, 1.442695
        %v745 = vpow.pop %v744
        %v746 = vmul.f32 %v718, 1.442695
        %v747 = vpow.pop %v746
        %v748 = vmul.f32 %v719, 1.442695
        %v749 = vpow.pop %v748
        %v750 = vmul.f32 %v720, 1.442695
        %v751 = vpow.pop %v750
        %v752 = vmul.f32 %v721, 1.442695
        %v753 = vpow.pop %v752
        %v754 = vmul.f32 %v690, %v723
        %v755 = vmul.f32 %v691, %v725
        %v756 = vmul.f32 %v692, %v727
        %v757 = vmul.f32 %v693, %v729
        %v758 = vmul.f32 %v694, %v731
        %v759 = vmul.f32 %v695, %v733
        %v760 = vmul.f32 %v696, %v735
        %v761 = vmul.f32 %v697, %v737
        %v762 = vmul.f32 %v698, %v739
        %v763 = vmul.f32 %v699, %v741
        %v764 = vmul.f32 %v700, %v743
        %v765 = vmul.f32 %v701, %v745
        %v766 = vmul.f32 %v702, %v747
        %v767 = vmul.f32 %v703, %v749
        %v768 = vmul.f32 %v704, %v751
        %v769 = vmul.f32 %v705, %v753
        %v770 = vsub.f32 %v511, %v674
        %v771 = vsub.f32 %v516, %v675
        %v772 = vsub.f32 %v521, %v676
        %v773 = vsub.f32 %v526, %v677
        %v774 = vsub.f32 %v531, %v678
        %v775 = vsub.f32 %v536, %v679
        %v776 = vsub.f32 %v541, %v680
        %v777 = vsub.f32 %v546, %v681
        %v778 = vsub.f32 %v551, %v682
        %v779 = vsub.f32 %v556, %v683
        %v780 = vsub.f32 %v561, %v684
        %v781 = vsub.f32 %v566, %v685
        %v782 = vsub.f32 %v571, %v686
        %v783 = vsub.f32 %v576, %v687
        %v784 = vsub.f32 %v581, %v688
        %v785 = vsub.f32 %v586, %v689
        %v786 = vmul.f32 %v770, 1.442695
        %v787 = vpow.pop %v786
        %v788 = vmul.f32 %v771, 1.442695
        %v789 = vpow.pop %v788
        %v790 = vmul.f32 %v772, 1.442695
        %v791 = vpow.pop %v790
        %v792 = vmul.f32 %v773, 1.442695
        %v793 = vpow.pop %v792
        %v794 = vmul.f32 %v774, 1.442695
        %v795 = vpow.pop %v794
        %v796 = vmul.f32 %v775, 1.442695
        %v797 = vpow.pop %v796
        %v798 = vmul.f32 %v776, 1.442695
        %v799 = vpow.pop %v798
        %v800 = vmul.f32 %v777, 1.442695
        %v801 = vpow.pop %v800
        %v802 = vmul.f32 %v778, 1.442695
        %v803 = vpow.pop %v802
        %v804 = vmul.f32 %v779, 1.442695
        %v805 = vpow.pop %v804
        %v806 = vmul.f32 %v780, 1.442695
        %v807 = vpow.pop %v806
        %v808 = vmul.f32 %v781, 1.442695
        %v809 = vpow.pop %v808
        %v810 = vmul.f32 %v782, 1.442695
        %v811 = vpow.pop %v810
        %v812 = vmul.f32 %v783, 1.442695
        %v813 = vpow.pop %v812
        %v814 = vmul.f32 %v784, 1.442695
        %v815 = vpow.pop %v814
        %v816 = vmul.f32 %v785, 1.442695
        %v817 = vpow.pop %v816
        %v818 = vadd.f32 %v754, %v787
        %v819 = vadd.f32 %v755, %v789
        %v820 = vadd.f32 %v756, %v791
        %v821 = vadd.f32 %v757, %v793
        %v822 = vadd.f32 %v758, %v795
        %v823 = vadd.f32 %v759, %v797
        %v824 = vadd.f32 %v760, %v799
        %v825 = vadd.f32 %v761, %v801
        %v826 = vadd.f32 %v762, %v803
        %v827 = vadd.f32 %v763, %v805
        %v828 = vadd.f32 %v764, %v807
        %v829 = vadd.f32 %v765, %v809
        %v830 = vadd.f32 %v766, %v811
        %v831 = vadd.f32 %v767, %v813
        %v832 = vadd.f32 %v768, %v815
        %v833 = vadd.f32 %v769, %v817
        %834 = vst [vmem:[#allocation3] sm:$0xff] %v818
        %835 = vst [vmem:[#allocation3 + $0x8] sm:$0xff] %v819
        %836 = vst [vmem:[#allocation3 + $0x10] sm:$0xff] %v820
        %837 = vst [vmem:[#allocation3 + $0x18] sm:$0xff] %v821
        %838 = vst [vmem:[#allocation3 + $0x20] sm:$0xff] %v822
        %839 = vst [vmem:[#allocation3 + $0x28] sm:$0xff] %v823
        %840 = vst [vmem:[#allocation3 + $0x30] sm:$0xff] %v824
        %841 = vst [vmem:[#allocation3 + $0x38] sm:$0xff] %v825
        %842 = vst [vmem:[#allocation3 + $0x40] sm:$0xff] %v826
        %843 = vst [vmem:[#allocation3 + $0x48] sm:$0xff] %v827
        %844 = vst [vmem:[#allocation3 + $0x50] sm:$0xff] %v828
        %845 = vst [vmem:[#allocation3 + $0x58] sm:$0xff] %v829
        %846 = vst [vmem:[#allocation3 + $0x60] sm:$0xff] %v830
        %847 = vst [vmem:[#allocation3 + $0x68] sm:$0xff] %v831
        %848 = vst [vmem:[#allocation3 + $0x70] sm:$0xff] %v832
        %849 = vst [vmem:[#allocation3 + $0x78] sm:$0xff] %v833
        %850 = vst [vmem:[#allocation2] sm:$0xff] %v674
        %851 = vst [vmem:[#allocation2 + $0x8] sm:$0xff] %v675
        %852 = vst [vmem:[#allocation2 + $0x10] sm:$0xff] %v676
        %853 = vst [vmem:[#allocation2 + $0x18] sm:$0xff] %v677
        %854 = vst [vmem:[#allocation2 + $0x20] sm:$0xff] %v678
        %855 = vst [vmem:[#allocation2 + $0x28] sm:$0xff] %v679
        %856 = vst [vmem:[#allocation2 + $0x30] sm:$0xff] %v680
        %857 = vst [vmem:[#allocation2 + $0x38] sm:$0xff] %v681
        %858 = vst [vmem:[#allocation2 + $0x40] sm:$0xff] %v682
        %859 = vst [vmem:[#allocation2 + $0x48] sm:$0xff] %v683
        %860 = vst [vmem:[#allocation2 + $0x50] sm:$0xff] %v684
        %861 = vst [vmem:[#allocation2 + $0x58] sm:$0xff] %v685
        %862 = vst [vmem:[#allocation2 + $0x60] sm:$0xff] %v686
        %863 = vst [vmem:[#allocation2 + $0x68] sm:$0xff] %v687
        %864 = vst [vmem:[#allocation2 + $0x70] sm:$0xff] %v688
        %865 = vst [vmem:[#allocation2 + $0x78] sm:$0xff] %v689
        %v866 = vld [vmem:[#allocation4] sm:$0xff]
        %v867 = vld [vmem:[#allocation4 + $0x8] sm:$0xff]
        %v868 = vld [vmem:[#allocation4 + $0x10] sm:$0xff]
        %v869 = vld [vmem:[#allocation4 + $0x18] sm:$0xff]
        %v870 = vld [vmem:[#allocation4 + $0x20] sm:$0xff]
        %v871 = vld [vmem:[#allocation4 + $0x28] sm:$0xff]
        %v872 = vld [vmem:[#allocation4 + $0x30] sm:$0xff]
        %v873 = vld [vmem:[#allocation4 + $0x38] sm:$0xff]
        %v874 = vld [vmem:[#allocation4 + $0x40] sm:$0xff]
        %v875 = vld [vmem:[#allocation4 + $0x48] sm:$0xff]
        %v876 = vld [vmem:[#allocation4 + $0x50] sm:$0xff]
        %v877 = vld [vmem:[#allocation4 + $0x58] sm:$0xff]
        %v878 = vld [vmem:[#allocation4 + $0x60] sm:$0xff]
        %v879 = vld [vmem:[#allocation4 + $0x68] sm:$0xff]
        %v880 = vld [vmem:[#allocation4 + $0x70] sm:$0xff]
        %v881 = vld [vmem:[#allocation4 + $0x78] sm:$0xff]
        %v882 = vsel %vm642, %v511, 0.0
        %v883 = vsel %vm643, %v516, 0.0
        %v884 = vsel %vm644, %v521, 0.0
        %v885 = vsel %vm645, %v526, 0.0
        %v886 = vsel %vm646, %v531, 0.0
        %v887 = vsel %vm647, %v536, 0.0
        %v888 = vsel %vm648, %v541, 0.0
        %v889 = vsel %vm649, %v546, 0.0
        %v890 = vsel %vm650, %v551, 0.0
        %v891 = vsel %vm651, %v556, 0.0
        %v892 = vsel %vm652, %v561, 0.0
        %v893 = vsel %vm653, %v566, 0.0
        %v894 = vsel %vm654, %v571, 0.0
        %v895 = vsel %vm655, %v576, 0.0
        %v896 = vsel %vm656, %v581, 0.0
        %v897 = vsel %vm657, %v586, 0.0
        %v898 = vadd.f32 %v866, %v882
        %v899 = vadd.f32 %v867, %v883
        %v900 = vadd.f32 %v868, %v884
        %v901 = vadd.f32 %v869, %v885
        %v902 = vadd.f32 %v870, %v886
        %v903 = vadd.f32 %v871, %v887
        %v904 = vadd.f32 %v872, %v888
        %v905 = vadd.f32 %v873, %v889
        %v906 = vadd.f32 %v874, %v890
        %v907 = vadd.f32 %v875, %v891
        %v908 = vadd.f32 %v876, %v892
        %v909 = vadd.f32 %v877, %v893
        %v910 = vadd.f32 %v878, %v894
        %v911 = vadd.f32 %v879, %v895
        %v912 = vadd.f32 %v880, %v896
        %v913 = vadd.f32 %v881, %v897
        %914 = vst [vmem:[#allocation4] sm:$0xff] %v898
        %915 = vst [vmem:[#allocation4 + $0x8] sm:$0xff] %v899
        %916 = vst [vmem:[#allocation4 + $0x10] sm:$0xff] %v900
        %917 = vst [vmem:[#allocation4 + $0x18] sm:$0xff] %v901
        %918 = vst [vmem:[#allocation4 + $0x20] sm:$0xff] %v902
        %919 = vst [vmem:[#allocation4 + $0x28] sm:$0xff] %v903
        %920 = vst [vmem:[#allocation4 + $0x30] sm:$0xff] %v904
        %921 = vst [vmem:[#allocation4 + $0x38] sm:$0xff] %v905
        %922 = vst [vmem:[#allocation4 + $0x40] sm:$0xff] %v906
        %923 = vst [vmem:[#allocation4 + $0x48] sm:$0xff] %v907
        %924 = vst [vmem:[#allocation4 + $0x50] sm:$0xff] %v908
        %925 = vst [vmem:[#allocation4 + $0x58] sm:$0xff] %v909
        %926 = vst [vmem:[#allocation4 + $0x60] sm:$0xff] %v910
        %927 = vst [vmem:[#allocation4 + $0x68] sm:$0xff] %v911
        %928 = vst [vmem:[#allocation4 + $0x70] sm:$0xff] %v912
        %929 = vst [vmem:[#allocation4 + $0x78] sm:$0xff] %v913
        %v930 = vld [vmem:[#allocation5] sm:$0xff]
        %v931 = vld [vmem:[#allocation5 + $0x8] sm:$0xff]
        %v932 = vld [vmem:[#allocation5 + $0x10] sm:$0xff]
        %v933 = vld [vmem:[#allocation5 + $0x18] sm:$0xff]
        %v934 = vld [vmem:[#allocation5 + $0x20] sm:$0xff]
        %v935 = vld [vmem:[#allocation5 + $0x28] sm:$0xff]
        %v936 = vld [vmem:[#allocation5 + $0x30] sm:$0xff]
        %v937 = vld [vmem:[#allocation5 + $0x38] sm:$0xff]
        %v938 = vld [vmem:[#allocation5 + $0x40] sm:$0xff]
        %v939 = vld [vmem:[#allocation5 + $0x48] sm:$0xff]
        %v940 = vld [vmem:[#allocation5 + $0x50] sm:$0xff]
        %v941 = vld [vmem:[#allocation5 + $0x58] sm:$0xff]
        %v942 = vld [vmem:[#allocation5 + $0x60] sm:$0xff]
        %v943 = vld [vmem:[#allocation5 + $0x68] sm:$0xff]
        %v944 = vld [vmem:[#allocation5 + $0x70] sm:$0xff]
        %v945 = vld [vmem:[#allocation5 + $0x78] sm:$0xff]
        %v946 = vsel %vm642, 1.0, 0.0
        %v947 = vsel %vm643, 1.0, 0.0
        %v948 = vsel %vm644, 1.0, 0.0
        %v949 = vsel %vm645, 1.0, 0.0
        %v950 = vsel %vm646, 1.0, 0.0
        %v951 = vsel %vm647, 1.0, 0.0
        %v952 = vsel %vm648, 1.0, 0.0
        %v953 = vsel %vm649, 1.0, 0.0
        %v954 = vsel %vm650, 1.0, 0.0
        %v955 = vsel %vm651, 1.0, 0.0
        %v956 = vsel %vm652, 1.0, 0.0
        %v957 = vsel %vm653, 1.0, 0.0
        %v958 = vsel %vm654, 1.0, 0.0
        %v959 = vsel %vm655, 1.0, 0.0
        %v960 = vsel %vm656, 1.0, 0.0
        %v961 = vsel %vm657, 1.0, 0.0
        %v962 = vadd.f32 %v930, %v946
        %v963 = vadd.f32 %v931, %v947
        %v964 = vadd.f32 %v932, %v948
        %v965 = vadd.f32 %v933, %v949
        %v966 = vadd.f32 %v934, %v950
        %v967 = vadd.f32 %v935, %v951
        %v968 = vadd.f32 %v936, %v952
        %v969 = vadd.f32 %v937, %v953
        %v970 = vadd.f32 %v938, %v954
        %v971 = vadd.f32 %v939, %v955
        %v972 = vadd.f32 %v940, %v956
        %v973 = vadd.f32 %v941, %v957
        %v974 = vadd.f32 %v942, %v958
        %v975 = vadd.f32 %v943, %v959
        %v976 = vadd.f32 %v944, %v960
        %v977 = vadd.f32 %v945, %v961
        %978 = vst [vmem:[#allocation5] sm:$0xff] %v962
        %979 = vst [vmem:[#allocation5 + $0x8] sm:$0xff] %v963
        %980 = vst [vmem:[#allocation5 + $0x10] sm:$0xff] %v964
        %981 = vst [vmem:[#allocation5 + $0x18] sm:$0xff] %v965
        %982 = vst [vmem:[#allocation5 + $0x20] sm:$0xff] %v966
        %983 = vst [vmem:[#allocation5 + $0x28] sm:$0xff] %v967
        %984 = vst [vmem:[#allocation5 + $0x30] sm:$0xff] %v968
        %985 = vst [vmem:[#allocation5 + $0x38] sm:$0xff] %v969
        %986 = vst [vmem:[#allocation5 + $0x40] sm:$0xff] %v970
        %987 = vst [vmem:[#allocation5 + $0x48] sm:$0xff] %v971
        %988 = vst [vmem:[#allocation5 + $0x50] sm:$0xff] %v972
        %989 = vst [vmem:[#allocation5 + $0x58] sm:$0xff] %v973
        %990 = vst [vmem:[#allocation5 + $0x60] sm:$0xff] %v974
        %991 = vst [vmem:[#allocation5 + $0x68] sm:$0xff] %v975
        %992 = vst [vmem:[#allocation5 + $0x70] sm:$0xff] %v976
        %993 = vst [vmem:[#allocation5 + $0x78] sm:$0xff] %v977
        %v994 = vld [vmem:[%s302] sm:$0xff]
        %v995 = vld [vmem:[%s302 + $0x8] sm:$0xff]
        %v996 = vld [vmem:[%s302 + $0x10] sm:$0xff]
        %v997 = vld [vmem:[%s302 + $0x18] sm:$0xff]
        %v998 = vld [vmem:[%s302 + $0x20] sm:$0xff]
        %v999 = vld [vmem:[%s302 + $0x28] sm:$0xff]
        %v1000 = vld [vmem:[%s302 + $0x30] sm:$0xff]
        %v1001 = vld [vmem:[%s302 + $0x38] sm:$0xff]
        %v1002 = vld [vmem:[%s302 + $0x40] sm:$0xff]
        %v1003 = vld [vmem:[%s302 + $0x48] sm:$0xff]
        %v1004 = vld [vmem:[%s302 + $0x50] sm:$0xff]
        %v1005 = vld [vmem:[%s302 + $0x58] sm:$0xff]
        %v1006 = vld [vmem:[%s302 + $0x60] sm:$0xff]
        %v1007 = vld [vmem:[%s302 + $0x68] sm:$0xff]
        %v1008 = vld [vmem:[%s302 + $0x70] sm:$0xff]
        %v1009 = vld [vmem:[%s302 + $0x78] sm:$0xff]
        %v1010 = vld [vmem:[#allocation6 + $0x8] sm:$0xff]
        %v1011 = vld [vmem:[#allocation6 + $0x28] sm:$0xff]
        %v1012 = vld [vmem:[#allocation6 + $0x48] sm:$0xff]
        %v1013 = vld [vmem:[#allocation6 + $0x68] sm:$0xff]
        %v1014 = vld [vmem:[#allocation6 + $0x88] sm:$0xff]
        %v1015 = vld [vmem:[#allocation6 + $0xa8] sm:$0xff]
        %v1016 = vld [vmem:[#allocation6 + $0xc8] sm:$0xff]
        %v1017 = vld [vmem:[#allocation6 + $0xe8] sm:$0xff]
        %v1018 = vld [vmem:[#allocation6 + $0x108] sm:$0xff]
        %v1019 = vld [vmem:[#allocation6 + $0x128] sm:$0xff]
        %v1020 = vld [vmem:[#allocation6 + $0x148] sm:$0xff]
        %v1021 = vld [vmem:[#allocation6 + $0x168] sm:$0xff]
        %v1022 = vld [vmem:[#allocation6 + $0x188] sm:$0xff]
        %v1023 = vld [vmem:[#allocation6 + $0x1a8] sm:$0xff]
        %v1024 = vld [vmem:[#allocation6 + $0x1c8] sm:$0xff]
        %v1025 = vld [vmem:[#allocation6 + $0x1e8] sm:$0xff]
        %v1026 = vld [vmem:[%s319 + $0x1] sm:$0x1]
        %v1028 = vlaneseq
        %v1029 = vshrl.u32 %v1028, 7
        %v1030 = vsub.s32 0, %v1029
        %v1031 = vrot.slane %v1026, %v1030
        %1033 = vmatprep.subr.mxu0 0.0
        %1034 = vmatpush1.msra.mxu0 %v1025
        %1035 = vmatprep.subr.mxu0 0.0
        %1036 = vmatpush1.msra.mxu0 %v1024
        %1037 = vmatprep.subr.mxu0 0.0
        %1038 = vmatpush1.msra.mxu0 %v1023
        %1039 = vmatprep.subr.mxu0 0.0
        %1040 = vmatpush1.msra.mxu0 %v1022
        %1041 = vmatprep.subr.mxu0 0.0
        %1042 = vmatpush1.msra.mxu0 %v1021
        %1043 = vmatprep.subr.mxu0 0.0
        %1044 = vmatpush1.msra.mxu0 %v1020
        %1045 = vmatprep.subr.mxu0 0.0
        %1046 = vmatpush1.msra.mxu0 %v1019
        %1047 = vmatprep.subr.mxu0 0.0
        %1048 = vmatpush1.msra.mxu0 %v1018
        %1049 = vmatprep.subr.mxu0 0.0
        %1050 = vmatpush1.msra.mxu0 %v1017
        %1051 = vmatprep.subr.mxu0 0.0
        %1052 = vmatpush1.msra.mxu0 %v1016
        %1053 = vmatprep.subr.mxu0 0.0
        %1054 = vmatpush1.msra.mxu0 %v1015
        %1055 = vmatprep.subr.mxu0 0.0
        %1056 = vmatpush1.msra.mxu0 %v1014
        %1057 = vmatprep.subr.mxu0 0.0
        %1058 = vmatpush1.msra.mxu0 %v1013
        %1059 = vmatprep.subr.mxu0 0.0
        %1060 = vmatpush1.msra.mxu0 %v1012
        %1061 = vmatprep.subr.mxu0 0.0
        %1062 = vmatpush1.msra.mxu0 %v1011
        %1063 = vmatprep.subr.mxu0 0.0
        %1064 = vmatpush1.msra.mxu0 %v1010
        %1065 = vmatprep.subr.mxu0 0.0
        %1066 = vmatpush2.msra.mxu0 0.0
        %1067 = vmatprep.subr.mxu0 0.0
        %1068 = vmatpush2.msra.mxu0 0.0
        %1069 = vmatprep.subr.mxu0 0.0
        %1070 = vmatpush2.msra.mxu0 0.0
        %1071 = vmatprep.subr.mxu0 0.0
        %1072 = vmatpush2.msra.mxu0 0.0
        %1073 = vmatprep.subr.mxu0 0.0
        %1074 = vmatpush2.msra.mxu0 0.0
        %1075 = vmatprep.subr.mxu0 0.0
        %1076 = vmatpush2.msra.mxu0 0.0
        %1077 = vmatprep.subr.mxu0 0.0
        %1078 = vmatpush2.msra.mxu0 0.0
        %1079 = vmatprep.subr.mxu0 0.0
        %1080 = vmatpush2.msra.mxu0 0.0
        %1081 = vmatprep.subr.mxu0 0.0
        %1082 = vmatpush2.msra.mxu0 0.0
        %1083 = vmatprep.subr.mxu0 0.0
        %1084 = vmatpush2.msra.mxu0 0.0
        %1085 = vmatprep.subr.mxu0 0.0
        %1086 = vmatpush2.msra.mxu0 0.0
        %1087 = vmatprep.subr.mxu0 0.0
        %1088 = vmatpush2.msra.mxu0 0.0
        %1089 = vmatprep.subr.mxu0 0.0
        %1090 = vmatpush2.msra.mxu0 0.0
        %1091 = vmatprep.subr.mxu0 0.0
        %1092 = vmatpush2.msra.mxu0 0.0
        %1093 = vmatprep.subr.mxu0 0.0
        %1094 = vmatpush2.msra.mxu0 0.0
        %1095 = vmatprep.subr.mxu0 0.0
        %1096 = vmatpush2.msra.mxu0 0.0
        %1097 = vmatprep.mubr.f32.mxu0 0.0
        %1098 = vmatmul.mubr.f32.gmra.mxu0 %v994
        %v1099 = vpop.f32.mrf.mxu0
        %v1100 = vadd.f32 %v1031, %v1099
        %v1101 = vpop.f32.mrf.mxu0
        %1102 = vmatprep.mubr.f32.mxu0 0.0
        %1103 = vmatmul.mubr.f32.gmra.mxu0 %v995
        %v1104 = vpop.f32.mrf.mxu0
        %v1105 = vadd.f32 %v1031, %v1104
        %v1106 = vpop.f32.mrf.mxu0
        %1107 = vmatprep.mubr.f32.mxu0 0.0
        %1108 = vmatmul.mubr.f32.gmra.mxu0 %v996
        %v1109 = vpop.f32.mrf.mxu0
        %v1110 = vadd.f32 %v1031, %v1109
        %v1111 = vpop.f32.mrf.mxu0
        %1112 = vmatprep.mubr.f32.mxu0 0.0
        %1113 = vmatmul.mubr.f32.gmra.mxu0 %v997
        %v1114 = vpop.f32.mrf.mxu0
        %v1115 = vadd.f32 %v1031, %v1114
        %v1116 = vpop.f32.mrf.mxu0
        %1117 = vmatprep.mubr.f32.mxu0 0.0
        %1118 = vmatmul.mubr.f32.gmra.mxu0 %v998
        %v1119 = vpop.f32.mrf.mxu0
        %v1120 = vadd.f32 %v1031, %v1119
        %v1121 = vpop.f32.mrf.mxu0
        %1122 = vmatprep.mubr.f32.mxu0 0.0
        %1123 = vmatmul.mubr.f32.gmra.mxu0 %v999
        %v1124 = vpop.f32.mrf.mxu0
        %v1125 = vadd.f32 %v1031, %v1124
        %v1126 = vpop.f32.mrf.mxu0
        %1127 = vmatprep.mubr.f32.mxu0 0.0
        %1128 = vmatmul.mubr.f32.gmra.mxu0 %v1000
        %v1129 = vpop.f32.mrf.mxu0
        %v1130 = vadd.f32 %v1031, %v1129
        %v1131 = vpop.f32.mrf.mxu0
        %1132 = vmatprep.mubr.f32.mxu0 0.0
        %1133 = vmatmul.mubr.f32.gmra.mxu0 %v1001
        %v1134 = vpop.f32.mrf.mxu0
        %v1135 = vadd.f32 %v1031, %v1134
        %v1136 = vpop.f32.mrf.mxu0
        %1137 = vmatprep.mubr.f32.mxu0 0.0
        %1138 = vmatmul.mubr.f32.gmra.mxu0 %v1002
        %v1139 = vpop.f32.mrf.mxu0
        %v1140 = vadd.f32 %v1031, %v1139
        %v1141 = vpop.f32.mrf.mxu0
        %1142 = vmatprep.mubr.f32.mxu0 0.0
        %1143 = vmatmul.mubr.f32.gmra.mxu0 %v1003
        %v1144 = vpop.f32.mrf.mxu0
        %v1145 = vadd.f32 %v1031, %v1144
        %v1146 = vpop.f32.mrf.mxu0
        %1147 = vmatprep.mubr.f32.mxu0 0.0
        %1148 = vmatmul.mubr.f32.gmra.mxu0 %v1004
        %v1149 = vpop.f32.mrf.mxu0
        %v1150 = vadd.f32 %v1031, %v1149
        %v1151 = vpop.f32.mrf.mxu0
        %1152 = vmatprep.mubr.f32.mxu0 0.0
        %1153 = vmatmul.mubr.f32.gmra.mxu0 %v1005
        %v1154 = vpop.f32.mrf.mxu0
        %v1155 = vadd.f32 %v1031, %v1154
        %v1156 = vpop.f32.mrf.mxu0
        %1157 = vmatprep.mubr.f32.mxu0 0.0
        %1158 = vmatmul.mubr.f32.gmra.mxu0 %v1006
        %v1159 = vpop.f32.mrf.mxu0
        %v1160 = vadd.f32 %v1031, %v1159
        %v1161 = vpop.f32.mrf.mxu0
        %1162 = vmatprep.mubr.f32.mxu0 0.0
        %1163 = vmatmul.mubr.f32.gmra.mxu0 %v1007
        %v1164 = vpop.f32.mrf.mxu0
        %v1165 = vadd.f32 %v1031, %v1164
        %v1166 = vpop.f32.mrf.mxu0
        %1167 = vmatprep.mubr.f32.mxu0 0.0
        %1168 = vmatmul.mubr.f32.gmra.mxu0 %v1008
        %v1169 = vpop.f32.mrf.mxu0
        %v1170 = vadd.f32 %v1031, %v1169
        %v1171 = vpop.f32.mrf.mxu0
        %1172 = vmatprep.mubr.f32.mxu0 0.0
        %1173 = vmatmul.mubr.f32.gmra.mxu0 %v1009
        %v1174 = vpop.f32.mrf.mxu0
        %v1175 = vadd.f32 %v1031, %v1174
        %v1176 = vpop.f32.mrf.mxu0
        %1177 = vdwg.mxu0
        %v1178 = vld [vmem:[%s314 + $0x1] sm:$0x1]
        %v1179 = vlaneseq
        %v1180 = vshrl.u32 %v1179, 7
        %v1181 = vsub.s32 0, %v1180
        %v1182 = vrot.slane %v1178, %v1181
        %vm1183 = vcmp.eq.s32.totalorder %v592, %v1182
        %vm1184 = vcmp.eq.s32.totalorder %v595, %v1182
        %vm1185 = vcmp.eq.s32.totalorder %v598, %v1182
        %vm1186 = vcmp.eq.s32.totalorder %v601, %v1182
        %vm1187 = vcmp.eq.s32.totalorder %v604, %v1182
        %vm1188 = vcmp.eq.s32.totalorder %v607, %v1182
        %vm1189 = vcmp.eq.s32.totalorder %v610, %v1182
        %vm1190 = vcmp.eq.s32.totalorder %v613, %v1182
        %vm1191 = vcmp.eq.s32.totalorder %v616, %v1182
        %vm1192 = vcmp.eq.s32.totalorder %v619, %v1182
        %vm1193 = vcmp.eq.s32.totalorder %v622, %v1182
        %vm1194 = vcmp.eq.s32.totalorder %v625, %v1182
        %vm1195 = vcmp.eq.s32.totalorder %v628, %v1182
        %vm1196 = vcmp.eq.s32.totalorder %v631, %v1182
        %vm1197 = vcmp.eq.s32.totalorder %v634, %v1182
        %vm1198 = vcmp.eq.s32.totalorder %v637, %v1182
        %v1199 = vld [vmem:[#allocation2] sm:$0xff]
        %v1200 = vld [vmem:[#allocation2 + $0x8] sm:$0xff]
        %v1201 = vld [vmem:[#allocation2 + $0x10] sm:$0xff]
        %v1202 = vld [vmem:[#allocation2 + $0x18] sm:$0xff]
        %v1203 = vld [vmem:[#allocation2 + $0x20] sm:$0xff]
        %v1204 = vld [vmem:[#allocation2 + $0x28] sm:$0xff]
        %v1205 = vld [vmem:[#allocation2 + $0x30] sm:$0xff]
        %v1206 = vld [vmem:[#allocation2 + $0x38] sm:$0xff]
        %v1207 = vld [vmem:[#allocation2 + $0x40] sm:$0xff]
        %v1208 = vld [vmem:[#allocation2 + $0x48] sm:$0xff]
        %v1209 = vld [vmem:[#allocation2 + $0x50] sm:$0xff]
        %v1210 = vld [vmem:[#allocation2 + $0x58] sm:$0xff]
        %v1211 = vld [vmem:[#allocation2 + $0x60] sm:$0xff]
        %v1212 = vld [vmem:[#allocation2 + $0x68] sm:$0xff]
        %v1213 = vld [vmem:[#allocation2 + $0x70] sm:$0xff]
        %v1214 = vld [vmem:[#allocation2 + $0x78] sm:$0xff]
        %v1215 = vmax.f32 %v1199, %v1100
        %v1216 = vmax.f32 %v1200, %v1105
        %v1217 = vmax.f32 %v1201, %v1110
        %v1218 = vmax.f32 %v1202, %v1115
        %v1219 = vmax.f32 %v1203, %v1120
        %v1220 = vmax.f32 %v1204, %v1125
        %v1221 = vmax.f32 %v1205, %v1130
        %v1222 = vmax.f32 %v1206, %v1135
        %v1223 = vmax.f32 %v1207, %v1140
        %v1224 = vmax.f32 %v1208, %v1145
        %v1225 = vmax.f32 %v1209, %v1150
        %v1226 = vmax.f32 %v1210, %v1155
        %v1227 = vmax.f32 %v1211, %v1160
        %v1228 = vmax.f32 %v1212, %v1165
        %v1229 = vmax.f32 %v1213, %v1170
        %v1230 = vmax.f32 %v1214, %v1175
        %v1231 = vld [vmem:[#allocation3] sm:$0xff]
        %v1232 = vld [vmem:[#allocation3 + $0x8] sm:$0xff]
        %v1233 = vld [vmem:[#allocation3 + $0x10] sm:$0xff]
        %v1234 = vld [vmem:[#allocation3 + $0x18] sm:$0xff]
        %v1235 = vld [vmem:[#allocation3 + $0x20] sm:$0xff]
        %v1236 = vld [vmem:[#allocation3 + $0x28] sm:$0xff]
        %v1237 = vld [vmem:[#allocation3 + $0x30] sm:$0xff]
        %v1238 = vld [vmem:[#allocation3 + $0x38] sm:$0xff]
        %v1239 = vld [vmem:[#allocation3 + $0x40] sm:$0xff]
        %v1240 = vld [vmem:[#allocation3 + $0x48] sm:$0xff]
        %v1241 = vld [vmem:[#allocation3 + $0x50] sm:$0xff]
        %v1242 = vld [vmem:[#allocation3 + $0x58] sm:$0xff]
        %v1243 = vld [vmem:[#allocation3 + $0x60] sm:$0xff]
        %v1244 = vld [vmem:[#allocation3 + $0x68] sm:$0xff]
        %v1245 = vld [vmem:[#allocation3 + $0x70] sm:$0xff]
        %v1246 = vld [vmem:[#allocation3 + $0x78] sm:$0xff]
        %v1247 = vsub.f32 %v1199, %v1215
        %v1248 = vsub.f32 %v1200, %v1216
        %v1249 = vsub.f32 %v1201, %v1217
        %v1250 = vsub.f32 %v1202, %v1218
        %v1251 = vsub.f32 %v1203, %v1219
        %v1252 = vsub.f32 %v1204, %v1220
        %v1253 = vsub.f32 %v1205, %v1221
        %v1254 = vsub.f32 %v1206, %v1222
        %v1255 = vsub.f32 %v1207, %v1223
        %v1256 = vsub.f32 %v1208, %v1224
        %v1257 = vsub.f32 %v1209, %v1225
        %v1258 = vsub.f32 %v1210, %v1226
        %v1259 = vsub.f32 %v1211, %v1227
        %v1260 = vsub.f32 %v1212, %v1228
        %v1261 = vsub.f32 %v1213, %v1229
        %v1262 = vsub.f32 %v1214, %v1230
        %v1263 = vmul.f32 %v1247, 1.442695
        %v1264 = vpow.pop %v1263
        %v1265 = vmul.f32 %v1248, 1.442695
        %v1266 = vpow.pop %v1265
        %v1267 = vmul.f32 %v1249, 1.442695
        %v1268 = vpow.pop %v1267
        %v1269 = vmul.f32 %v1250, 1.442695
        %v1270 = vpow.pop %v1269
        %v1271 = vmul.f32 %v1251, 1.442695
        %v1272 = vpow.pop %v1271
        %v1273 = vmul.f32 %v1252, 1.442695
        %v1274 = vpow.pop %v1273
        %v1275 = vmul.f32 %v1253, 1.442695
        %v1276 = vpow.pop %v1275
        %v1277 = vmul.f32 %v1254, 1.442695
        %v1278 = vpow.pop %v1277
        %v1279 = vmul.f32 %v1255, 1.442695
        %v1280 = vpow.pop %v1279
        %v1281 = vmul.f32 %v1256, 1.442695
        %v1282 = vpow.pop %v1281
        %v1283 = vmul.f32 %v1257, 1.442695
        %v1284 = vpow.pop %v1283
        %v1285 = vmul.f32 %v1258, 1.442695
        %v1286 = vpow.pop %v1285
        %v1287 = vmul.f32 %v1259, 1.442695
        %v1288 = vpow.pop %v1287
        %v1289 = vmul.f32 %v1260, 1.442695
        %v1290 = vpow.pop %v1289
        %v1291 = vmul.f32 %v1261, 1.442695
        %v1292 = vpow.pop %v1291
        %v1293 = vmul.f32 %v1262, 1.442695
        %v1294 = vpow.pop %v1293
        %v1295 = vmul.f32 %v1231, %v1264
        %v1296 = vmul.f32 %v1232, %v1266
        %v1297 = vmul.f32 %v1233, %v1268
        %v1298 = vmul.f32 %v1234, %v1270
        %v1299 = vmul.f32 %v1235, %v1272
        %v1300 = vmul.f32 %v1236, %v1274
        %v1301 = vmul.f32 %v1237, %v1276
        %v1302 = vmul.f32 %v1238, %v1278
        %v1303 = vmul.f32 %v1239, %v1280
        %v1304 = vmul.f32 %v1240, %v1282
        %v1305 = vmul.f32 %v1241, %v1284
        %v1306 = vmul.f32 %v1242, %v1286
        %v1307 = vmul.f32 %v1243, %v1288
        %v1308 = vmul.f32 %v1244, %v1290
        %v1309 = vmul.f32 %v1245, %v1292
        %v1310 = vmul.f32 %v1246, %v1294
        %v1311 = vsub.f32 %v1100, %v1215
        %v1312 = vsub.f32 %v1105, %v1216
        %v1313 = vsub.f32 %v1110, %v1217
        %v1314 = vsub.f32 %v1115, %v1218
        %v1315 = vsub.f32 %v1120, %v1219
        %v1316 = vsub.f32 %v1125, %v1220
        %v1317 = vsub.f32 %v1130, %v1221
        %v1318 = vsub.f32 %v1135, %v1222
        %v1319 = vsub.f32 %v1140, %v1223
        %v1320 = vsub.f32 %v1145, %v1224
        %v1321 = vsub.f32 %v1150, %v1225
        %v1322 = vsub.f32 %v1155, %v1226
        %v1323 = vsub.f32 %v1160, %v1227
        %v1324 = vsub.f32 %v1165, %v1228
        %v1325 = vsub.f32 %v1170, %v1229
        %v1326 = vsub.f32 %v1175, %v1230
        %v1327 = vmul.f32 %v1311, 1.442695
        %v1328 = vpow.pop %v1327
        %v1329 = vmul.f32 %v1312, 1.442695
        %v1330 = vpow.pop %v1329
        %v1331 = vmul.f32 %v1313, 1.442695
        %v1332 = vpow.pop %v1331
        %v1333 = vmul.f32 %v1314, 1.442695
        %v1334 = vpow.pop %v1333
        %v1335 = vmul.f32 %v1315, 1.442695
        %v1336 = vpow.pop %v1335
        %v1337 = vmul.f32 %v1316, 1.442695
        %v1338 = vpow.pop %v1337
        %v1339 = vmul.f32 %v1317, 1.442695
        %v1340 = vpow.pop %v1339
        %v1341 = vmul.f32 %v1318, 1.442695
        %v1342 = vpow.pop %v1341
        %v1343 = vmul.f32 %v1319, 1.442695
        %v1344 = vpow.pop %v1343
        %v1345 = vmul.f32 %v1320, 1.442695
        %v1346 = vpow.pop %v1345
        %v1347 = vmul.f32 %v1321, 1.442695
        %v1348 = vpow.pop %v1347
        %v1349 = vmul.f32 %v1322, 1.442695
        %v1350 = vpow.pop %v1349
        %v1351 = vmul.f32 %v1323, 1.442695
        %v1352 = vpow.pop %v1351
        %v1353 = vmul.f32 %v1324, 1.442695
        %v1354 = vpow.pop %v1353
        %v1355 = vmul.f32 %v1325, 1.442695
        %v1356 = vpow.pop %v1355
        %v1357 = vmul.f32 %v1326, 1.442695
        %v1358 = vpow.pop %v1357
        %v1359 = vadd.f32 %v1295, %v1328
        %v1360 = vadd.f32 %v1296, %v1330
        %v1361 = vadd.f32 %v1297, %v1332
        %v1362 = vadd.f32 %v1298, %v1334
        %v1363 = vadd.f32 %v1299, %v1336
        %v1364 = vadd.f32 %v1300, %v1338
        %v1365 = vadd.f32 %v1301, %v1340
        %v1366 = vadd.f32 %v1302, %v1342
        %v1367 = vadd.f32 %v1303, %v1344
        %v1368 = vadd.f32 %v1304, %v1346
        %v1369 = vadd.f32 %v1305, %v1348
        %v1370 = vadd.f32 %v1306, %v1350
        %v1371 = vadd.f32 %v1307, %v1352
        %v1372 = vadd.f32 %v1308, %v1354
        %v1373 = vadd.f32 %v1309, %v1356
        %v1374 = vadd.f32 %v1310, %v1358
        %1375 = vst [vmem:[#allocation3] sm:$0xff] %v1359
        %1376 = vst [vmem:[#allocation3 + $0x8] sm:$0xff] %v1360
        %1377 = vst [vmem:[#allocation3 + $0x10] sm:$0xff] %v1361
        %1378 = vst [vmem:[#allocation3 + $0x18] sm:$0xff] %v1362
        %1379 = vst [vmem:[#allocation3 + $0x20] sm:$0xff] %v1363
        %1380 = vst [vmem:[#allocation3 + $0x28] sm:$0xff] %v1364
        %1381 = vst [vmem:[#allocation3 + $0x30] sm:$0xff] %v1365
        %1382 = vst [vmem:[#allocation3 + $0x38] sm:$0xff] %v1366
        %1383 = vst [vmem:[#allocation3 + $0x40] sm:$0xff] %v1367
        %1384 = vst [vmem:[#allocation3 + $0x48] sm:$0xff] %v1368
        %1385 = vst [vmem:[#allocation3 + $0x50] sm:$0xff] %v1369
        %1386 = vst [vmem:[#allocation3 + $0x58] sm:$0xff] %v1370
        %1387 = vst [vmem:[#allocation3 + $0x60] sm:$0xff] %v1371
        %1388 = vst [vmem:[#allocation3 + $0x68] sm:$0xff] %v1372
        %1389 = vst [vmem:[#allocation3 + $0x70] sm:$0xff] %v1373
        %1390 = vst [vmem:[#allocation3 + $0x78] sm:$0xff] %v1374
        %1391 = vst [vmem:[#allocation2] sm:$0xff] %v1215
        %1392 = vst [vmem:[#allocation2 + $0x8] sm:$0xff] %v1216
        %1393 = vst [vmem:[#allocation2 + $0x10] sm:$0xff] %v1217
        %1394 = vst [vmem:[#allocation2 + $0x18] sm:$0xff] %v1218
        %1395 = vst [vmem:[#allocation2 + $0x20] sm:$0xff] %v1219
        %1396 = vst [vmem:[#allocation2 + $0x28] sm:$0xff] %v1220
        %1397 = vst [vmem:[#allocation2 + $0x30] sm:$0xff] %v1221
        %1398 = vst [vmem:[#allocation2 + $0x38] sm:$0xff] %v1222
        %1399 = vst [vmem:[#allocation2 + $0x40] sm:$0xff] %v1223
        %1400 = vst [vmem:[#allocation2 + $0x48] sm:$0xff] %v1224
        %1401 = vst [vmem:[#allocation2 + $0x50] sm:$0xff] %v1225
        %1402 = vst [vmem:[#allocation2 + $0x58] sm:$0xff] %v1226
        %1403 = vst [vmem:[#allocation2 + $0x60] sm:$0xff] %v1227
        %1404 = vst [vmem:[#allocation2 + $0x68] sm:$0xff] %v1228
        %1405 = vst [vmem:[#allocation2 + $0x70] sm:$0xff] %v1229
        %1406 = vst [vmem:[#allocation2 + $0x78] sm:$0xff] %v1230
        %v1407 = vld [vmem:[#allocation4] sm:$0xff]
        %v1408 = vld [vmem:[#allocation4 + $0x8] sm:$0xff]
        %v1409 = vld [vmem:[#allocation4 + $0x10] sm:$0xff]
        %v1410 = vld [vmem:[#allocation4 + $0x18] sm:$0xff]
        %v1411 = vld [vmem:[#allocation4 + $0x20] sm:$0xff]
        %v1412 = vld [vmem:[#allocation4 + $0x28] sm:$0xff]
        %v1413 = vld [vmem:[#allocation4 + $0x30] sm:$0xff]
        %v1414 = vld [vmem:[#allocation4 + $0x38] sm:$0xff]
        %v1415 = vld [vmem:[#allocation4 + $0x40] sm:$0xff]
        %v1416 = vld [vmem:[#allocation4 + $0x48] sm:$0xff]
        %v1417 = vld [vmem:[#allocation4 + $0x50] sm:$0xff]
        %v1418 = vld [vmem:[#allocation4 + $0x58] sm:$0xff]
        %v1419 = vld [vmem:[#allocation4 + $0x60] sm:$0xff]
        %v1420 = vld [vmem:[#allocation4 + $0x68] sm:$0xff]
        %v1421 = vld [vmem:[#allocation4 + $0x70] sm:$0xff]
        %v1422 = vld [vmem:[#allocation4 + $0x78] sm:$0xff]
        %v1423 = vsel %vm1183, %v1100, 0.0
        %v1424 = vsel %vm1184, %v1105, 0.0
        %v1425 = vsel %vm1185, %v1110, 0.0
        %v1426 = vsel %vm1186, %v1115, 0.0
        %v1427 = vsel %vm1187, %v1120, 0.0
        %v1428 = vsel %vm1188, %v1125, 0.0
        %v1429 = vsel %vm1189, %v1130, 0.0
        %v1430 = vsel %vm1190, %v1135, 0.0
        %v1431 = vsel %vm1191, %v1140, 0.0
        %v1432 = vsel %vm1192, %v1145, 0.0
        %v1433 = vsel %vm1193, %v1150, 0.0
        %v1434 = vsel %vm1194, %v1155, 0.0
        %v1435 = vsel %vm1195, %v1160, 0.0
        %v1436 = vsel %vm1196, %v1165, 0.0
        %v1437 = vsel %vm1197, %v1170, 0.0
        %v1438 = vsel %vm1198, %v1175, 0.0
        %v1439 = vadd.f32 %v1407, %v1423
        %v1440 = vadd.f32 %v1408, %v1424
        %v1441 = vadd.f32 %v1409, %v1425
        %v1442 = vadd.f32 %v1410, %v1426
        %v1443 = vadd.f32 %v1411, %v1427
        %v1444 = vadd.f32 %v1412, %v1428
        %v1445 = vadd.f32 %v1413, %v1429
        %v1446 = vadd.f32 %v1414, %v1430
        %v1447 = vadd.f32 %v1415, %v1431
        %v1448 = vadd.f32 %v1416, %v1432
        %v1449 = vadd.f32 %v1417, %v1433
        %v1450 = vadd.f32 %v1418, %v1434
        %v1451 = vadd.f32 %v1419, %v1435
        %v1452 = vadd.f32 %v1420, %v1436
        %v1453 = vadd.f32 %v1421, %v1437
        %v1454 = vadd.f32 %v1422, %v1438
        %1455 = vst [vmem:[#allocation4] sm:$0xff] %v1439
        %1456 = vst [vmem:[#allocation4 + $0x8] sm:$0xff] %v1440
        %1457 = vst [vmem:[#allocation4 + $0x10] sm:$0xff] %v1441
        %1458 = vst [vmem:[#allocation4 + $0x18] sm:$0xff] %v1442
        %1459 = vst [vmem:[#allocation4 + $0x20] sm:$0xff] %v1443
        %1460 = vst [vmem:[#allocation4 + $0x28] sm:$0xff] %v1444
        %1461 = vst [vmem:[#allocation4 + $0x30] sm:$0xff] %v1445
        %1462 = vst [vmem:[#allocation4 + $0x38] sm:$0xff] %v1446
        %1463 = vst [vmem:[#allocation4 + $0x40] sm:$0xff] %v1447
        %1464 = vst [vmem:[#allocation4 + $0x48] sm:$0xff] %v1448
        %1465 = vst [vmem:[#allocation4 + $0x50] sm:$0xff] %v1449
        %1466 = vst [vmem:[#allocation4 + $0x58] sm:$0xff] %v1450
        %1467 = vst [vmem:[#allocation4 + $0x60] sm:$0xff] %v1451
        %1468 = vst [vmem:[#allocation4 + $0x68] sm:$0xff] %v1452
        %1469 = vst [vmem:[#allocation4 + $0x70] sm:$0xff] %v1453
        %1470 = vst [vmem:[#allocation4 + $0x78] sm:$0xff] %v1454
        %v1471 = vld [vmem:[#allocation5] sm:$0xff]
        %v1472 = vld [vmem:[#allocation5 + $0x8] sm:$0xff]
        %v1473 = vld [vmem:[#allocation5 + $0x10] sm:$0xff]
        %v1474 = vld [vmem:[#allocation5 + $0x18] sm:$0xff]
        %v1475 = vld [vmem:[#allocation5 + $0x20] sm:$0xff]
        %v1476 = vld [vmem:[#allocation5 + $0x28] sm:$0xff]
        %v1477 = vld [vmem:[#allocation5 + $0x30] sm:$0xff]
        %v1478 = vld [vmem:[#allocation5 + $0x38] sm:$0xff]
        %v1479 = vld [vmem:[#allocation5 + $0x40] sm:$0xff]
        %v1480 = vld [vmem:[#allocation5 + $0x48] sm:$0xff]
        %v1481 = vld [vmem:[#allocation5 + $0x50] sm:$0xff]
        %v1482 = vld [vmem:[#allocation5 + $0x58] sm:$0xff]
        %v1483 = vld [vmem:[#allocation5 + $0x60] sm:$0xff]
        %v1484 = vld [vmem:[#allocation5 + $0x68] sm:$0xff]
        %v1485 = vld [vmem:[#allocation5 + $0x70] sm:$0xff]
        %v1486 = vld [vmem:[#allocation5 + $0x78] sm:$0xff]
        %v1487 = vsel %vm1183, 1.0, 0.0
        %v1488 = vsel %vm1184, 1.0, 0.0
        %v1489 = vsel %vm1185, 1.0, 0.0
        %v1490 = vsel %vm1186, 1.0, 0.0
        %v1491 = vsel %vm1187, 1.0, 0.0
        %v1492 = vsel %vm1188, 1.0, 0.0
        %v1493 = vsel %vm1189, 1.0, 0.0
        %v1494 = vsel %vm1190, 1.0, 0.0
        %v1495 = vsel %vm1191, 1.0, 0.0
        %v1496 = vsel %vm1192, 1.0, 0.0
        %v1497 = vsel %vm1193, 1.0, 0.0
        %v1498 = vsel %vm1194, 1.0, 0.0
        %v1499 = vsel %vm1195, 1.0, 0.0
        %v1500 = vsel %vm1196, 1.0, 0.0
        %v1501 = vsel %vm1197, 1.0, 0.0
        %v1502 = vsel %vm1198, 1.0, 0.0
        %v1503 = vadd.f32 %v1471, %v1487
        %v1504 = vadd.f32 %v1472, %v1488
        %v1505 = vadd.f32 %v1473, %v1489
        %v1506 = vadd.f32 %v1474, %v1490
        %v1507 = vadd.f32 %v1475, %v1491
        %v1508 = vadd.f32 %v1476, %v1492
        %v1509 = vadd.f32 %v1477, %v1493
        %v1510 = vadd.f32 %v1478, %v1494
        %v1511 = vadd.f32 %v1479, %v1495
        %v1512 = vadd.f32 %v1480, %v1496
        %v1513 = vadd.f32 %v1481, %v1497
        %v1514 = vadd.f32 %v1482, %v1498
        %v1515 = vadd.f32 %v1483, %v1499
        %v1516 = vadd.f32 %v1484, %v1500
        %v1517 = vadd.f32 %v1485, %v1501
        %v1518 = vadd.f32 %v1486, %v1502
        %1519 = vst [vmem:[#allocation5] sm:$0xff] %v1503
        %1520 = vst [vmem:[#allocation5 + $0x8] sm:$0xff] %v1504
        %1521 = vst [vmem:[#allocation5 + $0x10] sm:$0xff] %v1505
        %1522 = vst [vmem:[#allocation5 + $0x18] sm:$0xff] %v1506
        %1523 = vst [vmem:[#allocation5 + $0x20] sm:$0xff] %v1507
        %1524 = vst [vmem:[#allocation5 + $0x28] sm:$0xff] %v1508
        %1525 = vst [vmem:[#allocation5 + $0x30] sm:$0xff] %v1509
        %1526 = vst [vmem:[#allocation5 + $0x38] sm:$0xff] %v1510
        %1527 = vst [vmem:[#allocation5 + $0x40] sm:$0xff] %v1511
        %1528 = vst [vmem:[#allocation5 + $0x48] sm:$0xff] %v1512
        %1529 = vst [vmem:[#allocation5 + $0x50] sm:$0xff] %v1513
        %1530 = vst [vmem:[#allocation5 + $0x58] sm:$0xff] %v1514
        %1531 = vst [vmem:[#allocation5 + $0x60] sm:$0xff] %v1515
        %1532 = vst [vmem:[#allocation5 + $0x68] sm:$0xff] %v1516
        %1533 = vst [vmem:[#allocation5 + $0x70] sm:$0xff] %v1517
        %1534 = vst [vmem:[#allocation5 + $0x78] sm:$0xff] %v1518
        %v1535 = vld [vmem:[%s302] sm:$0xff]
        %v1536 = vld [vmem:[%s302 + $0x8] sm:$0xff]
        %v1537 = vld [vmem:[%s302 + $0x10] sm:$0xff]
        %v1538 = vld [vmem:[%s302 + $0x18] sm:$0xff]
        %v1539 = vld [vmem:[%s302 + $0x20] sm:$0xff]
        %v1540 = vld [vmem:[%s302 + $0x28] sm:$0xff]
        %v1541 = vld [vmem:[%s302 + $0x30] sm:$0xff]
        %v1542 = vld [vmem:[%s302 + $0x38] sm:$0xff]
        %v1543 = vld [vmem:[%s302 + $0x40] sm:$0xff]
        %v1544 = vld [vmem:[%s302 + $0x48] sm:$0xff]
        %v1545 = vld [vmem:[%s302 + $0x50] sm:$0xff]
        %v1546 = vld [vmem:[%s302 + $0x58] sm:$0xff]
        %v1547 = vld [vmem:[%s302 + $0x60] sm:$0xff]
        %v1548 = vld [vmem:[%s302 + $0x68] sm:$0xff]
        %v1549 = vld [vmem:[%s302 + $0x70] sm:$0xff]
        %v1550 = vld [vmem:[%s302 + $0x78] sm:$0xff]
        %v1551 = vld [vmem:[#allocation6 + $0x10] sm:$0xff]
        %v1552 = vld [vmem:[#allocation6 + $0x30] sm:$0xff]
        %v1553 = vld [vmem:[#allocation6 + $0x50] sm:$0xff]
        %v1554 = vld [vmem:[#allocation6 + $0x70] sm:$0xff]
        %v1555 = vld [vmem:[#allocation6 + $0x90] sm:$0xff]
        %v1556 = vld [vmem:[#allocation6 + $0xb0] sm:$0xff]
        %v1557 = vld [vmem:[#allocation6 + $0xd0] sm:$0xff]
        %v1558 = vld [vmem:[#allocation6 + $0xf0] sm:$0xff]
        %v1559 = vld [vmem:[#allocation6 + $0x110] sm:$0xff]
        %v1560 = vld [vmem:[#allocation6 + $0x130] sm:$0xff]
        %v1561 = vld [vmem:[#allocation6 + $0x150] sm:$0xff]
        %v1562 = vld [vmem:[#allocation6 + $0x170] sm:$0xff]
        %v1563 = vld [vmem:[#allocation6 + $0x190] sm:$0xff]
        %v1564 = vld [vmem:[#allocation6 + $0x1b0] sm:$0xff]
        %v1565 = vld [vmem:[#allocation6 + $0x1d0] sm:$0xff]
        %v1566 = vld [vmem:[#allocation6 + $0x1f0] sm:$0xff]
        %v1567 = vld [vmem:[%s319 + $0x2] sm:$0x1]
        %v1569 = vlaneseq
        %v1570 = vshrl.u32 %v1569, 7
        %v1571 = vsub.s32 0, %v1570
        %v1572 = vrot.slane %v1567, %v1571
        %1574 = vmatprep.subr.mxu0 0.0
        %1575 = vmatpush1.msra.mxu0 %v1566
        %1576 = vmatprep.subr.mxu0 0.0
        %1577 = vmatpush1.msra.mxu0 %v1565
        %1578 = vmatprep.subr.mxu0 0.0
        %1579 = vmatpush1.msra.mxu0 %v1564
        %1580 = vmatprep.subr.mxu0 0.0
        %1581 = vmatpush1.msra.mxu0 %v1563
        %1582 = vmatprep.subr.mxu0 0.0
        %1583 = vmatpush1.msra.mxu0 %v1562
        %1584 = vmatprep.subr.mxu0 0.0
        %1585 = vmatpush1.msra.mxu0 %v1561
        %1586 = vmatprep.subr.mxu0 0.0
        %1587 = vmatpush1.msra.mxu0 %v1560
        %1588 = vmatprep.subr.mxu0 0.0
        %1589 = vmatpush1.msra.mxu0 %v1559
        %1590 = vmatprep.subr.mxu0 0.0
        %1591 = vmatpush1.msra.mxu0 %v1558
        %1592 = vmatprep.subr.mxu0 0.0
        %1593 = vmatpush1.msra.mxu0 %v1557
        %1594 = vmatprep.subr.mxu0 0.0
        %1595 = vmatpush1.msra.mxu0 %v1556
        %1596 = vmatprep.subr.mxu0 0.0
        %1597 = vmatpush1.msra.mxu0 %v1555
        %1598 = vmatprep.subr.mxu0 0.0
        %1599 = vmatpush1.msra.mxu0 %v1554
        %1600 = vmatprep.subr.mxu0 0.0
        %1601 = vmatpush1.msra.mxu0 %v1553
        %1602 = vmatprep.subr.mxu0 0.0
        %1603 = vmatpush1.msra.mxu0 %v1552
        %1604 = vmatprep.subr.mxu0 0.0
        %1605 = vmatpush1.msra.mxu0 %v1551
        %1606 = vmatprep.subr.mxu0 0.0
        %1607 = vmatpush2.msra.mxu0 0.0
        %1608 = vmatprep.subr.mxu0 0.0
        %1609 = vmatpush2.msra.mxu0 0.0
        %1610 = vmatprep.subr.mxu0 0.0
        %1611 = vmatpush2.msra.mxu0 0.0
        %1612 = vmatprep.subr.mxu0 0.0
        %1613 = vmatpush2.msra.mxu0 0.0
        %1614 = vmatprep.subr.mxu0 0.0
        %1615 = vmatpush2.msra.mxu0 0.0
        %1616 = vmatprep.subr.mxu0 0.0
        %1617 = vmatpush2.msra.mxu0 0.0
        %1618 = vmatprep.subr.mxu0 0.0
        %1619 = vmatpush2.msra.mxu0 0.0
        %1620 = vmatprep.subr.mxu0 0.0
        %1621 = vmatpush2.msra.mxu0 0.0
        %1622 = vmatprep.subr.mxu0 0.0
        %1623 = vmatpush2.msra.mxu0 0.0
        %1624 = vmatprep.subr.mxu0 0.0
        %1625 = vmatpush2.msra.mxu0 0.0
        %1626 = vmatprep.subr.mxu0 0.0
        %1627 = vmatpush2.msra.mxu0 0.0
        %1628 = vmatprep.subr.mxu0 0.0
        %1629 = vmatpush2.msra.mxu0 0.0
        %1630 = vmatprep.subr.mxu0 0.0
        %1631 = vmatpush2.msra.mxu0 0.0
        %1632 = vmatprep.subr.mxu0 0.0
        %1633 = vmatpush2.msra.mxu0 0.0
        %1634 = vmatprep.subr.mxu0 0.0
        %1635 = vmatpush2.msra.mxu0 0.0
        %1636 = vmatprep.subr.mxu0 0.0
        %1637 = vmatpush2.msra.mxu0 0.0
        %1638 = vmatprep.mubr.f32.mxu0 0.0
        %1639 = vmatmul.mubr.f32.gmra.mxu0 %v1535
        %v1640 = vpop.f32.mrf.mxu0
        %v1641 = vadd.f32 %v1572, %v1640
        %v1642 = vpop.f32.mrf.mxu0
        %1643 = vmatprep.mubr.f32.mxu0 0.0
        %1644 = vmatmul.mubr.f32.gmra.mxu0 %v1536
        %v1645 = vpop.f32.mrf.mxu0
        %v1646 = vadd.f32 %v1572, %v1645
        %v1647 = vpop.f32.mrf.mxu0
        %1648 = vmatprep.mubr.f32.mxu0 0.0
        %1649 = vmatmul.mubr.f32.gmra.mxu0 %v1537
        %v1650 = vpop.f32.mrf.mxu0
        %v1651 = vadd.f32 %v1572, %v1650
        %v1652 = vpop.f32.mrf.mxu0
        %1653 = vmatprep.mubr.f32.mxu0 0.0
        %1654 = vmatmul.mubr.f32.gmra.mxu0 %v1538
        %v1655 = vpop.f32.mrf.mxu0
        %v1656 = vadd.f32 %v1572, %v1655
        %v1657 = vpop.f32.mrf.mxu0
        %1658 = vmatprep.mubr.f32.mxu0 0.0
        %1659 = vmatmul.mubr.f32.gmra.mxu0 %v1539
        %v1660 = vpop.f32.mrf.mxu0
        %v1661 = vadd.f32 %v1572, %v1660
        %v1662 = vpop.f32.mrf.mxu0
        %1663 = vmatprep.mubr.f32.mxu0 0.0
        %1664 = vmatmul.mubr.f32.gmra.mxu0 %v1540
        %v1665 = vpop.f32.mrf.mxu0
        %v1666 = vadd.f32 %v1572, %v1665
        %v1667 = vpop.f32.mrf.mxu0
        %1668 = vmatprep.mubr.f32.mxu0 0.0
        %1669 = vmatmul.mubr.f32.gmra.mxu0 %v1541
        %v1670 = vpop.f32.mrf.mxu0
        %v1671 = vadd.f32 %v1572, %v1670
        %v1672 = vpop.f32.mrf.mxu0
        %1673 = vmatprep.mubr.f32.mxu0 0.0
        %1674 = vmatmul.mubr.f32.gmra.mxu0 %v1542
        %v1675 = vpop.f32.mrf.mxu0
        %v1676 = vadd.f32 %v1572, %v1675
        %v1677 = vpop.f32.mrf.mxu0
        %1678 = vmatprep.mubr.f32.mxu0 0.0
        %1679 = vmatmul.mubr.f32.gmra.mxu0 %v1543
        %v1680 = vpop.f32.mrf.mxu0
        %v1681 = vadd.f32 %v1572, %v1680
        %v1682 = vpop.f32.mrf.mxu0
        %1683 = vmatprep.mubr.f32.mxu0 0.0
        %1684 = vmatmul.mubr.f32.gmra.mxu0 %v1544
        %v1685 = vpop.f32.mrf.mxu0
        %v1686 = vadd.f32 %v1572, %v1685
        %v1687 = vpop.f32.mrf.mxu0
        %1688 = vmatprep.mubr.f32.mxu0 0.0
        %1689 = vmatmul.mubr.f32.gmra.mxu0 %v1545
        %v1690 = vpop.f32.mrf.mxu0
        %v1691 = vadd.f32 %v1572, %v1690
        %v1692 = vpop.f32.mrf.mxu0
        %1693 = vmatprep.mubr.f32.mxu0 0.0
        %1694 = vmatmul.mubr.f32.gmra.mxu0 %v1546
        %v1695 = vpop.f32.mrf.mxu0
        %v1696 = vadd.f32 %v1572, %v1695
        %v1697 = vpop.f32.mrf.mxu0
        %1698 = vmatprep.mubr.f32.mxu0 0.0
        %1699 = vmatmul.mubr.f32.gmra.mxu0 %v1547
        %v1700 = vpop.f32.mrf.mxu0
        %v1701 = vadd.f32 %v1572, %v1700
        %v1702 = vpop.f32.mrf.mxu0
        %1703 = vmatprep.mubr.f32.mxu0 0.0
        %1704 = vmatmul.mubr.f32.gmra.mxu0 %v1548
        %v1705 = vpop.f32.mrf.mxu0
        %v1706 = vadd.f32 %v1572, %v1705
        %v1707 = vpop.f32.mrf.mxu0
        %1708 = vmatprep.mubr.f32.mxu0 0.0
        %1709 = vmatmul.mubr.f32.gmra.mxu0 %v1549
        %v1710 = vpop.f32.mrf.mxu0
        %v1711 = vadd.f32 %v1572, %v1710
        %v1712 = vpop.f32.mrf.mxu0
        %1713 = vmatprep.mubr.f32.mxu0 0.0
        %1714 = vmatmul.mubr.f32.gmra.mxu0 %v1550
        %v1715 = vpop.f32.mrf.mxu0
        %v1716 = vadd.f32 %v1572, %v1715
        %v1717 = vpop.f32.mrf.mxu0
        %1718 = vdwg.mxu0
        %v1719 = vld [vmem:[%s314 + $0x2] sm:$0x1]
        %v1720 = vlaneseq
        %v1721 = vshrl.u32 %v1720, 7
        %v1722 = vsub.s32 0, %v1721
        %v1723 = vrot.slane %v1719, %v1722
        %vm1724 = vcmp.eq.s32.totalorder %v592, %v1723
        %vm1725 = vcmp.eq.s32.totalorder %v595, %v1723
        %vm1726 = vcmp.eq.s32.totalorder %v598, %v1723
        %vm1727 = vcmp.eq.s32.totalorder %v601, %v1723
        %vm1728 = vcmp.eq.s32.totalorder %v604, %v1723
        %vm1729 = vcmp.eq.s32.totalorder %v607, %v1723
        %vm1730 = vcmp.eq.s32.totalorder %v610, %v1723
        %vm1731 = vcmp.eq.s32.totalorder %v613, %v1723
        %vm1732 = vcmp.eq.s32.totalorder %v616, %v1723
        %vm1733 = vcmp.eq.s32.totalorder %v619, %v1723
        %vm1734 = vcmp.eq.s32.totalorder %v622, %v1723
        %vm1735 = vcmp.eq.s32.totalorder %v625, %v1723
        %vm1736 = vcmp.eq.s32.totalorder %v628, %v1723
        %vm1737 = vcmp.eq.s32.totalorder %v631, %v1723
        %vm1738 = vcmp.eq.s32.totalorder %v634, %v1723
        %vm1739 = vcmp.eq.s32.totalorder %v637, %v1723
        %v1740 = vld [vmem:[#allocation2] sm:$0xff]
        %v1741 = vld [vmem:[#allocation2 + $0x8] sm:$0xff]
        %v1742 = vld [vmem:[#allocation2 + $0x10] sm:$0xff]
        %v1743 = vld [vmem:[#allocation2 + $0x18] sm:$0xff]
        %v1744 = vld [vmem:[#allocation2 + $0x20] sm:$0xff]
        %v1745 = vld [vmem:[#allocation2 + $0x28] sm:$0xff]
        %v1746 = vld [vmem:[#allocation2 + $0x30] sm:$0xff]
        %v1747 = vld [vmem:[#allocation2 + $0x38] sm:$0xff]
        %v1748 = vld [vmem:[#allocation2 + $0x40] sm:$0xff]
        %v1749 = vld [vmem:[#allocation2 + $0x48] sm:$0xff]
        %v1750 = vld [vmem:[#allocation2 + $0x50] sm:$0xff]
        %v1751 = vld [vmem:[#allocation2 + $0x58] sm:$0xff]
        %v1752 = vld [vmem:[#allocation2 + $0x60] sm:$0xff]
        %v1753 = vld [vmem:[#allocation2 + $0x68] sm:$0xff]
        %v1754 = vld [vmem:[#allocation2 + $0x70] sm:$0xff]
        %v1755 = vld [vmem:[#allocation2 + $0x78] sm:$0xff]
        %v1756 = vmax.f32 %v1740, %v1641
        %v1757 = vmax.f32 %v1741, %v1646
        %v1758 = vmax.f32 %v1742, %v1651
        %v1759 = vmax.f32 %v1743, %v1656
        %v1760 = vmax.f32 %v1744, %v1661
        %v1761 = vmax.f32 %v1745, %v1666
        %v1762 = vmax.f32 %v1746, %v1671
        %v1763 = vmax.f32 %v1747, %v1676
        %v1764 = vmax.f32 %v1748, %v1681
        %v1765 = vmax.f32 %v1749, %v1686
        %v1766 = vmax.f32 %v1750, %v1691
        %v1767 = vmax.f32 %v1751, %v1696
        %v1768 = vmax.f32 %v1752, %v1701
        %v1769 = vmax.f32 %v1753, %v1706
        %v1770 = vmax.f32 %v1754, %v1711
        %v1771 = vmax.f32 %v1755, %v1716
        %v1772 = vld [vmem:[#allocation3] sm:$0xff]
        %v1773 = vld [vmem:[#allocation3 + $0x8] sm:$0xff]
        %v1774 = vld [vmem:[#allocation3 + $0x10] sm:$0xff]
        %v1775 = vld [vmem:[#allocation3 + $0x18] sm:$0xff]
        %v1776 = vld [vmem:[#allocation3 + $0x20] sm:$0xff]
        %v1777 = vld [vmem:[#allocation3 + $0x28] sm:$0xff]
        %v1778 = vld [vmem:[#allocation3 + $0x30] sm:$0xff]
        %v1779 = vld [vmem:[#allocation3 + $0x38] sm:$0xff]
        %v1780 = vld [vmem:[#allocation3 + $0x40] sm:$0xff]
        %v1781 = vld [vmem:[#allocation3 + $0x48] sm:$0xff]
        %v1782 = vld [vmem:[#allocation3 + $0x50] sm:$0xff]
        %v1783 = vld [vmem:[#allocation3 + $0x58] sm:$0xff]
        %v1784 = vld [vmem:[#allocation3 + $0x60] sm:$0xff]
        %v1785 = vld [vmem:[#allocation3 + $0x68] sm:$0xff]
        %v1786 = vld [vmem:[#allocation3 + $0x70] sm:$0xff]
        %v1787 = vld [vmem:[#allocation3 + $0x78] sm:$0xff]
        %v1788 = vsub.f32 %v1740, %v1756
        %v1789 = vsub.f32 %v1741, %v1757
        %v1790 = vsub.f32 %v1742, %v1758
        %v1791 = vsub.f32 %v1743, %v1759
        %v1792 = vsub.f32 %v1744, %v1760
        %v1793 = vsub.f32 %v1745, %v1761
        %v1794 = vsub.f32 %v1746, %v1762
        %v1795 = vsub.f32 %v1747, %v1763
        %v1796 = vsub.f32 %v1748, %v1764
        %v1797 = vsub.f32 %v1749, %v1765
        %v1798 = vsub.f32 %v1750, %v1766
        %v1799 = vsub.f32 %v1751, %v1767
        %v1800 = vsub.f32 %v1752, %v1768
        %v1801 = vsub.f32 %v1753, %v1769
        %v1802 = vsub.f32 %v1754, %v1770
        %v1803 = vsub.f32 %v1755, %v1771
        %v1804 = vmul.f32 %v1788, 1.442695
        %v1805 = vpow.pop %v1804
        %v1806 = vmul.f32 %v1789, 1.442695
        %v1807 = vpow.pop %v1806
        %v1808 = vmul.f32 %v1790, 1.442695
        %v1809 = vpow.pop %v1808
        %v1810 = vmul.f32 %v1791, 1.442695
        %v1811 = vpow.pop %v1810
        %v1812 = vmul.f32 %v1792, 1.442695
        %v1813 = vpow.pop %v1812
        %v1814 = vmul.f32 %v1793, 1.442695
        %v1815 = vpow.pop %v1814
        %v1816 = vmul.f32 %v1794, 1.442695
        %v1817 = vpow.pop %v1816
        %v1818 = vmul.f32 %v1795, 1.442695
        %v1819 = vpow.pop %v1818
        %v1820 = vmul.f32 %v1796, 1.442695
        %v1821 = vpow.pop %v1820
        %v1822 = vmul.f32 %v1797, 1.442695
        %v1823 = vpow.pop %v1822
        %v1824 = vmul.f32 %v1798, 1.442695
        %v1825 = vpow.pop %v1824
        %v1826 = vmul.f32 %v1799, 1.442695
        %v1827 = vpow.pop %v1826
        %v1828 = vmul.f32 %v1800, 1.442695
        %v1829 = vpow.pop %v1828
        %v1830 = vmul.f32 %v1801, 1.442695
        %v1831 = vpow.pop %v1830
        %v1832 = vmul.f32 %v1802, 1.442695
        %v1833 = vpow.pop %v1832
        %v1834 = vmul.f32 %v1803, 1.442695
        %v1835 = vpow.pop %v1834
        %v1836 = vmul.f32 %v1772, %v1805
        %v1837 = vmul.f32 %v1773, %v1807
        %v1838 = vmul.f32 %v1774, %v1809
        %v1839 = vmul.f32 %v1775, %v1811
        %v1840 = vmul.f32 %v1776, %v1813
        %v1841 = vmul.f32 %v1777, %v1815
        %v1842 = vmul.f32 %v1778, %v1817
        %v1843 = vmul.f32 %v1779, %v1819
        %v1844 = vmul.f32 %v1780, %v1821
        %v1845 = vmul.f32 %v1781, %v1823
        %v1846 = vmul.f32 %v1782, %v1825
        %v1847 = vmul.f32 %v1783, %v1827
        %v1848 = vmul.f32 %v1784, %v1829
        %v1849 = vmul.f32 %v1785, %v1831
        %v1850 = vmul.f32 %v1786, %v1833
        %v1851 = vmul.f32 %v1787, %v1835
        %v1852 = vsub.f32 %v1641, %v1756
        %v1853 = vsub.f32 %v1646, %v1757
        %v1854 = vsub.f32 %v1651, %v1758
        %v1855 = vsub.f32 %v1656, %v1759
        %v1856 = vsub.f32 %v1661, %v1760
        %v1857 = vsub.f32 %v1666, %v1761
        %v1858 = vsub.f32 %v1671, %v1762
        %v1859 = vsub.f32 %v1676, %v1763
        %v1860 = vsub.f32 %v1681, %v1764
        %v1861 = vsub.f32 %v1686, %v1765
        %v1862 = vsub.f32 %v1691, %v1766
        %v1863 = vsub.f32 %v1696, %v1767
        %v1864 = vsub.f32 %v1701, %v1768
        %v1865 = vsub.f32 %v1706, %v1769
        %v1866 = vsub.f32 %v1711, %v1770
        %v1867 = vsub.f32 %v1716, %v1771
        %v1868 = vmul.f32 %v1852, 1.442695
        %v1869 = vpow.pop %v1868
        %v1870 = vmul.f32 %v1853, 1.442695
        %v1871 = vpow.pop %v1870
        %v1872 = vmul.f32 %v1854, 1.442695
        %v1873 = vpow.pop %v1872
        %v1874 = vmul.f32 %v1855, 1.442695
        %v1875 = vpow.pop %v1874
        %v1876 = vmul.f32 %v1856, 1.442695
        %v1877 = vpow.pop %v1876
        %v1878 = vmul.f32 %v1857, 1.442695
        %v1879 = vpow.pop %v1878
        %v1880 = vmul.f32 %v1858, 1.442695
        %v1881 = vpow.pop %v1880
        %v1882 = vmul.f32 %v1859, 1.442695
        %v1883 = vpow.pop %v1882
        %v1884 = vmul.f32 %v1860, 1.442695
        %v1885 = vpow.pop %v1884
        %v1886 = vmul.f32 %v1861, 1.442695
        %v1887 = vpow.pop %v1886
        %v1888 = vmul.f32 %v1862, 1.442695
        %v1889 = vpow.pop %v1888
        %v1890 = vmul.f32 %v1863, 1.442695
        %v1891 = vpow.pop %v1890
        %v1892 = vmul.f32 %v1864, 1.442695
        %v1893 = vpow.pop %v1892
        %v1894 = vmul.f32 %v1865, 1.442695
        %v1895 = vpow.pop %v1894
        %v1896 = vmul.f32 %v1866, 1.442695
        %v1897 = vpow.pop %v1896
        %v1898 = vmul.f32 %v1867, 1.442695
        %v1899 = vpow.pop %v1898
        %v1900 = vadd.f32 %v1836, %v1869
        %v1901 = vadd.f32 %v1837, %v1871
        %v1902 = vadd.f32 %v1838, %v1873
        %v1903 = vadd.f32 %v1839, %v1875
        %v1904 = vadd.f32 %v1840, %v1877
        %v1905 = vadd.f32 %v1841, %v1879
        %v1906 = vadd.f32 %v1842, %v1881
        %v1907 = vadd.f32 %v1843, %v1883
        %v1908 = vadd.f32 %v1844, %v1885
        %v1909 = vadd.f32 %v1845, %v1887
        %v1910 = vadd.f32 %v1846, %v1889
        %v1911 = vadd.f32 %v1847, %v1891
        %v1912 = vadd.f32 %v1848, %v1893
        %v1913 = vadd.f32 %v1849, %v1895
        %v1914 = vadd.f32 %v1850, %v1897
        %v1915 = vadd.f32 %v1851, %v1899
        %1916 = vst [vmem:[#allocation3] sm:$0xff] %v1900
        %1917 = vst [vmem:[#allocation3 + $0x8] sm:$0xff] %v1901
        %1918 = vst [vmem:[#allocation3 + $0x10] sm:$0xff] %v1902
        %1919 = vst [vmem:[#allocation3 + $0x18] sm:$0xff] %v1903
        %1920 = vst [vmem:[#allocation3 + $0x20] sm:$0xff] %v1904
        %1921 = vst [vmem:[#allocation3 + $0x28] sm:$0xff] %v1905
        %1922 = vst [vmem:[#allocation3 + $0x30] sm:$0xff] %v1906
        %1923 = vst [vmem:[#allocation3 + $0x38] sm:$0xff] %v1907
        %1924 = vst [vmem:[#allocation3 + $0x40] sm:$0xff] %v1908
        %1925 = vst [vmem:[#allocation3 + $0x48] sm:$0xff] %v1909
        %1926 = vst [vmem:[#allocation3 + $0x50] sm:$0xff] %v1910
        %1927 = vst [vmem:[#allocation3 + $0x58] sm:$0xff] %v1911
        %1928 = vst [vmem:[#allocation3 + $0x60] sm:$0xff] %v1912
        %1929 = vst [vmem:[#allocation3 + $0x68] sm:$0xff] %v1913
        %1930 = vst [vmem:[#allocation3 + $0x70] sm:$0xff] %v1914
        %1931 = vst [vmem:[#allocation3 + $0x78] sm:$0xff] %v1915
        %1932 = vst [vmem:[#allocation2] sm:$0xff] %v1756
        %1933 = vst [vmem:[#allocation2 + $0x8] sm:$0xff] %v1757
        %1934 = vst [vmem:[#allocation2 + $0x10] sm:$0xff] %v1758
        %1935 = vst [vmem:[#allocation2 + $0x18] sm:$0xff] %v1759
        %1936 = vst [vmem:[#allocation2 + $0x20] sm:$0xff] %v1760
        %1937 = vst [vmem:[#allocation2 + $0x28] sm:$0xff] %v1761
        %1938 = vst [vmem:[#allocation2 + $0x30] sm:$0xff] %v1762
        %1939 = vst [vmem:[#allocation2 + $0x38] sm:$0xff] %v1763
        %1940 = vst [vmem:[#allocation2 + $0x40] sm:$0xff] %v1764
        %1941 = vst [vmem:[#allocation2 + $0x48] sm:$0xff] %v1765
        %1942 = vst [vmem:[#allocation2 + $0x50] sm:$0xff] %v1766
        %1943 = vst [vmem:[#allocation2 + $0x58] sm:$0xff] %v1767
        %1944 = vst [vmem:[#allocation2 + $0x60] sm:$0xff] %v1768
        %1945 = vst [vmem:[#allocation2 + $0x68] sm:$0xff] %v1769
        %1946 = vst [vmem:[#allocation2 + $0x70] sm:$0xff] %v1770
        %1947 = vst [vmem:[#allocation2 + $0x78] sm:$0xff] %v1771
        %v1948 = vld [vmem:[#allocation4] sm:$0xff]
        %v1949 = vld [vmem:[#allocation4 + $0x8] sm:$0xff]
        %v1950 = vld [vmem:[#allocation4 + $0x10] sm:$0xff]
        %v1951 = vld [vmem:[#allocation4 + $0x18] sm:$0xff]
        %v1952 = vld [vmem:[#allocation4 + $0x20] sm:$0xff]
        %v1953 = vld [vmem:[#allocation4 + $0x28] sm:$0xff]
        %v1954 = vld [vmem:[#allocation4 + $0x30] sm:$0xff]
        %v1955 = vld [vmem:[#allocation4 + $0x38] sm:$0xff]
        %v1956 = vld [vmem:[#allocation4 + $0x40] sm:$0xff]
        %v1957 = vld [vmem:[#allocation4 + $0x48] sm:$0xff]
        %v1958 = vld [vmem:[#allocation4 + $0x50] sm:$0xff]
        %v1959 = vld [vmem:[#allocation4 + $0x58] sm:$0xff]
        %v1960 = vld [vmem:[#allocation4 + $0x60] sm:$0xff]
        %v1961 = vld [vmem:[#allocation4 + $0x68] sm:$0xff]
        %v1962 = vld [vmem:[#allocation4 + $0x70] sm:$0xff]
        %v1963 = vld [vmem:[#allocation4 + $0x78] sm:$0xff]
        %v1964 = vsel %vm1724, %v1641, 0.0
        %v1965 = vsel %vm1725, %v1646, 0.0
        %v1966 = vsel %vm1726, %v1651, 0.0
        %v1967 = vsel %vm1727, %v1656, 0.0
        %v1968 = vsel %vm1728, %v1661, 0.0
        %v1969 = vsel %vm1729, %v1666, 0.0
        %v1970 = vsel %vm1730, %v1671, 0.0
        %v1971 = vsel %vm1731, %v1676, 0.0
        %v1972 = vsel %vm1732, %v1681, 0.0
        %v1973 = vsel %vm1733, %v1686, 0.0
        %v1974 = vsel %vm1734, %v1691, 0.0
        %v1975 = vsel %vm1735, %v1696, 0.0
        %v1976 = vsel %vm1736, %v1701, 0.0
        %v1977 = vsel %vm1737, %v1706, 0.0
        %v1978 = vsel %vm1738, %v1711, 0.0
        %v1979 = vsel %vm1739, %v1716, 0.0
        %v1980 = vadd.f32 %v1948, %v1964
        %v1981 = vadd.f32 %v1949, %v1965
        %v1982 = vadd.f32 %v1950, %v1966
        %v1983 = vadd.f32 %v1951, %v1967
        %v1984 = vadd.f32 %v1952, %v1968
        %v1985 = vadd.f32 %v1953, %v1969
        %v1986 = vadd.f32 %v1954, %v1970
        %v1987 = vadd.f32 %v1955, %v1971
        %v1988 = vadd.f32 %v1956, %v1972
        %v1989 = vadd.f32 %v1957, %v1973
        %v1990 = vadd.f32 %v1958, %v1974
        %v1991 = vadd.f32 %v1959, %v1975
        %v1992 = vadd.f32 %v1960, %v1976
        %v1993 = vadd.f32 %v1961, %v1977
        %v1994 = vadd.f32 %v1962, %v1978
        %v1995 = vadd.f32 %v1963, %v1979
        %1996 = vst [vmem:[#allocation4] sm:$0xff] %v1980
        %1997 = vst [vmem:[#allocation4 + $0x8] sm:$0xff] %v1981
        %1998 = vst [vmem:[#allocation4 + $0x10] sm:$0xff] %v1982
        %1999 = vst [vmem:[#allocation4 + $0x18] sm:$0xff] %v1983
        %2000 = vst [vmem:[#allocation4 + $0x20] sm:$0xff] %v1984
        %2001 = vst [vmem:[#allocation4 + $0x28] sm:$0xff] %v1985
        %2002 = vst [vmem:[#allocation4 + $0x30] sm:$0xff] %v1986
        %2003 = vst [vmem:[#allocation4 + $0x38] sm:$0xff] %v1987
        %2004 = vst [vmem:[#allocation4 + $0x40] sm:$0xff] %v1988
        %2005 = vst [vmem:[#allocation4 + $0x48] sm:$0xff] %v1989
        %2006 = vst [vmem:[#allocation4 + $0x50] sm:$0xff] %v1990
        %2007 = vst [vmem:[#allocation4 + $0x58] sm:$0xff] %v1991
        %2008 = vst [vmem:[#allocation4 + $0x60] sm:$0xff] %v1992
        %2009 = vst [vmem:[#allocation4 + $0x68] sm:$0xff] %v1993
        %2010 = vst [vmem:[#allocation4 + $0x70] sm:$0xff] %v1994
        %2011 = vst [vmem:[#allocation4 + $0x78] sm:$0xff] %v1995
        %v2012 = vld [vmem:[#allocation5] sm:$0xff]
        %v2013 = vld [vmem:[#allocation5 + $0x8] sm:$0xff]
        %v2014 = vld [vmem:[#allocation5 + $0x10] sm:$0xff]
        %v2015 = vld [vmem:[#allocation5 + $0x18] sm:$0xff]
        %v2016 = vld [vmem:[#allocation5 + $0x20] sm:$0xff]
        %v2017 = vld [vmem:[#allocation5 + $0x28] sm:$0xff]
        %v2018 = vld [vmem:[#allocation5 + $0x30] sm:$0xff]
        %v2019 = vld [vmem:[#allocation5 + $0x38] sm:$0xff]
        %v2020 = vld [vmem:[#allocation5 + $0x40] sm:$0xff]
        %v2021 = vld [vmem:[#allocation5 + $0x48] sm:$0xff]
        %v2022 = vld [vmem:[#allocation5 + $0x50] sm:$0xff]
        %v2023 = vld [vmem:[#allocation5 + $0x58] sm:$0xff]
        %v2024 = vld [vmem:[#allocation5 + $0x60] sm:$0xff]
        %v2025 = vld [vmem:[#allocation5 + $0x68] sm:$0xff]
        %v2026 = vld [vmem:[#allocation5 + $0x70] sm:$0xff]
        %v2027 = vld [vmem:[#allocation5 + $0x78] sm:$0xff]
        %v2028 = vsel %vm1724, 1.0, 0.0
        %v2029 = vsel %vm1725, 1.0, 0.0
        %v2030 = vsel %vm1726, 1.0, 0.0
        %v2031 = vsel %vm1727, 1.0, 0.0
        %v2032 = vsel %vm1728, 1.0, 0.0
        %v2033 = vsel %vm1729, 1.0, 0.0
        %v2034 = vsel %vm1730, 1.0, 0.0
        %v2035 = vsel %vm1731, 1.0, 0.0
        %v2036 = vsel %vm1732, 1.0, 0.0
        %v2037 = vsel %vm1733, 1.0, 0.0
        %v2038 = vsel %vm1734, 1.0, 0.0
        %v2039 = vsel %vm1735, 1.0, 0.0
        %v2040 = vsel %vm1736, 1.0, 0.0
        %v2041 = vsel %vm1737, 1.0, 0.0
        %v2042 = vsel %vm1738, 1.0, 0.0
        %v2043 = vsel %vm1739, 1.0, 0.0
        %v2044 = vadd.f32 %v2012, %v2028
        %v2045 = vadd.f32 %v2013, %v2029
        %v2046 = vadd.f32 %v2014, %v2030
        %v2047 = vadd.f32 %v2015, %v2031
        %v2048 = vadd.f32 %v2016, %v2032
        %v2049 = vadd.f32 %v2017, %v2033
        %v2050 = vadd.f32 %v2018, %v2034
        %v2051 = vadd.f32 %v2019, %v2035
        %v2052 = vadd.f32 %v2020, %v2036
        %v2053 = vadd.f32 %v2021, %v2037
        %v2054 = vadd.f32 %v2022, %v2038
        %v2055 = vadd.f32 %v2023, %v2039
        %v2056 = vadd.f32 %v2024, %v2040
        %v2057 = vadd.f32 %v2025, %v2041
        %v2058 = vadd.f32 %v2026, %v2042
        %v2059 = vadd.f32 %v2027, %v2043
        %2060 = vst [vmem:[#allocation5] sm:$0xff] %v2044
        %2061 = vst [vmem:[#allocation5 + $0x8] sm:$0xff] %v2045
        %2062 = vst [vmem:[#allocation5 + $0x10] sm:$0xff] %v2046
        %2063 = vst [vmem:[#allocation5 + $0x18] sm:$0xff] %v2047
        %2064 = vst [vmem:[#allocation5 + $0x20] sm:$0xff] %v2048
        %2065 = vst [vmem:[#allocation5 + $0x28] sm:$0xff] %v2049
        %2066 = vst [vmem:[#allocation5 + $0x30] sm:$0xff] %v2050
        %2067 = vst [vmem:[#allocation5 + $0x38] sm:$0xff] %v2051
        %2068 = vst [vmem:[#allocation5 + $0x40] sm:$0xff] %v2052
        %2069 = vst [vmem:[#allocation5 + $0x48] sm:$0xff] %v2053
        %2070 = vst [vmem:[#allocation5 + $0x50] sm:$0xff] %v2054
        %2071 = vst [vmem:[#allocation5 + $0x58] sm:$0xff] %v2055
        %2072 = vst [vmem:[#allocation5 + $0x60] sm:$0xff] %v2056
        %2073 = vst [vmem:[#allocation5 + $0x68] sm:$0xff] %v2057
        %2074 = vst [vmem:[#allocation5 + $0x70] sm:$0xff] %v2058
        %2075 = vst [vmem:[#allocation5 + $0x78] sm:$0xff] %v2059
        %v2076 = vld [vmem:[%s302] sm:$0xff]
        %v2077 = vld [vmem:[%s302 + $0x8] sm:$0xff]
        %v2078 = vld [vmem:[%s302 + $0x10] sm:$0xff]
        %v2079 = vld [vmem:[%s302 + $0x18] sm:$0xff]
        %v2080 = vld [vmem:[%s302 + $0x20] sm:$0xff]
        %v2081 = vld [vmem:[%s302 + $0x28] sm:$0xff]
        %v2082 = vld [vmem:[%s302 + $0x30] sm:$0xff]
        %v2083 = vld [vmem:[%s302 + $0x38] sm:$0xff]
        %v2084 = vld [vmem:[%s302 + $0x40] sm:$0xff]
        %v2085 = vld [vmem:[%s302 + $0x48] sm:$0xff]
        %v2086 = vld [vmem:[%s302 + $0x50] sm:$0xff]
        %v2087 = vld [vmem:[%s302 + $0x58] sm:$0xff]
        %v2088 = vld [vmem:[%s302 + $0x60] sm:$0xff]
        %v2089 = vld [vmem:[%s302 + $0x68] sm:$0xff]
        %v2090 = vld [vmem:[%s302 + $0x70] sm:$0xff]
        %v2091 = vld [vmem:[%s302 + $0x78] sm:$0xff]
        %v2092 = vld [vmem:[#allocation6 + $0x18] sm:$0xff]
        %v2093 = vld [vmem:[#allocation6 + $0x38] sm:$0xff]
        %v2094 = vld [vmem:[#allocation6 + $0x58] sm:$0xff]
        %v2095 = vld [vmem:[#allocation6 + $0x78] sm:$0xff]
        %v2096 = vld [vmem:[#allocation6 + $0x98] sm:$0xff]
        %v2097 = vld [vmem:[#allocation6 + $0xb8] sm:$0xff]
        %v2098 = vld [vmem:[#allocation6 + $0xd8] sm:$0xff]
        %v2099 = vld [vmem:[#allocation6 + $0xf8] sm:$0xff]
        %v2100 = vld [vmem:[#allocation6 + $0x118] sm:$0xff]
        %v2101 = vld [vmem:[#allocation6 + $0x138] sm:$0xff]
        %v2102 = vld [vmem:[#allocation6 + $0x158] sm:$0xff]
        %v2103 = vld [vmem:[#allocation6 + $0x178] sm:$0xff]
        %v2104 = vld [vmem:[#allocation6 + $0x198] sm:$0xff]
        %v2105 = vld [vmem:[#allocation6 + $0x1b8] sm:$0xff]
        %v2106 = vld [vmem:[#allocation6 + $0x1d8] sm:$0xff]
        %v2107 = vld [vmem:[#allocation6 + $0x1f8] sm:$0xff]
        %v2108 = vld [vmem:[%s319 + $0x3] sm:$0x1]
        %v2110 = vlaneseq
        %v2111 = vshrl.u32 %v2110, 7
        %v2112 = vsub.s32 0, %v2111
        %v2113 = vrot.slane %v2108, %v2112
        %2115 = vmatprep.subr.mxu0 0.0
        %2116 = vmatpush1.msra.mxu0 %v2107
        %2117 = vmatprep.subr.mxu0 0.0
        %2118 = vmatpush1.msra.mxu0 %v2106
        %2119 = vmatprep.subr.mxu0 0.0
        %2120 = vmatpush1.msra.mxu0 %v2105
        %2121 = vmatprep.subr.mxu0 0.0
        %2122 = vmatpush1.msra.mxu0 %v2104
        %2123 = vmatprep.subr.mxu0 0.0
        %2124 = vmatpush1.msra.mxu0 %v2103
        %2125 = vmatprep.subr.mxu0 0.0
        %2126 = vmatpush1.msra.mxu0 %v2102
        %2127 = vmatprep.subr.mxu0 0.0
        %2128 = vmatpush1.msra.mxu0 %v2101
        %2129 = vmatprep.subr.mxu0 0.0
        %2130 = vmatpush1.msra.mxu0 %v2100
        %2131 = vmatprep.subr.mxu0 0.0
        %2132 = vmatpush1.msra.mxu0 %v2099
        %2133 = vmatprep.subr.mxu0 0.0
        %2134 = vmatpush1.msra.mxu0 %v2098
        %2135 = vmatprep.subr.mxu0 0.0
        %2136 = vmatpush1.msra.mxu0 %v2097
        %2137 = vmatprep.subr.mxu0 0.0
        %2138 = vmatpush1.msra.mxu0 %v2096
        %2139 = vmatprep.subr.mxu0 0.0
        %2140 = vmatpush1.msra.mxu0 %v2095
        %2141 = vmatprep.subr.mxu0 0.0
        %2142 = vmatpush1.msra.mxu0 %v2094
        %2143 = vmatprep.subr.mxu0 0.0
        %2144 = vmatpush1.msra.mxu0 %v2093
        %2145 = vmatprep.subr.mxu0 0.0
        %2146 = vmatpush1.msra.mxu0 %v2092
        %2147 = vmatprep.subr.mxu0 0.0
        %2148 = vmatpush2.msra.mxu0 0.0
        %2149 = vmatprep.subr.mxu0 0.0
        %2150 = vmatpush2.msra.mxu0 0.0
        %2151 = vmatprep.subr.mxu0 0.0
        %2152 = vmatpush2.msra.mxu0 0.0
        %2153 = vmatprep.subr.mxu0 0.0
        %2154 = vmatpush2.msra.mxu0 0.0
        %2155 = vmatprep.subr.mxu0 0.0
        %2156 = vmatpush2.msra.mxu0 0.0
        %2157 = vmatprep.subr.mxu0 0.0
        %2158 = vmatpush2.msra.mxu0 0.0
        %2159 = vmatprep.subr.mxu0 0.0
        %2160 = vmatpush2.msra.mxu0 0.0
        %2161 = vmatprep.subr.mxu0 0.0
        %2162 = vmatpush2.msra.mxu0 0.0
        %2163 = vmatprep.subr.mxu0 0.0
        %2164 = vmatpush2.msra.mxu0 0.0
        %2165 = vmatprep.subr.mxu0 0.0
        %2166 = vmatpush2.msra.mxu0 0.0
        %2167 = vmatprep.subr.mxu0 0.0
        %2168 = vmatpush2.msra.mxu0 0.0
        %2169 = vmatprep.subr.mxu0 0.0
        %2170 = vmatpush2.msra.mxu0 0.0
        %2171 = vmatprep.subr.mxu0 0.0
        %2172 = vmatpush2.msra.mxu0 0.0
        %2173 = vmatprep.subr.mxu0 0.0
        %2174 = vmatpush2.msra.mxu0 0.0
        %2175 = vmatprep.subr.mxu0 0.0
        %2176 = vmatpush2.msra.mxu0 0.0
        %2177 = vmatprep.subr.mxu0 0.0
        %2178 = vmatpush2.msra.mxu0 0.0
        %2179 = vmatprep.mubr.f32.mxu0 0.0
        %2180 = vmatmul.mubr.f32.gmra.mxu0 %v2076
        %v2181 = vpop.f32.mrf.mxu0
        %v2182 = vadd.f32 %v2113, %v2181
        %v2183 = vpop.f32.mrf.mxu0
        %2184 = vmatprep.mubr.f32.mxu0 0.0
        %2185 = vmatmul.mubr.f32.gmra.mxu0 %v2077
        %v2186 = vpop.f32.mrf.mxu0
        %v2187 = vadd.f32 %v2113, %v2186
        %v2188 = vpop.f32.mrf.mxu0
        %2189 = vmatprep.mubr.f32.mxu0 0.0
        %2190 = vmatmul.mubr.f32.gmra.mxu0 %v2078
        %v2191 = vpop.f32.mrf.mxu0
        %v2192 = vadd.f32 %v2113, %v2191
        %v2193 = vpop.f32.mrf.mxu0
        %2194 = vmatprep.mubr.f32.mxu0 0.0
        %2195 = vmatmul.mubr.f32.gmra.mxu0 %v2079
        %v2196 = vpop.f32.mrf.mxu0
        %v2197 = vadd.f32 %v2113, %v2196
        %v2198 = vpop.f32.mrf.mxu0
        %2199 = vmatprep.mubr.f32.mxu0 0.0
        %2200 = vmatmul.mubr.f32.gmra.mxu0 %v2080
        %v2201 = vpop.f32.mrf.mxu0
        %v2202 = vadd.f32 %v2113, %v2201
        %v2203 = vpop.f32.mrf.mxu0
        %2204 = vmatprep.mubr.f32.mxu0 0.0
        %2205 = vmatmul.mubr.f32.gmra.mxu0 %v2081
        %v2206 = vpop.f32.mrf.mxu0
        %v2207 = vadd.f32 %v2113, %v2206
        %v2208 = vpop.f32.mrf.mxu0
        %2209 = vmatprep.mubr.f32.mxu0 0.0
        %2210 = vmatmul.mubr.f32.gmra.mxu0 %v2082
        %v2211 = vpop.f32.mrf.mxu0
        %v2212 = vadd.f32 %v2113, %v2211
        %v2213 = vpop.f32.mrf.mxu0
        %2214 = vmatprep.mubr.f32.mxu0 0.0
        %2215 = vmatmul.mubr.f32.gmra.mxu0 %v2083
        %v2216 = vpop.f32.mrf.mxu0
        %v2217 = vadd.f32 %v2113, %v2216
        %v2218 = vpop.f32.mrf.mxu0
        %2219 = vmatprep.mubr.f32.mxu0 0.0
        %2220 = vmatmul.mubr.f32.gmra.mxu0 %v2084
        %v2221 = vpop.f32.mrf.mxu0
        %v2222 = vadd.f32 %v2113, %v2221
        %v2223 = vpop.f32.mrf.mxu0
        %2224 = vmatprep.mubr.f32.mxu0 0.0
        %2225 = vmatmul.mubr.f32.gmra.mxu0 %v2085
        %v2226 = vpop.f32.mrf.mxu0
        %v2227 = vadd.f32 %v2113, %v2226
        %v2228 = vpop.f32.mrf.mxu0
        %2229 = vmatprep.mubr.f32.mxu0 0.0
        %2230 = vmatmul.mubr.f32.gmra.mxu0 %v2086
        %v2231 = vpop.f32.mrf.mxu0
        %v2232 = vadd.f32 %v2113, %v2231
        %v2233 = vpop.f32.mrf.mxu0
        %2234 = vmatprep.mubr.f32.mxu0 0.0
        %2235 = vmatmul.mubr.f32.gmra.mxu0 %v2087
        %v2236 = vpop.f32.mrf.mxu0
        %v2237 = vadd.f32 %v2113, %v2236
        %v2238 = vpop.f32.mrf.mxu0
        %2239 = vmatprep.mubr.f32.mxu0 0.0
        %2240 = vmatmul.mubr.f32.gmra.mxu0 %v2088
        %v2241 = vpop.f32.mrf.mxu0
        %v2242 = vadd.f32 %v2113, %v2241
        %v2243 = vpop.f32.mrf.mxu0
        %2244 = vmatprep.mubr.f32.mxu0 0.0
        %2245 = vmatmul.mubr.f32.gmra.mxu0 %v2089
        %v2246 = vpop.f32.mrf.mxu0
        %v2247 = vadd.f32 %v2113, %v2246
        %v2248 = vpop.f32.mrf.mxu0
        %2249 = vmatprep.mubr.f32.mxu0 0.0
        %2250 = vmatmul.mubr.f32.gmra.mxu0 %v2090
        %v2251 = vpop.f32.mrf.mxu0
        %v2252 = vadd.f32 %v2113, %v2251
        %v2253 = vpop.f32.mrf.mxu0
        %2254 = vmatprep.mubr.f32.mxu0 0.0
        %2255 = vmatmul.mubr.f32.gmra.mxu0 %v2091
        %v2256 = vpop.f32.mrf.mxu0
        %v2257 = vadd.f32 %v2113, %v2256
        %v2258 = vpop.f32.mrf.mxu0
        %2259 = vdwg.mxu0
        %v2260 = vld [vmem:[%s314 + $0x3] sm:$0x1]
        %v2261 = vlaneseq
        %v2262 = vshrl.u32 %v2261, 7
        %v2263 = vsub.s32 0, %v2262
        %v2264 = vrot.slane %v2260, %v2263
        %vm2265 = vcmp.eq.s32.totalorder %v592, %v2264
        %vm2266 = vcmp.eq.s32.totalorder %v595, %v2264
        %vm2267 = vcmp.eq.s32.totalorder %v598, %v2264
        %vm2268 = vcmp.eq.s32.totalorder %v601, %v2264
        %vm2269 = vcmp.eq.s32.totalorder %v604, %v2264
        %vm2270 = vcmp.eq.s32.totalorder %v607, %v2264
        %vm2271 = vcmp.eq.s32.totalorder %v610, %v2264
        %vm2272 = vcmp.eq.s32.totalorder %v613, %v2264
        %vm2273 = vcmp.eq.s32.totalorder %v616, %v2264
        %vm2274 = vcmp.eq.s32.totalorder %v619, %v2264
        %vm2275 = vcmp.eq.s32.totalorder %v622, %v2264
        %vm2276 = vcmp.eq.s32.totalorder %v625, %v2264
        %vm2277 = vcmp.eq.s32.totalorder %v628, %v2264
        %vm2278 = vcmp.eq.s32.totalorder %v631, %v2264
        %vm2279 = vcmp.eq.s32.totalorder %v634, %v2264
        %vm2280 = vcmp.eq.s32.totalorder %v637, %v2264
        %v2281 = vld [vmem:[#allocation2] sm:$0xff]
        %v2282 = vld [vmem:[#allocation2 + $0x8] sm:$0xff]
        %v2283 = vld [vmem:[#allocation2 + $0x10] sm:$0xff]
        %v2284 = vld [vmem:[#allocation2 + $0x18] sm:$0xff]
        %v2285 = vld [vmem:[#allocation2 + $0x20] sm:$0xff]
        %v2286 = vld [vmem:[#allocation2 + $0x28] sm:$0xff]
        %v2287 = vld [vmem:[#allocation2 + $0x30] sm:$0xff]
        %v2288 = vld [vmem:[#allocation2 + $0x38] sm:$0xff]
        %v2289 = vld [vmem:[#allocation2 + $0x40] sm:$0xff]
        %v2290 = vld [vmem:[#allocation2 + $0x48] sm:$0xff]
        %v2291 = vld [vmem:[#allocation2 + $0x50] sm:$0xff]
        %v2292 = vld [vmem:[#allocation2 + $0x58] sm:$0xff]
        %v2293 = vld [vmem:[#allocation2 + $0x60] sm:$0xff]
        %v2294 = vld [vmem:[#allocation2 + $0x68] sm:$0xff]
        %v2295 = vld [vmem:[#allocation2 + $0x70] sm:$0xff]
        %v2296 = vld [vmem:[#allocation2 + $0x78] sm:$0xff]
        %v2297 = vmax.f32 %v2281, %v2182
        %v2298 = vmax.f32 %v2282, %v2187
        %v2299 = vmax.f32 %v2283, %v2192
        %v2300 = vmax.f32 %v2284, %v2197
        %v2301 = vmax.f32 %v2285, %v2202
        %v2302 = vmax.f32 %v2286, %v2207
        %v2303 = vmax.f32 %v2287, %v2212
        %v2304 = vmax.f32 %v2288, %v2217
        %v2305 = vmax.f32 %v2289, %v2222
        %v2306 = vmax.f32 %v2290, %v2227
        %v2307 = vmax.f32 %v2291, %v2232
        %v2308 = vmax.f32 %v2292, %v2237
        %v2309 = vmax.f32 %v2293, %v2242
        %v2310 = vmax.f32 %v2294, %v2247
        %v2311 = vmax.f32 %v2295, %v2252
        %v2312 = vmax.f32 %v2296, %v2257
        %v2313 = vld [vmem:[#allocation3] sm:$0xff]
        %v2314 = vld [vmem:[#allocation3 + $0x8] sm:$0xff]
        %v2315 = vld [vmem:[#allocation3 + $0x10] sm:$0xff]
        %v2316 = vld [vmem:[#allocation3 + $0x18] sm:$0xff]
        %v2317 = vld [vmem:[#allocation3 + $0x20] sm:$0xff]
        %v2318 = vld [vmem:[#allocation3 + $0x28] sm:$0xff]
        %v2319 = vld [vmem:[#allocation3 + $0x30] sm:$0xff]
        %v2320 = vld [vmem:[#allocation3 + $0x38] sm:$0xff]
        %v2321 = vld [vmem:[#allocation3 + $0x40] sm:$0xff]
        %v2322 = vld [vmem:[#allocation3 + $0x48] sm:$0xff]
        %v2323 = vld [vmem:[#allocation3 + $0x50] sm:$0xff]
        %v2324 = vld [vmem:[#allocation3 + $0x58] sm:$0xff]
        %v2325 = vld [vmem:[#allocation3 + $0x60] sm:$0xff]
        %v2326 = vld [vmem:[#allocation3 + $0x68] sm:$0xff]
        %v2327 = vld [vmem:[#allocation3 + $0x70] sm:$0xff]
        %v2328 = vld [vmem:[#allocation3 + $0x78] sm:$0xff]
        %v2329 = vsub.f32 %v2281, %v2297
        %v2330 = vsub.f32 %v2282, %v2298
        %v2331 = vsub.f32 %v2283, %v2299
        %v2332 = vsub.f32 %v2284, %v2300
        %v2333 = vsub.f32 %v2285, %v2301
        %v2334 = vsub.f32 %v2286, %v2302
        %v2335 = vsub.f32 %v2287, %v2303
        %v2336 = vsub.f32 %v2288, %v2304
        %v2337 = vsub.f32 %v2289, %v2305
        %v2338 = vsub.f32 %v2290, %v2306
        %v2339 = vsub.f32 %v2291, %v2307
        %v2340 = vsub.f32 %v2292, %v2308
        %v2341 = vsub.f32 %v2293, %v2309
        %v2342 = vsub.f32 %v2294, %v2310
        %v2343 = vsub.f32 %v2295, %v2311
        %v2344 = vsub.f32 %v2296, %v2312
        %v2345 = vmul.f32 %v2329, 1.442695
        %v2346 = vpow.pop %v2345
        %v2347 = vmul.f32 %v2330, 1.442695
        %v2348 = vpow.pop %v2347
        %v2349 = vmul.f32 %v2331, 1.442695
        %v2350 = vpow.pop %v2349
        %v2351 = vmul.f32 %v2332, 1.442695
        %v2352 = vpow.pop %v2351
        %v2353 = vmul.f32 %v2333, 1.442695
        %v2354 = vpow.pop %v2353
        %v2355 = vmul.f32 %v2334, 1.442695
        %v2356 = vpow.pop %v2355
        %v2357 = vmul.f32 %v2335, 1.442695
        %v2358 = vpow.pop %v2357
        %v2359 = vmul.f32 %v2336, 1.442695
        %v2360 = vpow.pop %v2359
        %v2361 = vmul.f32 %v2337, 1.442695
        %v2362 = vpow.pop %v2361
        %v2363 = vmul.f32 %v2338, 1.442695
        %v2364 = vpow.pop %v2363
        %v2365 = vmul.f32 %v2339, 1.442695
        %v2366 = vpow.pop %v2365
        %v2367 = vmul.f32 %v2340, 1.442695
        %v2368 = vpow.pop %v2367
        %v2369 = vmul.f32 %v2341, 1.442695
        %v2370 = vpow.pop %v2369
        %v2371 = vmul.f32 %v2342, 1.442695
        %v2372 = vpow.pop %v2371
        %v2373 = vmul.f32 %v2343, 1.442695
        %v2374 = vpow.pop %v2373
        %v2375 = vmul.f32 %v2344, 1.442695
        %v2376 = vpow.pop %v2375
        %v2377 = vmul.f32 %v2313, %v2346
        %v2378 = vmul.f32 %v2314, %v2348
        %v2379 = vmul.f32 %v2315, %v2350
        %v2380 = vmul.f32 %v2316, %v2352
        %v2381 = vmul.f32 %v2317, %v2354
        %v2382 = vmul.f32 %v2318, %v2356
        %v2383 = vmul.f32 %v2319, %v2358
        %v2384 = vmul.f32 %v2320, %v2360
        %v2385 = vmul.f32 %v2321, %v2362
        %v2386 = vmul.f32 %v2322, %v2364
        %v2387 = vmul.f32 %v2323, %v2366
        %v2388 = vmul.f32 %v2324, %v2368
        %v2389 = vmul.f32 %v2325, %v2370
        %v2390 = vmul.f32 %v2326, %v2372
        %v2391 = vmul.f32 %v2327, %v2374
        %v2392 = vmul.f32 %v2328, %v2376
        %v2393 = vsub.f32 %v2182, %v2297
        %v2394 = vsub.f32 %v2187, %v2298
        %v2395 = vsub.f32 %v2192, %v2299
        %v2396 = vsub.f32 %v2197, %v2300
        %v2397 = vsub.f32 %v2202, %v2301
        %v2398 = vsub.f32 %v2207, %v2302
        %v2399 = vsub.f32 %v2212, %v2303
        %v2400 = vsub.f32 %v2217, %v2304
        %v2401 = vsub.f32 %v2222, %v2305
        %v2402 = vsub.f32 %v2227, %v2306
        %v2403 = vsub.f32 %v2232, %v2307
        %v2404 = vsub.f32 %v2237, %v2308
        %v2405 = vsub.f32 %v2242, %v2309
        %v2406 = vsub.f32 %v2247, %v2310
        %v2407 = vsub.f32 %v2252, %v2311
        %v2408 = vsub.f32 %v2257, %v2312
        %v2409 = vmul.f32 %v2393, 1.442695
        %v2410 = vpow.pop %v2409
        %v2411 = vmul.f32 %v2394, 1.442695
        %v2412 = vpow.pop %v2411
        %v2413 = vmul.f32 %v2395, 1.442695
        %v2414 = vpow.pop %v2413
        %v2415 = vmul.f32 %v2396, 1.442695
        %v2416 = vpow.pop %v2415
        %v2417 = vmul.f32 %v2397, 1.442695
        %v2418 = vpow.pop %v2417
        %v2419 = vmul.f32 %v2398, 1.442695
        %v2420 = vpow.pop %v2419
        %v2421 = vmul.f32 %v2399, 1.442695
        %v2422 = vpow.pop %v2421
        %v2423 = vmul.f32 %v2400, 1.442695
        %v2424 = vpow.pop %v2423
        %v2425 = vmul.f32 %v2401, 1.442695
        %v2426 = vpow.pop %v2425
        %v2427 = vmul.f32 %v2402, 1.442695
        %v2428 = vpow.pop %v2427
        %v2429 = vmul.f32 %v2403, 1.442695
        %v2430 = vpow.pop %v2429
        %v2431 = vmul.f32 %v2404, 1.442695
        %v2432 = vpow.pop %v2431
        %v2433 = vmul.f32 %v2405, 1.442695
        %v2434 = vpow.pop %v2433
        %v2435 = vmul.f32 %v2406, 1.442695
        %v2436 = vpow.pop %v2435
        %v2437 = vmul.f32 %v2407, 1.442695
        %v2438 = vpow.pop %v2437
        %v2439 = vmul.f32 %v2408, 1.442695
        %v2440 = vpow.pop %v2439
        %v2441 = vadd.f32 %v2377, %v2410
        %v2442 = vadd.f32 %v2378, %v2412
        %v2443 = vadd.f32 %v2379, %v2414
        %v2444 = vadd.f32 %v2380, %v2416
        %v2445 = vadd.f32 %v2381, %v2418
        %v2446 = vadd.f32 %v2382, %v2420
        %v2447 = vadd.f32 %v2383, %v2422
        %v2448 = vadd.f32 %v2384, %v2424
        %v2449 = vadd.f32 %v2385, %v2426
        %v2450 = vadd.f32 %v2386, %v2428
        %v2451 = vadd.f32 %v2387, %v2430
        %v2452 = vadd.f32 %v2388, %v2432
        %v2453 = vadd.f32 %v2389, %v2434
        %v2454 = vadd.f32 %v2390, %v2436
        %v2455 = vadd.f32 %v2391, %v2438
        %v2456 = vadd.f32 %v2392, %v2440
        %2457 = vst [vmem:[#allocation3] sm:$0xff] %v2441
        %2458 = vst [vmem:[#allocation3 + $0x8] sm:$0xff] %v2442
        %2459 = vst [vmem:[#allocation3 + $0x10] sm:$0xff] %v2443
        %2460 = vst [vmem:[#allocation3 + $0x18] sm:$0xff] %v2444
        %2461 = vst [vmem:[#allocation3 + $0x20] sm:$0xff] %v2445
        %2462 = vst [vmem:[#allocation3 + $0x28] sm:$0xff] %v2446
        %2463 = vst [vmem:[#allocation3 + $0x30] sm:$0xff] %v2447
        %2464 = vst [vmem:[#allocation3 + $0x38] sm:$0xff] %v2448
        %2465 = vst [vmem:[#allocation3 + $0x40] sm:$0xff] %v2449
        %2466 = vst [vmem:[#allocation3 + $0x48] sm:$0xff] %v2450
        %2467 = vst [vmem:[#allocation3 + $0x50] sm:$0xff] %v2451
        %2468 = vst [vmem:[#allocation3 + $0x58] sm:$0xff] %v2452
        %2469 = vst [vmem:[#allocation3 + $0x60] sm:$0xff] %v2453
        %2470 = vst [vmem:[#allocation3 + $0x68] sm:$0xff] %v2454
        %2471 = vst [vmem:[#allocation3 + $0x70] sm:$0xff] %v2455
        %2472 = vst [vmem:[#allocation3 + $0x78] sm:$0xff] %v2456
        %2473 = vst [vmem:[#allocation2] sm:$0xff] %v2297
        %2474 = vst [vmem:[#allocation2 + $0x8] sm:$0xff] %v2298
        %2475 = vst [vmem:[#allocation2 + $0x10] sm:$0xff] %v2299
        %2476 = vst [vmem:[#allocation2 + $0x18] sm:$0xff] %v2300
        %2477 = vst [vmem:[#allocation2 + $0x20] sm:$0xff] %v2301
        %2478 = vst [vmem:[#allocation2 + $0x28] sm:$0xff] %v2302
        %2479 = vst [vmem:[#allocation2 + $0x30] sm:$0xff] %v2303
        %2480 = vst [vmem:[#allocation2 + $0x38] sm:$0xff] %v2304
        %2481 = vst [vmem:[#allocation2 + $0x40] sm:$0xff] %v2305
        %2482 = vst [vmem:[#allocation2 + $0x48] sm:$0xff] %v2306
        %2483 = vst [vmem:[#allocation2 + $0x50] sm:$0xff] %v2307
        %2484 = vst [vmem:[#allocation2 + $0x58] sm:$0xff] %v2308
        %2485 = vst [vmem:[#allocation2 + $0x60] sm:$0xff] %v2309
        %2486 = vst [vmem:[#allocation2 + $0x68] sm:$0xff] %v2310
        %2487 = vst [vmem:[#allocation2 + $0x70] sm:$0xff] %v2311
        %2488 = vst [vmem:[#allocation2 + $0x78] sm:$0xff] %v2312
        %v2489 = vld [vmem:[#allocation4] sm:$0xff]
        %v2490 = vld [vmem:[#allocation4 + $0x8] sm:$0xff]
        %v2491 = vld [vmem:[#allocation4 + $0x10] sm:$0xff]
        %v2492 = vld [vmem:[#allocation4 + $0x18] sm:$0xff]
        %v2493 = vld [vmem:[#allocation4 + $0x20] sm:$0xff]
        %v2494 = vld [vmem:[#allocation4 + $0x28] sm:$0xff]
        %v2495 = vld [vmem:[#allocation4 + $0x30] sm:$0xff]
        %v2496 = vld [vmem:[#allocation4 + $0x38] sm:$0xff]
        %v2497 = vld [vmem:[#allocation4 + $0x40] sm:$0xff]
        %v2498 = vld [vmem:[#allocation4 + $0x48] sm:$0xff]
        %v2499 = vld [vmem:[#allocation4 + $0x50] sm:$0xff]
        %v2500 = vld [vmem:[#allocation4 + $0x58] sm:$0xff]
        %v2501 = vld [vmem:[#allocation4 + $0x60] sm:$0xff]
        %v2502 = vld [vmem:[#allocation4 + $0x68] sm:$0xff]
        %v2503 = vld [vmem:[#allocation4 + $0x70] sm:$0xff]
        %v2504 = vld [vmem:[#allocation4 + $0x78] sm:$0xff]
        %v2505 = vsel %vm2265, %v2182, 0.0
        %v2506 = vsel %vm2266, %v2187, 0.0
        %v2507 = vsel %vm2267, %v2192, 0.0
        %v2508 = vsel %vm2268, %v2197, 0.0
        %v2509 = vsel %vm2269, %v2202, 0.0
        %v2510 = vsel %vm2270, %v2207, 0.0
        %v2511 = vsel %vm2271, %v2212, 0.0
        %v2512 = vsel %vm2272, %v2217, 0.0
        %v2513 = vsel %vm2273, %v2222, 0.0
        %v2514 = vsel %vm2274, %v2227, 0.0
        %v2515 = vsel %vm2275, %v2232, 0.0
        %v2516 = vsel %vm2276, %v2237, 0.0
        %v2517 = vsel %vm2277, %v2242, 0.0
        %v2518 = vsel %vm2278, %v2247, 0.0
        %v2519 = vsel %vm2279, %v2252, 0.0
        %v2520 = vsel %vm2280, %v2257, 0.0
        %v2521 = vadd.f32 %v2489, %v2505
        %v2522 = vadd.f32 %v2490, %v2506
        %v2523 = vadd.f32 %v2491, %v2507
        %v2524 = vadd.f32 %v2492, %v2508
        %v2525 = vadd.f32 %v2493, %v2509
        %v2526 = vadd.f32 %v2494, %v2510
        %v2527 = vadd.f32 %v2495, %v2511
        %v2528 = vadd.f32 %v2496, %v2512
        %v2529 = vadd.f32 %v2497, %v2513
        %v2530 = vadd.f32 %v2498, %v2514
        %v2531 = vadd.f32 %v2499, %v2515
        %v2532 = vadd.f32 %v2500, %v2516
        %v2533 = vadd.f32 %v2501, %v2517
        %v2534 = vadd.f32 %v2502, %v2518
        %v2535 = vadd.f32 %v2503, %v2519
        %v2536 = vadd.f32 %v2504, %v2520
        %2537 = vst [vmem:[#allocation4] sm:$0xff] %v2521
        %2538 = vst [vmem:[#allocation4 + $0x8] sm:$0xff] %v2522
        %2539 = vst [vmem:[#allocation4 + $0x10] sm:$0xff] %v2523
        %2540 = vst [vmem:[#allocation4 + $0x18] sm:$0xff] %v2524
        %2541 = vst [vmem:[#allocation4 + $0x20] sm:$0xff] %v2525
        %2542 = vst [vmem:[#allocation4 + $0x28] sm:$0xff] %v2526
        %2543 = vst [vmem:[#allocation4 + $0x30] sm:$0xff] %v2527
        %2544 = vst [vmem:[#allocation4 + $0x38] sm:$0xff] %v2528
        %2545 = vst [vmem:[#allocation4 + $0x40] sm:$0xff] %v2529
        %2546 = vst [vmem:[#allocation4 + $0x48] sm:$0xff] %v2530
        %2547 = vst [vmem:[#allocation4 + $0x50] sm:$0xff] %v2531
        %2548 = vst [vmem:[#allocation4 + $0x58] sm:$0xff] %v2532
        %2549 = vst [vmem:[#allocation4 + $0x60] sm:$0xff] %v2533
        %2550 = vst [vmem:[#allocation4 + $0x68] sm:$0xff] %v2534
        %2551 = vst [vmem:[#allocation4 + $0x70] sm:$0xff] %v2535
        %2552 = vst [vmem:[#allocation4 + $0x78] sm:$0xff] %v2536
        %v2553 = vld [vmem:[#allocation5] sm:$0xff]
        %v2554 = vld [vmem:[#allocation5 + $0x8] sm:$0xff]
        %v2555 = vld [vmem:[#allocation5 + $0x10] sm:$0xff]
        %v2556 = vld [vmem:[#allocation5 + $0x18] sm:$0xff]
        %v2557 = vld [vmem:[#allocation5 + $0x20] sm:$0xff]
        %v2558 = vld [vmem:[#allocation5 + $0x28] sm:$0xff]
        %v2559 = vld [vmem:[#allocation5 + $0x30] sm:$0xff]
        %v2560 = vld [vmem:[#allocation5 + $0x38] sm:$0xff]
        %v2561 = vld [vmem:[#allocation5 + $0x40] sm:$0xff]
        %v2562 = vld [vmem:[#allocation5 + $0x48] sm:$0xff]
        %v2563 = vld [vmem:[#allocation5 + $0x50] sm:$0xff]
        %v2564 = vld [vmem:[#allocation5 + $0x58] sm:$0xff]
        %v2565 = vld [vmem:[#allocation5 + $0x60] sm:$0xff]
        %v2566 = vld [vmem:[#allocation5 + $0x68] sm:$0xff]
        %v2567 = vld [vmem:[#allocation5 + $0x70] sm:$0xff]
        %v2568 = vld [vmem:[#allocation5 + $0x78] sm:$0xff]
        %v2569 = vsel %vm2265, 1.0, 0.0
        %v2570 = vsel %vm2266, 1.0, 0.0
        %v2571 = vsel %vm2267, 1.0, 0.0
        %v2572 = vsel %vm2268, 1.0, 0.0
        %v2573 = vsel %vm2269, 1.0, 0.0
        %v2574 = vsel %vm2270, 1.0, 0.0
        %v2575 = vsel %vm2271, 1.0, 0.0
        %v2576 = vsel %vm2272, 1.0, 0.0
        %v2577 = vsel %vm2273, 1.0, 0.0
        %v2578 = vsel %vm2274, 1.0, 0.0
        %v2579 = vsel %vm2275, 1.0, 0.0
        %v2580 = vsel %vm2276, 1.0, 0.0
        %v2581 = vsel %vm2277, 1.0, 0.0
        %v2582 = vsel %vm2278, 1.0, 0.0
        %v2583 = vsel %vm2279, 1.0, 0.0
        %v2584 = vsel %vm2280, 1.0, 0.0
        %v2585 = vadd.f32 %v2553, %v2569
        %v2586 = vadd.f32 %v2554, %v2570
        %v2587 = vadd.f32 %v2555, %v2571
        %v2588 = vadd.f32 %v2556, %v2572
        %v2589 = vadd.f32 %v2557, %v2573
        %v2590 = vadd.f32 %v2558, %v2574
        %v2591 = vadd.f32 %v2559, %v2575
        %v2592 = vadd.f32 %v2560, %v2576
        %v2593 = vadd.f32 %v2561, %v2577
        %v2594 = vadd.f32 %v2562, %v2578
        %v2595 = vadd.f32 %v2563, %v2579
        %v2596 = vadd.f32 %v2564, %v2580
        %v2597 = vadd.f32 %v2565, %v2581
        %v2598 = vadd.f32 %v2566, %v2582
        %v2599 = vadd.f32 %v2567, %v2583
        %v2600 = vadd.f32 %v2568, %v2584
        %2601 = vst [vmem:[#allocation5] sm:$0xff] %v2585
        %2602 = vst [vmem:[#allocation5 + $0x8] sm:$0xff] %v2586
        %2603 = vst [vmem:[#allocation5 + $0x10] sm:$0xff] %v2587
        %2604 = vst [vmem:[#allocation5 + $0x18] sm:$0xff] %v2588
        %2605 = vst [vmem:[#allocation5 + $0x20] sm:$0xff] %v2589
        %2606 = vst [vmem:[#allocation5 + $0x28] sm:$0xff] %v2590
        %2607 = vst [vmem:[#allocation5 + $0x30] sm:$0xff] %v2591
        %2608 = vst [vmem:[#allocation5 + $0x38] sm:$0xff] %v2592
        %2609 = vst [vmem:[#allocation5 + $0x40] sm:$0xff] %v2593
        %2610 = vst [vmem:[#allocation5 + $0x48] sm:$0xff] %v2594
        %2611 = vst [vmem:[#allocation5 + $0x50] sm:$0xff] %v2595
        %2612 = vst [vmem:[#allocation5 + $0x58] sm:$0xff] %v2596
        %2613 = vst [vmem:[#allocation5 + $0x60] sm:$0xff] %v2597
        %2614 = vst [vmem:[#allocation5 + $0x68] sm:$0xff] %v2598
        %2615 = vst [vmem:[#allocation5 + $0x70] sm:$0xff] %v2599
        %2616 = vst [vmem:[#allocation5 + $0x78] sm:$0xff] %v2600
        // Predicated region
        $region49: #{tpu_custom_call.1} parent=39 // pred_check
          %p2617 = pneg %p321
        $region50: #{tpu_custom_call.1} parent=39 // pred_check_branch
          %2619 = sbr.rel (%p2617) target = $region52
        $region51: #{tpu_custom_call.1} parent=39 // pred_region
          %v2620 = vld [vmem:[#allocation2] sm:$0xff]
          %v2621 = vld [vmem:[#allocation2 + $0x8] sm:$0xff]
          %v2622 = vld [vmem:[#allocation2 + $0x10] sm:$0xff]
          %v2623 = vld [vmem:[#allocation2 + $0x18] sm:$0xff]
          %v2624 = vld [vmem:[#allocation2 + $0x20] sm:$0xff]
          %v2625 = vld [vmem:[#allocation2 + $0x28] sm:$0xff]
          %v2626 = vld [vmem:[#allocation2 + $0x30] sm:$0xff]
          %v2627 = vld [vmem:[#allocation2 + $0x38] sm:$0xff]
          %v2628 = vld [vmem:[#allocation2 + $0x40] sm:$0xff]
          %v2629 = vld [vmem:[#allocation2 + $0x48] sm:$0xff]
          %v2630 = vld [vmem:[#allocation2 + $0x50] sm:$0xff]
          %v2631 = vld [vmem:[#allocation2 + $0x58] sm:$0xff]
          %v2632 = vld [vmem:[#allocation2 + $0x60] sm:$0xff]
          %v2633 = vld [vmem:[#allocation2 + $0x68] sm:$0xff]
          %v2634 = vld [vmem:[#allocation2 + $0x70] sm:$0xff]
          %v2635 = vld [vmem:[#allocation2 + $0x78] sm:$0xff]
          %2636 = vmax.xlane.f32.xlu0 %v2620
          %v2637 = vpop.xlane.xlu0 %2636
          %2638 = vmax.xlane.f32.xlu0 %v2621
          %v2639 = vpop.xlane.xlu0 %2638
          %2640 = vmax.xlane.f32.xlu0 %v2622
          %v2641 = vpop.xlane.xlu0 %2640
          %2642 = vmax.xlane.f32.xlu0 %v2623
          %v2643 = vpop.xlane.xlu0 %2642
          %2644 = vmax.xlane.f32.xlu0 %v2624
          %v2645 = vpop.xlane.xlu0 %2644
          %2646 = vmax.xlane.f32.xlu0 %v2625
          %v2647 = vpop.xlane.xlu0 %2646
          %2648 = vmax.xlane.f32.xlu0 %v2626
          %v2649 = vpop.xlane.xlu0 %2648
          %2650 = vmax.xlane.f32.xlu0 %v2627
          %v2651 = vpop.xlane.xlu0 %2650
          %2652 = vmax.xlane.f32.xlu0 %v2628
          %v2653 = vpop.xlane.xlu0 %2652
          %2654 = vmax.xlane.f32.xlu0 %v2629
          %v2655 = vpop.xlane.xlu0 %2654
          %2656 = vmax.xlane.f32.xlu0 %v2630
          %v2657 = vpop.xlane.xlu0 %2656
          %2658 = vmax.xlane.f32.xlu0 %v2631
          %v2659 = vpop.xlane.xlu0 %2658
          %2660 = vmax.xlane.f32.xlu0 %v2632
          %v2661 = vpop.xlane.xlu0 %2660
          %2662 = vmax.xlane.f32.xlu0 %v2633
          %v2663 = vpop.xlane.xlu0 %2662
          %2664 = vmax.xlane.f32.xlu0 %v2634
          %v2665 = vpop.xlane.xlu0 %2664
          %2666 = vmax.xlane.f32.xlu0 %v2635
          %v2667 = vpop.xlane.xlu0 %2666
          %v2668 = vld [vmem:[#allocation3] sm:$0xff]
          %v2669 = vld [vmem:[#allocation3 + $0x8] sm:$0xff]
          %v2670 = vld [vmem:[#allocation3 + $0x10] sm:$0xff]
          %v2671 = vld [vmem:[#allocation3 + $0x18] sm:$0xff]
          %v2672 = vld [vmem:[#allocation3 + $0x20] sm:$0xff]
          %v2673 = vld [vmem:[#allocation3 + $0x28] sm:$0xff]
          %v2674 = vld [vmem:[#allocation3 + $0x30] sm:$0xff]
          %v2675 = vld [vmem:[#allocation3 + $0x38] sm:$0xff]
          %v2676 = vld [vmem:[#allocation3 + $0x40] sm:$0xff]
          %v2677 = vld [vmem:[#allocation3 + $0x48] sm:$0xff]
          %v2678 = vld [vmem:[#allocation3 + $0x50] sm:$0xff]
          %v2679 = vld [vmem:[#allocation3 + $0x58] sm:$0xff]
          %v2680 = vld [vmem:[#allocation3 + $0x60] sm:$0xff]
          %v2681 = vld [vmem:[#allocation3 + $0x68] sm:$0xff]
          %v2682 = vld [vmem:[#allocation3 + $0x70] sm:$0xff]
          %v2683 = vld [vmem:[#allocation3 + $0x78] sm:$0xff]
          %v2684 = vsub.f32 %v2620, %v2637
          %v2685 = vsub.f32 %v2621, %v2639
          %v2686 = vsub.f32 %v2622, %v2641
          %v2687 = vsub.f32 %v2623, %v2643
          %v2688 = vsub.f32 %v2624, %v2645
          %v2689 = vsub.f32 %v2625, %v2647
          %v2690 = vsub.f32 %v2626, %v2649
          %v2691 = vsub.f32 %v2627, %v2651
          %v2692 = vsub.f32 %v2628, %v2653
          %v2693 = vsub.f32 %v2629, %v2655
          %v2694 = vsub.f32 %v2630, %v2657
          %v2695 = vsub.f32 %v2631, %v2659
          %v2696 = vsub.f32 %v2632, %v2661
          %v2697 = vsub.f32 %v2633, %v2663
          %v2698 = vsub.f32 %v2634, %v2665
          %v2699 = vsub.f32 %v2635, %v2667
          %v2700 = vmul.f32 %v2684, 1.442695
          %v2701 = vpow.pop %v2700
          %v2702 = vmul.f32 %v2685, 1.442695
          %v2703 = vpow.pop %v2702
          %v2704 = vmul.f32 %v2686, 1.442695
          %v2705 = vpow.pop %v2704
          %v2706 = vmul.f32 %v2687, 1.442695
          %v2707 = vpow.pop %v2706
          %v2708 = vmul.f32 %v2688, 1.442695
          %v2709 = vpow.pop %v2708
          %v2710 = vmul.f32 %v2689, 1.442695
          %v2711 = vpow.pop %v2710
          %v2712 = vmul.f32 %v2690, 1.442695
          %v2713 = vpow.pop %v2712
          %v2714 = vmul.f32 %v2691, 1.442695
          %v2715 = vpow.pop %v2714
          %v2716 = vmul.f32 %v2692, 1.442695
          %v2717 = vpow.pop %v2716
          %v2718 = vmul.f32 %v2693, 1.442695
          %v2719 = vpow.pop %v2718
          %v2720 = vmul.f32 %v2694, 1.442695
          %v2721 = vpow.pop %v2720
          %v2722 = vmul.f32 %v2695, 1.442695
          %v2723 = vpow.pop %v2722
          %v2724 = vmul.f32 %v2696, 1.442695
          %v2725 = vpow.pop %v2724
          %v2726 = vmul.f32 %v2697, 1.442695
          %v2727 = vpow.pop %v2726
          %v2728 = vmul.f32 %v2698, 1.442695
          %v2729 = vpow.pop %v2728
          %v2730 = vmul.f32 %v2699, 1.442695
          %v2731 = vpow.pop %v2730
          %v2732 = vmul.f32 %v2668, %v2701
          %v2733 = vmul.f32 %v2669, %v2703
          %v2734 = vmul.f32 %v2670, %v2705
          %v2735 = vmul.f32 %v2671, %v2707
          %v2736 = vmul.f32 %v2672, %v2709
          %v2737 = vmul.f32 %v2673, %v2711
          %v2738 = vmul.f32 %v2674, %v2713
          %v2739 = vmul.f32 %v2675, %v2715
          %v2740 = vmul.f32 %v2676, %v2717
          %v2741 = vmul.f32 %v2677, %v2719
          %v2742 = vmul.f32 %v2678, %v2721
          %v2743 = vmul.f32 %v2679, %v2723
          %v2744 = vmul.f32 %v2680, %v2725
          %v2745 = vmul.f32 %v2681, %v2727
          %v2746 = vmul.f32 %v2682, %v2729
          %v2747 = vmul.f32 %v2683, %v2731
          %2748 = vadd.xlane.f32.xlu0 %v2732
          %v2749 = vpop.xlane.xlu0 %2748
          %2750 = vadd.xlane.f32.xlu0 %v2733
          %v2751 = vpop.xlane.xlu0 %2750
          %2752 = vadd.xlane.f32.xlu0 %v2734
          %v2753 = vpop.xlane.xlu0 %2752
          %2754 = vadd.xlane.f32.xlu0 %v2735
          %v2755 = vpop.xlane.xlu0 %2754
          %2756 = vadd.xlane.f32.xlu0 %v2736
          %v2757 = vpop.xlane.xlu0 %2756
          %2758 = vadd.xlane.f32.xlu0 %v2737
          %v2759 = vpop.xlane.xlu0 %2758
          %2760 = vadd.xlane.f32.xlu0 %v2738
          %v2761 = vpop.xlane.xlu0 %2760
          %2762 = vadd.xlane.f32.xlu0 %v2739
          %v2763 = vpop.xlane.xlu0 %2762
          %2764 = vadd.xlane.f32.xlu0 %v2740
          %v2765 = vpop.xlane.xlu0 %2764
          %2766 = vadd.xlane.f32.xlu0 %v2741
          %v2767 = vpop.xlane.xlu0 %2766
          %2768 = vadd.xlane.f32.xlu0 %v2742
          %v2769 = vpop.xlane.xlu0 %2768
          %2770 = vadd.xlane.f32.xlu0 %v2743
          %v2771 = vpop.xlane.xlu0 %2770
          %2772 = vadd.xlane.f32.xlu0 %v2744
          %v2773 = vpop.xlane.xlu0 %2772
          %2774 = vadd.xlane.f32.xlu0 %v2745
          %v2775 = vpop.xlane.xlu0 %2774
          %2776 = vadd.xlane.f32.xlu0 %v2746
          %v2777 = vpop.xlane.xlu0 %2776
          %2778 = vadd.xlane.f32.xlu0 %v2747
          %v2779 = vpop.xlane.xlu0 %2778
          %v2780 = vlog2.pop %v2749
          %v2781 = vmul.f32 %v2780, 0.6931472
          %v2782 = vlog2.pop %v2751
          %v2783 = vmul.f32 %v2782, 0.6931472
          %v2784 = vlog2.pop %v2753
          %v2785 = vmul.f32 %v2784, 0.6931472
          %v2786 = vlog2.pop %v2755
          %v2787 = vmul.f32 %v2786, 0.6931472
          %v2788 = vlog2.pop %v2757
          %v2789 = vmul.f32 %v2788, 0.6931472
          %v2790 = vlog2.pop %v2759
          %v2791 = vmul.f32 %v2790, 0.6931472
          %v2792 = vlog2.pop %v2761
          %v2793 = vmul.f32 %v2792, 0.6931472
          %v2794 = vlog2.pop %v2763
          %v2795 = vmul.f32 %v2794, 0.6931472
          %v2796 = vlog2.pop %v2765
          %v2797 = vmul.f32 %v2796, 0.6931472
          %v2798 = vlog2.pop %v2767
          %v2799 = vmul.f32 %v2798, 0.6931472
          %v2800 = vlog2.pop %v2769
          %v2801 = vmul.f32 %v2800, 0.6931472
          %v2802 = vlog2.pop %v2771
          %v2803 = vmul.f32 %v2802, 0.6931472
          %v2804 = vlog2.pop %v2773
          %v2805 = vmul.f32 %v2804, 0.6931472
          %v2806 = vlog2.pop %v2775
          %v2807 = vmul.f32 %v2806, 0.6931472
          %v2808 = vlog2.pop %v2777
          %v2809 = vmul.f32 %v2808, 0.6931472
          %v2810 = vlog2.pop %v2779
          %v2811 = vmul.f32 %v2810, 0.6931472
          %v2812 = vadd.f32 %v2637, %v2781
          %v2813 = vadd.f32 %v2639, %v2783
          %v2814 = vadd.f32 %v2641, %v2785
          %v2815 = vadd.f32 %v2643, %v2787
          %v2816 = vadd.f32 %v2645, %v2789
          %v2817 = vadd.f32 %v2647, %v2791
          %v2818 = vadd.f32 %v2649, %v2793
          %v2819 = vadd.f32 %v2651, %v2795
          %v2820 = vadd.f32 %v2653, %v2797
          %v2821 = vadd.f32 %v2655, %v2799
          %v2822 = vadd.f32 %v2657, %v2801
          %v2823 = vadd.f32 %v2659, %v2803
          %v2824 = vadd.f32 %v2661, %v2805
          %v2825 = vadd.f32 %v2663, %v2807
          %v2826 = vadd.f32 %v2665, %v2809
          %v2827 = vadd.f32 %v2667, %v2811
          %v2828 = vld [vmem:[#allocation4] sm:$0xff]
          %v2829 = vld [vmem:[#allocation4 + $0x8] sm:$0xff]
          %v2830 = vld [vmem:[#allocation4 + $0x10] sm:$0xff]
          %v2831 = vld [vmem:[#allocation4 + $0x18] sm:$0xff]
          %v2832 = vld [vmem:[#allocation4 + $0x20] sm:$0xff]
          %v2833 = vld [vmem:[#allocation4 + $0x28] sm:$0xff]
          %v2834 = vld [vmem:[#allocation4 + $0x30] sm:$0xff]
          %v2835 = vld [vmem:[#allocation4 + $0x38] sm:$0xff]
          %v2836 = vld [vmem:[#allocation4 + $0x40] sm:$0xff]
          %v2837 = vld [vmem:[#allocation4 + $0x48] sm:$0xff]
          %v2838 = vld [vmem:[#allocation4 + $0x50] sm:$0xff]
          %v2839 = vld [vmem:[#allocation4 + $0x58] sm:$0xff]
          %v2840 = vld [vmem:[#allocation4 + $0x60] sm:$0xff]
          %v2841 = vld [vmem:[#allocation4 + $0x68] sm:$0xff]
          %v2842 = vld [vmem:[#allocation4 + $0x70] sm:$0xff]
          %v2843 = vld [vmem:[#allocation4 + $0x78] sm:$0xff]
          %2844 = vadd.xlane.f32.xlu0 %v2828
          %v2845 = vpop.xlane.xlu0 %2844
          %2846 = vadd.xlane.f32.xlu0 %v2829
          %v2847 = vpop.xlane.xlu0 %2846
          %2848 = vadd.xlane.f32.xlu0 %v2830
          %v2849 = vpop.xlane.xlu0 %2848
          %2850 = vadd.xlane.f32.xlu0 %v2831
          %v2851 = vpop.xlane.xlu0 %2850
          %2852 = vadd.xlane.f32.xlu0 %v2832
          %v2853 = vpop.xlane.xlu0 %2852
          %2854 = vadd.xlane.f32.xlu0 %v2833
          %v2855 = vpop.xlane.xlu0 %2854
          %2856 = vadd.xlane.f32.xlu0 %v2834
          %v2857 = vpop.xlane.xlu0 %2856
          %2858 = vadd.xlane.f32.xlu0 %v2835
          %v2859 = vpop.xlane.xlu0 %2858
          %2860 = vadd.xlane.f32.xlu0 %v2836
          %v2861 = vpop.xlane.xlu0 %2860
          %2862 = vadd.xlane.f32.xlu0 %v2837
          %v2863 = vpop.xlane.xlu0 %2862
          %2864 = vadd.xlane.f32.xlu0 %v2838
          %v2865 = vpop.xlane.xlu0 %2864
          %2866 = vadd.xlane.f32.xlu0 %v2839
          %v2867 = vpop.xlane.xlu0 %2866
          %2868 = vadd.xlane.f32.xlu0 %v2840
          %v2869 = vpop.xlane.xlu0 %2868
          %2870 = vadd.xlane.f32.xlu0 %v2841
          %v2871 = vpop.xlane.xlu0 %2870
          %2872 = vadd.xlane.f32.xlu0 %v2842
          %v2873 = vpop.xlane.xlu0 %2872
          %2874 = vadd.xlane.f32.xlu0 %v2843
          %v2875 = vpop.xlane.xlu0 %2874
          %v2876 = vld [vmem:[#allocation5] sm:$0xff]
          %v2877 = vld [vmem:[#allocation5 + $0x8] sm:$0xff]
          %v2878 = vld [vmem:[#allocation5 + $0x10] sm:$0xff]
          %v2879 = vld [vmem:[#allocation5 + $0x18] sm:$0xff]
          %v2880 = vld [vmem:[#allocation5 + $0x20] sm:$0xff]
          %v2881 = vld [vmem:[#allocation5 + $0x28] sm:$0xff]
          %v2882 = vld [vmem:[#allocation5 + $0x30] sm:$0xff]
          %v2883 = vld [vmem:[#allocation5 + $0x38] sm:$0xff]
          %v2884 = vld [vmem:[#allocation5 + $0x40] sm:$0xff]
          %v2885 = vld [vmem:[#allocation5 + $0x48] sm:$0xff]
          %v2886 = vld [vmem:[#allocation5 + $0x50] sm:$0xff]
          %v2887 = vld [vmem:[#allocation5 + $0x58] sm:$0xff]
          %v2888 = vld [vmem:[#allocation5 + $0x60] sm:$0xff]
          %v2889 = vld [vmem:[#allocation5 + $0x68] sm:$0xff]
          %v2890 = vld [vmem:[#allocation5 + $0x70] sm:$0xff]
          %v2891 = vld [vmem:[#allocation5 + $0x78] sm:$0xff]
          %2892 = vadd.xlane.f32.xlu0 %v2876
          %v2893 = vpop.xlane.xlu0 %2892
          %2894 = vadd.xlane.f32.xlu0 %v2877
          %v2895 = vpop.xlane.xlu0 %2894
          %2896 = vadd.xlane.f32.xlu0 %v2878
          %v2897 = vpop.xlane.xlu0 %2896
          %2898 = vadd.xlane.f32.xlu0 %v2879
          %v2899 = vpop.xlane.xlu0 %2898
          %2900 = vadd.xlane.f32.xlu0 %v2880
          %v2901 = vpop.xlane.xlu0 %2900
          %2902 = vadd.xlane.f32.xlu0 %v2881
          %v2903 = vpop.xlane.xlu0 %2902
          %2904 = vadd.xlane.f32.xlu0 %v2882
          %v2905 = vpop.xlane.xlu0 %2904
          %2906 = vadd.xlane.f32.xlu0 %v2883
          %v2907 = vpop.xlane.xlu0 %2906
          %2908 = vadd.xlane.f32.xlu0 %v2884
          %v2909 = vpop.xlane.xlu0 %2908
          %2910 = vadd.xlane.f32.xlu0 %v2885
          %v2911 = vpop.xlane.xlu0 %2910
          %2912 = vadd.xlane.f32.xlu0 %v2886
          %v2913 = vpop.xlane.xlu0 %2912
          %2914 = vadd.xlane.f32.xlu0 %v2887
          %v2915 = vpop.xlane.xlu0 %2914
          %2916 = vadd.xlane.f32.xlu0 %v2888
          %v2917 = vpop.xlane.xlu0 %2916
          %2918 = vadd.xlane.f32.xlu0 %v2889
          %v2919 = vpop.xlane.xlu0 %2918
          %2920 = vadd.xlane.f32.xlu0 %v2890
          %v2921 = vpop.xlane.xlu0 %2920
          %2922 = vadd.xlane.f32.xlu0 %v2891
          %v2923 = vpop.xlane.xlu0 %2922
          %v2924 = vmul.f32 %v2893, %v2812
          %v2925 = vmul.f32 %v2895, %v2813
          %v2926 = vmul.f32 %v2897, %v2814
          %v2927 = vmul.f32 %v2899, %v2815
          %v2928 = vmul.f32 %v2901, %v2816
          %v2929 = vmul.f32 %v2903, %v2817
          %v2930 = vmul.f32 %v2905, %v2818
          %v2931 = vmul.f32 %v2907, %v2819
          %v2932 = vmul.f32 %v2909, %v2820
          %v2933 = vmul.f32 %v2911, %v2821
          %v2934 = vmul.f32 %v2913, %v2822
          %v2935 = vmul.f32 %v2915, %v2823
          %v2936 = vmul.f32 %v2917, %v2824
          %v2937 = vmul.f32 %v2919, %v2825
          %v2938 = vmul.f32 %v2921, %v2826
          %v2939 = vmul.f32 %v2923, %v2827
          %v2940 = vsub.f32 %v2845, %v2924
          %v2941 = vsub.f32 %v2847, %v2925
          %v2942 = vsub.f32 %v2849, %v2926
          %v2943 = vsub.f32 %v2851, %v2927
          %v2944 = vsub.f32 %v2853, %v2928
          %v2945 = vsub.f32 %v2855, %v2929
          %v2946 = vsub.f32 %v2857, %v2930
          %v2947 = vsub.f32 %v2859, %v2931
          %v2948 = vsub.f32 %v2861, %v2932
          %v2949 = vsub.f32 %v2863, %v2933
          %v2950 = vsub.f32 %v2865, %v2934
          %v2951 = vsub.f32 %v2867, %v2935
          %v2952 = vsub.f32 %v2869, %v2936
          %v2953 = vsub.f32 %v2871, %v2937
          %v2954 = vsub.f32 %v2873, %v2938
          %v2955 = vsub.f32 %v2875, %v2939
          %v2956 = vmax.f32 %v2893, 1.0
          %v2957 = vmax.f32 %v2895, 1.0
          %v2958 = vmax.f32 %v2897, 1.0
          %v2959 = vmax.f32 %v2899, 1.0
          %v2960 = vmax.f32 %v2901, 1.0
          %v2961 = vmax.f32 %v2903, 1.0
          %v2962 = vmax.f32 %v2905, 1.0
          %v2963 = vmax.f32 %v2907, 1.0
          %v2964 = vmax.f32 %v2909, 1.0
          %v2965 = vmax.f32 %v2911, 1.0
          %v2966 = vmax.f32 %v2913, 1.0
          %v2967 = vmax.f32 %v2915, 1.0
          %v2968 = vmax.f32 %v2917, 1.0
          %v2969 = vmax.f32 %v2919, 1.0
          %v2970 = vmax.f32 %v2921, 1.0
          %v2971 = vmax.f32 %v2923, 1.0
          %v2972 = vrcp.pop %v2956
          %v2973 = vmul.f32 %v2940, %v2972
          %v2974 = vrcp.pop %v2957
          %v2975 = vmul.f32 %v2941, %v2974
          %v2976 = vrcp.pop %v2958
          %v2977 = vmul.f32 %v2942, %v2976
          %v2978 = vrcp.pop %v2959
          %v2979 = vmul.f32 %v2943, %v2978
          %v2980 = vrcp.pop %v2960
          %v2981 = vmul.f32 %v2944, %v2980
          %v2982 = vrcp.pop %v2961
          %v2983 = vmul.f32 %v2945, %v2982
          %v2984 = vrcp.pop %v2962
          %v2985 = vmul.f32 %v2946, %v2984
          %v2986 = vrcp.pop %v2963
          %v2987 = vmul.f32 %v2947, %v2986
          %v2988 = vrcp.pop %v2964
          %v2989 = vmul.f32 %v2948, %v2988
          %v2990 = vrcp.pop %v2965
          %v2991 = vmul.f32 %v2949, %v2990
          %v2992 = vrcp.pop %v2966
          %v2993 = vmul.f32 %v2950, %v2992
          %v2994 = vrcp.pop %v2967
          %v2995 = vmul.f32 %v2951, %v2994
          %v2996 = vrcp.pop %v2968
          %v2997 = vmul.f32 %v2952, %v2996
          %v2998 = vrcp.pop %v2969
          %v2999 = vmul.f32 %v2953, %v2998
          %v3000 = vrcp.pop %v2970
          %v3001 = vmul.f32 %v2954, %v3000
          %v3002 = vrcp.pop %v2971
          %v3003 = vmul.f32 %v2955, %v3002
          %vm3004 = vcmask 7168
          %v3005 = vsel %vm3004, %v2973, 0.0
          %v3006 = vsel %vm3004, %v2975, 0.0
          %v3007 = vadd.f32 %v3005, %v3006
          %v3008 = vsel %vm3004, %v2977, 0.0
          %v3009 = vadd.f32 %v3007, %v3008
          %v3010 = vsel %vm3004, %v2979, 0.0
          %v3011 = vadd.f32 %v3009, %v3010
          %v3012 = vsel %vm3004, %v2981, 0.0
          %v3013 = vadd.f32 %v3011, %v3012
          %v3014 = vsel %vm3004, %v2983, 0.0
          %v3015 = vadd.f32 %v3013, %v3014
          %v3016 = vsel %vm3004, %v2985, 0.0
          %v3017 = vadd.f32 %v3015, %v3016
          %v3018 = vsel %vm3004, %v2987, 0.0
          %v3019 = vadd.f32 %v3017, %v3018
          %v3020 = vsel %vm3004, %v2989, 0.0
          %v3021 = vadd.f32 %v3019, %v3020
          %v3022 = vsel %vm3004, %v2991, 0.0
          %v3023 = vadd.f32 %v3021, %v3022
          %v3024 = vsel %vm3004, %v2993, 0.0
          %v3025 = vadd.f32 %v3023, %v3024
          %v3026 = vsel %vm3004, %v2995, 0.0
          %v3027 = vadd.f32 %v3025, %v3026
          %v3028 = vsel %vm3004, %v2997, 0.0
          %v3029 = vadd.f32 %v3027, %v3028
          %v3030 = vsel %vm3004, %v2999, 0.0
          %v3031 = vadd.f32 %v3029, %v3030
          %v3032 = vsel %vm3004, %v3001, 0.0
          %v3033 = vadd.f32 %v3031, %v3032
          %v3034 = vsel %vm3004, %v3003, 0.0
          %v3035 = vadd.f32 %v3033, %v3034
          %3036 = vadd.xlane.f32.xlu0 %v3035
          %v3037 = vpop.xlane.xlu0 %3036
          %v3038 = vrot.slane %v3037, 4
          %v3039 = vadd.f32 %v3037, %v3038
          %v3040 = vrot.slane %v3039, 2
          %v3041 = vadd.f32 %v3039, %v3040
          %v3042 = vrot.slane %v3041, 1
          %v3043 = vadd.f32 %v3041, %v3042
          %s3044 = vtos %v3043
          %s3045 = ssub.f32 0.0, %s3044
          %v3046 = vstv %s3045
          %3047 = vst [vmem:[%s297] sm:$0xff] %v3046
        $region52: #{tpu_custom_call.1} parent=39 // pred_fallthru
          _
        %s3048 = sand.u32 %s170, 1
        %s3049 = scalar_lea.sflag [#allocation8], %s3048
        %s3050 = sand.u32 %s170, 1
        %s3051 = smul.addr %s3050, 8
        %s3052 = scalar_lea.vmem [#allocation9], %s3051
        // Predicated region
        $region53: #{tpu_custom_call.1} parent=39 // pred_check
          %p3053 = pneg %p180
        $region54: #{tpu_custom_call.1} parent=39 // pred_check_branch
          %3055 = sbr.rel (%p3053) target = $region56
        $region55: #{tpu_custom_call.1} parent=39 // pred_region
          %s3057 = ssub.s32 128, 128
          %3058 = vsyncadd %s3049, %s3057
          %s3059 = smul.addr %s24, 128
          %s3060 = scalar_lea.hbm %s5, %s3059
          %s3062 = sshll.u32 %s3052, 4
          %s3063 = int_to_ptr.vmem [resolvable:$true] %s3062
          %3065 = dma.vmem_to_hbm [thread:$0]  %s3063, 128, %s3060, %s3049
        $region56: #{tpu_custom_call.1} parent=39 // pred_fallthru
          _
      $region40: #{tpu_custom_call.1} parent=5 // pred_fallthru
        _
      %p3066 = scmp.le.s32.totalorder 2, %s15
      // Predicated region
      $region57: #{tpu_custom_call.1} parent=5 // pred_check
        %p3067 = pneg %p3066
      $region58: #{tpu_custom_call.1} parent=5 // pred_check_branch
        %3069 = sbr.rel (%p3067) target = $region60
      $region59: #{tpu_custom_call.1} parent=5 // pred_region
        %s3070 = ssub.s32 %s15, 2
        // Predicated region
        $region61: #{tpu_custom_call.1} parent=59 // pred_check
          %p3071 = pneg %p186
        $region62: #{tpu_custom_call.1} parent=59 // pred_check_branch
          %3073 = sbr.rel (%p3071) target = $region64
        $region63: #{tpu_custom_call.1} parent=59 // pred_region
          %s3074 = sand.u32 %s171, 1
          %s3075 = scalar_lea.sflag [#allocation8], %s3074
          %s3076 = sand.u32 %s171, 1
          %s3077 = smul.addr %s3076, 8
          %s3078 = scalar_lea.vmem [#allocation9], %s3077
          %3079 = dma.done %s3075, 128
        $region64: #{tpu_custom_call.1} parent=59 // pred_fallthru
          _
      $region60: #{tpu_custom_call.1} parent=5 // pred_fallthru
        _
    $region6: #{tpu_custom_call.1} parent=1 // loop_footer
      %s19 = sadd.s32 1, %s15
    $region7: #{tpu_custom_call.1} parent=1 // loop_footer_branch
      %14 = sbr.rel target = $region3
    $region8: #{tpu_custom_call.1} parent=1 // loop_exit
      _
    %3080 = vsyncpa [#allocation7], 1
    %s3081 = scalar_lea.sflag [#allocation7], 1
    %3082 = vsyncpa %s3081, 1
    %3083 = vsyncpa [#allocation8], 1
    %s3084 = scalar_lea.sflag [#allocation8], 1
    %3085 = vsyncpa %s3084, 1

</llo_original>
